<compile_context>
chip_gen: v5e
topology: v5e:2x2
jax: 0.10.0
libtpu: 0.0.40
codegen_flags: <defaults>
</compile_context>

<pallas_src>
import functools

import jax
import jax.numpy as jnp
from jax import lax
from jax.experimental import pallas as pl
from jax.experimental.pallas import tpu as pltpu

LANE = 128
SUBLANE_BF16 = 16  # bf16 (sublane, lane) tile = (16, 128)


def _round_up(x, m):
    return ((x + m - 1) // m) * m


# --------------------------- VMEM budgeting ---------------------------

def _vmem_capacity_bytes():
    """Physical per-TensorCore VMEM; conservative fallback = 64 MiB (v7x)."""
    try:
        info = pltpu.get_tpu_info()
        for attr in ("vmem_capacity_bytes", "vmem_size_bytes", "vmem_bytes"):
            v = getattr(info, attr, None)
            if v:
                return int(v)
    except Exception:
        pass
    return 64 * 1024 * 1024


def _vmem_limit_bytes():
    # ~75% of physical VMEM: 96 MiB on v5e/v6e (128 MiB), 48 MiB on v7x (64 MiB);
    # leaves headroom for compiler-internal scratch and double buffers.
    return max(32 * 1024 * 1024, (_vmem_capacity_bytes() * 3) // 4)


def _estimate_vmem_bytes(TH, W, d, Cin_p, Cmid_p, x_bytes, out_bytes, grouped):
    """Rough per-step VMEM footprint for tile height TH (includes 2x pipeline
    buffers for the blocked operands and the in-kernel temporaries)."""
    rows = TH * W
    pad_l = _round_up(d, SUBLANE_BF16)
    wp = pad_l + W + d
    xin = 2 * (TH + 2 * d) * W * Cin_p * x_bytes            # x center + halos, 2x buffered
    xout = 2 * rows * Cin_p * out_bytes                     # out, 2x buffered
    wts = 2 * ((Cin_p * Cmid_p + 9 * Cmid_p * Cmid_p + Cmid_p * Cin_p) * 2
               + (2 * Cmid_p + Cin_p) * 4)                  # weights/biases, 2x buffered
    scratch = (TH + 2 * d) * wp * Cmid_p * 2                # bf16 y1 staging scratch
    k_patch = (3 if grouped else 9) * Cmid_p
    tmp = rows * (k_patch * 2                               # im2col / grouped patches (bf16)
                  + 6 * Cmid_p                              # y1/y2 f32 + bf16 temporaries
                  + 10 * Cin_p)                             # y3 / residual f32 + x bf16
    return int(1.15 * (xin + xout + wts + scratch + tmp))


def _pick_tile_h(H, W, d, Cin_p, Cmid_p, x_bytes, out_bytes, grouped, budget):
    """Largest TH that divides H, is a multiple of d, and fits the VMEM budget."""
    valid = [th for th in range(H, 0, -1) if H % th == 0 and th % d == 0]
    for th in valid:
        if _estimate_vmem_bytes(th, W, d, Cin_p, Cmid_p,
                                x_bytes, out_bytes, grouped) <= budget:
            return th
    return valid[-1]  # nothing fits comfortably -> smallest valid tile


# --------------------------- Pallas kernel ---------------------------

def _bottleneck_kernel(xc_ref, xt_ref, xb_ref,
                       w1_ref, b1_ref, w2_ref, b2_ref, w3_ref, b3_ref,
                       out_ref, pad_ref, *,
                       dilation, tile_h, pad_left, grouped, h_parallel):
    d = dilation
    TH = tile_h
    PL = pad_left                      # sublane-aligned left padding (>= d)
    _, _, W, Cin_p = xc_ref.shape
    Cmid_p = w1_ref.shape[1]
    Wp = pad_ref.shape[1]

    i = pl.program_id(1)
    n_h = pl.num_programs(1)

    # ---- zero-pad border columns of the y1 scratch -------------------------
    # The interior stores never touch these d columns per side, so with the H
    # axis marked "arbitrary" it is enough to zero them once per image sweep.
    def _zero_border_cols():
        z = jnp.zeros((TH + 2 * d, d, Cmid_p), jnp.bfloat16)
        pad_ref[:, PL - d:PL, :] = z
        pad_ref[:, PL + W:PL + W + d, :] = z

    if h_parallel:
        _zero_border_cols()                    # every step: H axis may be "parallel"
    else:
        pl.when(i == 0)(_zero_border_cols)     # once per image sweep

    # ---- cbr1: 1x1 conv + folded BN + ReLU, written straight into scratch --
    def conv1(x_blk):                          # (R, W, Cin_p) -> (R, W, Cmid_p) bf16
        R = x_blk.shape[0]
        xb = x_blk.astype(jnp.bfloat16).reshape(R * W, Cin_p)
        y = jnp.dot(xb, w1_ref[...], preferred_element_type=jnp.float32)
        y = jnp.maximum(y + b1_ref[...], 0.0)
        return y.reshape(R, W, Cmid_p).astype(jnp.bfloat16)

    # interior store is sublane-aligned because PL % 16 == 0
    pad_ref[d:d + TH, PL:PL + W, :] = conv1(xc_ref[0])        # center rows
    pad_ref[0:d, PL:PL + W, :] = conv1(xt_ref[0])             # top halo rows
    pad_ref[TH + d:, PL:PL + W, :] = conv1(xb_ref[0])         # bottom halo rows

    # Image-boundary halo rows must be zero (conv zero padding); this also
    # discards the garbage produced from the clamped halo block indices.
    @pl.when(i == 0)
    def _():
        pad_ref[0:d, :, :] = jnp.zeros((d, Wp, Cmid_p), jnp.bfloat16)

    @pl.when(i == n_h - 1)
    def _():
        pad_ref[TH + d:, :, :] = jnp.zeros((d, Wp, Cmid_p), jnp.bfloat16)

    # ---- cbr2: 3x3 dilated conv on the MXU ----------------------------------
    def tap(ki, kj):
        return pad_ref[ki * d:ki * d + TH,
                       PL - d + kj * d:PL - d + kj * d + W, :]

    if not grouped:
        # Single big-K im2col matmul (K = 9*Cmid_p).  Best when Cmid_p == 128.
        patches = jnp.concatenate(
            [tap(ki, kj) for ki in range(3) for kj in range(3)],
            axis=-1).reshape(TH * W, 9 * Cmid_p)
        y2 = jnp.dot(patches, w2_ref[...], preferred_element_type=jnp.float32)
    else:
        # 3 grouped dots (K = 3*Cmid_p >= 384 each): smaller im2col temporaries
        # and less VMEM traffic, still deep enough to fill the MXU.
        y2 = None
        for ki in range(3):
            grp = jnp.concatenate([tap(ki, kj) for kj in range(3)],
                                  axis=-1).reshape(TH * W, 3 * Cmid_p)
            part = jnp.dot(grp, w2_ref[ki * 3 * Cmid_p:(ki + 1) * 3 * Cmid_p, :],
                           preferred_element_type=jnp.float32)
            y2 = part if y2 is None else y2 + part
    y2 = jnp.maximum(y2 + b2_ref[...], 0.0).astype(jnp.bfloat16)

    # ---- cb3: 1x1 conv + folded BN, residual add (f32 x), final ReLU --------
    x_res = xc_ref[0].astype(jnp.float32).reshape(TH * W, Cin_p)
    y3 = jnp.dot(y2, w3_ref[...], preferred_element_type=jnp.float32) + b3_ref[...]
    out = jnp.maximum(y3 + x_res, 0.0)
    out_ref[...] = out.reshape(1, TH, W, Cin_p).astype(out_ref.dtype)


# --------------------------- host-side wrappers ---------------------------

def prepare_params(w1, b1, w2, b2, w3, b3):
    """Pad BN-folded params to lane width, reshape w2 to (9*Cmid_p, Cmid_p),
    cast weights to bf16 (biases stay f32)."""
    Cin, Cmid = w1.shape
    Cin_p, Cmid_p = _round_up(Cin, LANE), _round_up(Cmid, LANE)

    w1p = jnp.pad(w1, ((0, Cin_p - Cin), (0, Cmid_p - Cmid))).astype(jnp.bfloat16)
    b1p = jnp.pad(b1, (0, Cmid_p - Cmid)).reshape(1, Cmid_p).astype(jnp.float32)

    w2p = jnp.pad(w2, ((0, 0), (0, 0), (0, Cmid_p - Cmid), (0, Cmid_p - Cmid)))
    w2p = w2p.reshape(9 * Cmid_p, Cmid_p).astype(jnp.bfloat16)
    b2p = jnp.pad(b2, (0, Cmid_p - Cmid)).reshape(1, Cmid_p).astype(jnp.float32)

    w3p = jnp.pad(w3, ((0, Cmid_p - Cmid), (0, Cin_p - Cin))).astype(jnp.bfloat16)
    b3p = jnp.pad(b3, (0, Cin_p - Cin)).reshape(1, Cin_p).astype(jnp.float32)

    return (w1p, b1p, w2p, b2p, w3p, b3p), Cin_p, Cmid_p


def bottleneck_psp_nhwc(x, folded_params, *, dilation=1, tile_h=None,
                        out_dtype=None, h_parallel=False):
    """Recommended NHWC entry point. x: (N, H, W, Cin) float.

    h_parallel=True re-zeros the scratch borders every step so the H grid axis
    can be marked "parallel" as well (useful on v7x when N == 1).
    out_dtype=jnp.bfloat16 halves x/out HBM traffic for memory-bound configs.
    In production keep Cin a multiple of 128 so the final channel slice (an
    extra HBM copy) disappears."""
    N, H, W, Cin = x.shape
    d = int(dilation)
    assert d >= 1 and H % d == 0, "H must be a multiple of the dilation"

    (w1p, b1p, w2p, b2p, w3p, b3p), Cin_p, Cmid_p = prepare_params(*folded_params)
    grouped = Cmid_p >= 256          # grouped-K conv2 when im2col K would be >= 2304
    out_dtype = x.dtype if out_dtype is None else out_dtype
    x_bytes = jnp.dtype(x.dtype).itemsize
    o_bytes = jnp.dtype(out_dtype).itemsize

    vmem_limit = _vmem_limit_bytes()
    if tile_h is None:
        tile_h = _pick_tile_h(H, W, d, Cin_p, Cmid_p, x_bytes, o_bytes, grouped,
                              budget=int(vmem_limit * 0.9))
    TH = int(tile_h)
    assert H % TH == 0 and TH % d == 0, "tile_h must divide H and be a multiple of d"
    n_h = H // TH
    th_blocks = TH // d

    # sublane-aligned left padding so the big y1 staging store is unmasked
    PL = _round_up(d, SUBLANE_BF16)
    Wp = PL + W + d

    # channel pad only (halo handling is in-kernel)
    xp = x if Cin_p == Cin else jnp.pad(x, ((0, 0), (0, 0), (0, 0), (0, Cin_p - Cin)))

    x_center_spec = pl.BlockSpec((1, TH, W, Cin_p), lambda n, i: (n, i, 0, 0))
    # top/bottom halo rows: d-row blocks, block index clamped at the image edge
    # (the clamped garbage is zeroed inside the kernel via pl.when).
    x_top_spec = pl.BlockSpec(
        (1, d, W, Cin_p),
        lambda n, i: (n, jnp.maximum(i * th_blocks - 1, 0), 0, 0))
    x_bot_spec = pl.BlockSpec(
        (1, d, W, Cin_p),
        lambda n, i: (n, jnp.minimum((i + 1) * th_blocks, H // d - 1), 0, 0))
    out_spec = pl.BlockSpec((1, TH, W, Cin_p), lambda n, i: (n, i, 0, 0))

    def _resident(a):  # weights / biases: constant block index -> VMEM resident
        return pl.BlockSpec(a.shape, lambda n, i, _nd=a.ndim: (0,) * _nd)

    kernel = functools.partial(_bottleneck_kernel, dilation=d, tile_h=TH,
                               pad_left=PL, grouped=grouped, h_parallel=h_parallel)

    # N axis can always be megacore-sharded; the H axis must stay sequential
    # unless h_parallel (border columns are only zeroed once per image sweep).
    dims = ("parallel", "parallel") if h_parallel else ("parallel", "arbitrary")

    out = pl.pallas_call(
        kernel,
        grid=(N, n_h),
        out_shape=jax.ShapeDtypeStruct((N, H, W, Cin_p), out_dtype),
        in_specs=[x_center_spec, x_top_spec, x_bot_spec,
                  _resident(w1p), _resident(b1p),
                  _resident(w2p), _resident(b2p),
                  _resident(w3p), _resident(b3p)],
        out_specs=out_spec,
        scratch_shapes=[pltpu.VMEM((TH + 2 * d, Wp, Cmid_p), jnp.bfloat16)],
        compiler_params=pltpu.CompilerParams(
            dimension_semantics=dims,
            vmem_limit_bytes=int(vmem_limit)),
    )(xp, xp, xp, w1p, b1p, w2p, b2p, w3p, b3p)

    return out[..., :Cin] if Cin_p != Cin else out


def bottleneck_psp_nchw(x_nchw, folded_params, *, dilation=1, tile_h=None,
                        out_dtype=None, h_parallel=False):
    """PyTorch-compatible adapter (NCHW in / NCHW out). Prefer the NHWC entry
    point in real pipelines to avoid the boundary transposes."""
    x = jnp.transpose(x_nchw, (0, 2, 3, 1))
    y = bottleneck_psp_nhwc(x, folded_params, dilation=dilation, tile_h=tile_h,
                            out_dtype=out_dtype, h_parallel=h_parallel)
    return jnp.transpose(y, (0, 3, 1, 2))


# ---------------- parameter construction (deterministic) ----------------

def _fold_bn(w, gamma, beta, mean, var, eps=1e-5):
    """Fold eval-mode BatchNorm into a bias-free conv. w has out-channels last.
    # TODO(synk): training-mode BatchNorm (batch statistics + running-stat
    # updates) is not implemented; eval-mode folding only."""
    scale = gamma / jnp.sqrt(var + eps)
    return w * scale, beta - mean * scale


def make_params(key, in_channels, mid_channels):
    ks = jax.random.split(key, 6)
    w1 = jax.random.normal(ks[0], (in_channels, mid_channels), jnp.float32) * 0.1
    w2 = jax.random.normal(ks[1], (3, 3, mid_channels, mid_channels), jnp.float32) * 0.1
    w3 = jax.random.normal(ks[2], (mid_channels, in_channels), jnp.float32) * 0.1

    def bn_params(k, c):
        k1, k2, k3, k4 = jax.random.split(k, 4)
        gamma = 1.0 + 0.1 * jax.random.normal(k1, (c,), jnp.float32)
        beta = 0.1 * jax.random.normal(k2, (c,), jnp.float32)
        mean = 0.1 * jax.random.normal(k3, (c,), jnp.float32)
        var = 0.5 + jnp.abs(jax.random.normal(k4, (c,), jnp.float32))
        return gamma, beta, mean, var

    w1f, b1f = _fold_bn(w1, *bn_params(ks[3], mid_channels))
    w2f, b2f = _fold_bn(w2, *bn_params(ks[4], mid_channels))
    w3f, b3f = _fold_bn(w3, *bn_params(ks[5], in_channels))
    return (w1f, b1f, w2f, b2f, w3f, b3f)


# ---------------- pure-JAX reference (matches kernel numerics) ----------------

def reference_nhwc(x, folded_params, dilation):
    (w1p, b1p, w2p, b2p, w3p, b3p), Cin_p, Cmid_p = prepare_params(*folded_params)
    N, H, W, Cin = x.shape
    xp = jnp.pad(x, ((0, 0), (0, 0), (0, 0), (0, Cin_p - Cin))).astype(jnp.float32)

    xb = xp.astype(jnp.bfloat16)
    y1 = jnp.einsum('nhwc,cd->nhwd', xb, w1p,
                    preferred_element_type=jnp.float32) + b1p[0]
    y1 = jnp.maximum(y1, 0.0).astype(jnp.bfloat16)

    w2hwio = w2p.reshape(3, 3, Cmid_p, Cmid_p)
    y2 = lax.conv_general_dilated(
        y1, w2hwio, window_strides=(1, 1),
        padding=[(dilation, dilation), (dilation, dilation)],
        rhs_dilation=(dilation, dilation),
        dimension_numbers=('NHWC', 'HWIO', 'NHWC'),
        preferred_element_type=jnp.float32) + b2p[0]
    y2 = jnp.maximum(y2, 0.0).astype(jnp.bfloat16)

    y3 = jnp.einsum('nhwc,cd->nhwd', y2, w3p,
                    preferred_element_type=jnp.float32) + b3p[0]
    out = jnp.maximum(y3 + xp, 0.0)
    return out[..., :Cin]


if __name__ == "__main__":
    key = jax.random.PRNGKey(0)
    k_x, k_p, k_x2, k_p2 = jax.random.split(key, 4)

    # Case 1: Cmid_p == 128 -> big-K im2col path.  tile_h=8 forces a multi-tile
    # H sweep so the halo recompute / boundary zeroing is exercised; dilation=1
    # additionally runs the h_parallel (per-step border zeroing) variant.
    N, C_in, C_mid, H, W = 2, 16, 8, 16, 16
    x_nchw = jax.random.normal(k_x, (N, C_in, H, W), jnp.float32)
    params = make_params(k_p, C_in, C_mid)
    x_nhwc = jnp.transpose(x_nchw, (0, 2, 3, 1))
    for dilation in (1, 2):
        out = jax.block_until_ready(
            bottleneck_psp_nchw(x_nchw, params, dilation=dilation, tile_h=8,
                                h_parallel=(dilation == 1)))
        assert out.shape == (N, C_in, H, W)
        ref = jnp.transpose(reference_nhwc(x_nhwc, params, dilation), (0, 3, 1, 2))
        err = jnp.max(jnp.abs(out - ref))
        assert jnp.allclose(out, ref, atol=1e-2, rtol=1e-2), \
            f"case1 dilation={dilation}: max err {err}"

    # Case 1b: automatic VMEM-budgeted tile selection (TH == H here).
    out = jax.block_until_ready(bottleneck_psp_nchw(x_nchw, params, dilation=2))
    ref = jnp.transpose(reference_nhwc(x_nhwc, params, 2), (0, 3, 1, 2))
    assert jnp.allclose(out, ref, atol=1e-2, rtol=1e-2), "case1b mismatch"

    # Case 2: Cmid_p == 256 -> grouped-K (3 x K=3*Cmid_p) conv2 path.
    N2, C_in2, C_mid2 = 1, 32, 160
    x2_nchw = jax.random.normal(k_x2, (N2, C_in2, H, W), jnp.float32)
    params2 = make_params(k_p2, C_in2, C_mid2)
    out2 = jax.block_until_ready(
        bottleneck_psp_nchw(x2_nchw, params2, dilation=2, tile_h=8))
    ref2 = jnp.transpose(
        reference_nhwc(jnp.transpose(x2_nchw, (0, 2, 3, 1)), params2, 2),
        (0, 3, 1, 2))
    err2 = jnp.max(jnp.abs(out2 - ref2))
    assert jnp.allclose(out2, ref2, atol=1e-2, rtol=1e-2), f"case2: max err {err2}"

    print("KERNEL_OK")
</pallas_src>

<mosaic_0001>
module attributes {stable_mosaic.version = 11 : i64} {
  func.func @_bottleneck_kernel(%arg0: i32, %arg1: i32, %arg2: memref<1x8x16x128xf32, #tpu.memory_space<vmem>>, %arg3: memref<1x1x16x128xf32, #tpu.memory_space<vmem>>, %arg4: memref<1x1x16x128xf32, #tpu.memory_space<vmem>>, %arg5: memref<128x128xbf16, #tpu.memory_space<vmem>>, %arg6: memref<1x128xf32, #tpu.memory_space<vmem>>, %arg7: memref<1152x128xbf16, #tpu.memory_space<vmem>>, %arg8: memref<1x128xf32, #tpu.memory_space<vmem>>, %arg9: memref<128x128xbf16, #tpu.memory_space<vmem>>, %arg10: memref<1x128xf32, #tpu.memory_space<vmem>>, %arg11: memref<1x8x16x128xf32, #tpu.memory_space<vmem>>, %arg12: memref<10x33x128xbf16, #tpu.memory_space<vmem>>) attributes {dimension_semantics = [#tpu.dimension_semantics<parallel>, #tpu.dimension_semantics<parallel>], iteration_bounds = array<i64: 2, 2>, scalar_prefetch = 0 : i64, scratch_operands = 1 : i64, tpu.core_type = #tpu.core_type<tc>, window_params = [{transform_indices = @transform_0, window_bounds = array<i64: 1, 8, 16, 128>}, {transform_indices = @transform_1, window_bounds = array<i64: 1, 1, 16, 128>}, {transform_indices = @transform_2, window_bounds = array<i64: 1, 1, 16, 128>}, {pipeline_mode = #tpu.pipeline_mode<synchronous>, transform_indices = @transform_3, window_bounds = array<i64: 128, 128>}, {pipeline_mode = #tpu.pipeline_mode<synchronous>, transform_indices = @transform_4, window_bounds = array<i64: 1, 128>}, {pipeline_mode = #tpu.pipeline_mode<synchronous>, transform_indices = @transform_5, window_bounds = array<i64: 1152, 128>}, {pipeline_mode = #tpu.pipeline_mode<synchronous>, transform_indices = @transform_6, window_bounds = array<i64: 1, 128>}, {pipeline_mode = #tpu.pipeline_mode<synchronous>, transform_indices = @transform_7, window_bounds = array<i64: 128, 128>}, {pipeline_mode = #tpu.pipeline_mode<synchronous>, transform_indices = @transform_8, window_bounds = array<i64: 1, 128>}, {transform_indices = @transform_9, window_bounds = array<i64: 1, 8, 16, 128>}]} {
    %cst = arith.constant 0.000000e+00 : bf16
    %0 = vector.broadcast %cst : bf16 to vector<10x1x128xbf16>
    %c0 = arith.constant 0 : index
    %c15 = arith.constant 15 : index
    %c0_0 = arith.constant 0 : index
    %1 = vector.load %arg12[%c0, %c15, %c0_0] : memref<10x33x128xbf16, #tpu.memory_space<vmem>>, vector<10x1x128xbf16>
    tpu.vector_store %arg12[%c0, %c15, %c0_0], %0 {strides = array<i32>} : memref<10x33x128xbf16, #tpu.memory_space<vmem>>, vector<10x1x128xbf16>,
    %c0_1 = arith.constant 0 : index
    %c32 = arith.constant 32 : index
    %c0_2 = arith.constant 0 : index
    %2 = vector.load %arg12[%c0_1, %c32, %c0_2] : memref<10x33x128xbf16, #tpu.memory_space<vmem>>, vector<10x1x128xbf16>
    tpu.vector_store %arg12[%c0_1, %c32, %c0_2], %0 {strides = array<i32>} : memref<10x33x128xbf16, #tpu.memory_space<vmem>>, vector<10x1x128xbf16>,
    %c0_3 = arith.constant 0 : index
    %c0_4 = arith.constant 0 : index
    %c0_5 = arith.constant 0 : index
    %c0_6 = arith.constant 0 : index
    %3 = vector.load %arg2[%c0_3, %c0_4, %c0_5, %c0_6] : memref<1x8x16x128xf32, #tpu.memory_space<vmem>>, vector<1x8x16x128xf32>
    %4 = vector.shape_cast %3 : vector<1x8x16x128xf32> to vector<8x16x128xf32>
    %5 = arith.truncf %4 : vector<8x16x128xf32> to vector<8x16x128xbf16>
    %6 = vector.shape_cast %5 : vector<8x16x128xbf16> to vector<128x128xbf16>
    %c0_7 = arith.constant 0 : index
    %c0_8 = arith.constant 0 : index
    %7 = vector.load %arg5[%c0_7, %c0_8] : memref<128x128xbf16, #tpu.memory_space<vmem>>, vector<128x128xbf16>
    %cst_9 = arith.constant dense<0.000000e+00> : vector<128x128xf32>
    %8 = tpu.matmul %6, %7, %cst_9 {dimension_numbers = #tpu.dot_dimension_numbers<[1], [0], [0], [1], [0, 0, 1, 1], [], []>} : vector<128x128xbf16>, vector<128x128xbf16>, vector<128x128xf32> -> vector<128x128xf32>
    %c0_10 = arith.constant 0 : index
    %c0_11 = arith.constant 0 : index
    %9 = vector.load %arg6[%c0_10, %c0_11] : memref<1x128xf32, #tpu.memory_space<vmem>>, vector<1x128xf32>
    %10 = vector.broadcast %9 : vector<1x128xf32> to vector<128x128xf32>
    %11 = arith.addf %8, %10 : vector<128x128xf32>
    %cst_12 = arith.constant 0.000000e+00 : f32
    %12 = vector.broadcast %cst_12 : f32 to vector<128x128xf32>
    %13 = arith.maximumf %11, %12 : vector<128x128xf32>
    %14 = vector.shape_cast %13 : vector<128x128xf32> to vector<8x16x128xf32>
    %15 = arith.truncf %14 : vector<8x16x128xf32> to vector<8x16x128xbf16>
    %c1 = arith.constant 1 : index
    %c16 = arith.constant 16 : index
    %c0_13 = arith.constant 0 : index
    %16 = vector.load %arg12[%c1, %c16, %c0_13] : memref<10x33x128xbf16, #tpu.memory_space<vmem>>, vector<8x16x128xbf16>
    tpu.vector_store %arg12[%c1, %c16, %c0_13], %15 {strides = array<i32>} : memref<10x33x128xbf16, #tpu.memory_space<vmem>>, vector<8x16x128xbf16>,
    %c0_14 = arith.constant 0 : index
    %c0_15 = arith.constant 0 : index
    %c0_16 = arith.constant 0 : index
    %c0_17 = arith.constant 0 : index
    %17 = vector.load %arg3[%c0_14, %c0_15, %c0_16, %c0_17] : memref<1x1x16x128xf32, #tpu.memory_space<vmem>>, vector<1x1x16x128xf32>
    %18 = vector.shape_cast %17 : vector<1x1x16x128xf32> to vector<1x16x128xf32>
    %19 = arith.truncf %18 : vector<1x16x128xf32> to vector<1x16x128xbf16>
    %20 = vector.shape_cast %19 : vector<1x16x128xbf16> to vector<16x128xbf16>
    %c0_18 = arith.constant 0 : index
    %c0_19 = arith.constant 0 : index
    %21 = vector.load %arg5[%c0_18, %c0_19] : memref<128x128xbf16, #tpu.memory_space<vmem>>, vector<128x128xbf16>
    %cst_20 = arith.constant dense<0.000000e+00> : vector<16x128xf32>
    %22 = tpu.matmul %20, %21, %cst_20 {dimension_numbers = #tpu.dot_dimension_numbers<[1], [0], [0], [1], [0, 0, 1, 1], [], []>} : vector<16x128xbf16>, vector<128x128xbf16>, vector<16x128xf32> -> vector<16x128xf32>
    %c0_21 = arith.constant 0 : index
    %c0_22 = arith.constant 0 : index
    %23 = vector.load %arg6[%c0_21, %c0_22] : memref<1x128xf32, #tpu.memory_space<vmem>>, vector<1x128xf32>
    %24 = vector.broadcast %23 : vector<1x128xf32> to vector<16x128xf32>
    %25 = arith.addf %22, %24 : vector<16x128xf32>
    %cst_23 = arith.constant 0.000000e+00 : f32
    %26 = vector.broadcast %cst_23 : f32 to vector<16x128xf32>
    %27 = arith.maximumf %25, %26 : vector<16x128xf32>
    %28 = vector.shape_cast %27 : vector<16x128xf32> to vector<1x16x128xf32>
    %29 = arith.truncf %28 : vector<1x16x128xf32> to vector<1x16x128xbf16>
    %c0_24 = arith.constant 0 : index
    %c16_25 = arith.constant 16 : index
    %c0_26 = arith.constant 0 : index
    %30 = vector.load %arg12[%c0_24, %c16_25, %c0_26] : memref<10x33x128xbf16, #tpu.memory_space<vmem>>, vector<1x16x128xbf16>
    tpu.vector_store %arg12[%c0_24, %c16_25, %c0_26], %29 {strides = array<i32>} : memref<10x33x128xbf16, #tpu.memory_space<vmem>>, vector<1x16x128xbf16>,
    %c0_27 = arith.constant 0 : index
    %c0_28 = arith.constant 0 : index
    %c0_29 = arith.constant 0 : index
    %c0_30 = arith.constant 0 : index
    %31 = vector.load %arg4[%c0_27, %c0_28, %c0_29, %c0_30] : memref<1x1x16x128xf32, #tpu.memory_space<vmem>>, vector<1x1x16x128xf32>
    %32 = vector.shape_cast %31 : vector<1x1x16x128xf32> to vector<1x16x128xf32>
    %33 = arith.truncf %32 : vector<1x16x128xf32> to vector<1x16x128xbf16>
    %34 = vector.shape_cast %33 : vector<1x16x128xbf16> to vector<16x128xbf16>
    %c0_31 = arith.constant 0 : index
    %c0_32 = arith.constant 0 : index
    %35 = vector.load %arg5[%c0_31, %c0_32] : memref<128x128xbf16, #tpu.memory_space<vmem>>, vector<128x128xbf16>
    %cst_33 = arith.constant dense<0.000000e+00> : vector<16x128xf32>
    %36 = tpu.matmul %34, %35, %cst_33 {dimension_numbers = #tpu.dot_dimension_numbers<[1], [0], [0], [1], [0, 0, 1, 1], [], []>} : vector<16x128xbf16>, vector<128x128xbf16>, vector<16x128xf32> -> vector<16x128xf32>
    %c0_34 = arith.constant 0 : index
    %c0_35 = arith.constant 0 : index
    %37 = vector.load %arg6[%c0_34, %c0_35] : memref<1x128xf32, #tpu.memory_space<vmem>>, vector<1x128xf32>
    %38 = vector.broadcast %37 : vector<1x128xf32> to vector<16x128xf32>
    %39 = arith.addf %36, %38 : vector<16x128xf32>
    %cst_36 = arith.constant 0.000000e+00 : f32
    %40 = vector.broadcast %cst_36 : f32 to vector<16x128xf32>
    %41 = arith.maximumf %39, %40 : vector<16x128xf32>
    %42 = vector.shape_cast %41 : vector<16x128xf32> to vector<1x16x128xf32>
    %43 = arith.truncf %42 : vector<1x16x128xf32> to vector<1x16x128xbf16>
    %c9 = arith.constant 9 : index
    %c16_37 = arith.constant 16 : index
    %c0_38 = arith.constant 0 : index
    %44 = vector.load %arg12[%c9, %c16_37, %c0_38] : memref<10x33x128xbf16, #tpu.memory_space<vmem>>, vector<1x16x128xbf16>
    tpu.vector_store %arg12[%c9, %c16_37, %c0_38], %43 {strides = array<i32>} : memref<10x33x128xbf16, #tpu.memory_space<vmem>>, vector<1x16x128xbf16>,
    %c0_i32 = arith.constant 0 : i32
    %45 = arith.cmpi eq, %arg1, %c0_i32 : i32
    %46 = arith.extui %45 : i1 to i32
    %c0_i32_39 = arith.constant 0 : i32
    %47 = arith.cmpi ne, %46, %c0_i32_39 : i32
    scf.if %47 {
      %cst_86 = arith.constant 0.000000e+00 : bf16
      %83 = vector.broadcast %cst_86 : bf16 to vector<1x33x128xbf16>
      %c0_87 = arith.constant 0 : index
      %c0_88 = arith.constant 0 : index
      %c0_89 = arith.constant 0 : index
      %84 = vector.load %arg12[%c0_87, %c0_88, %c0_89] : memref<10x33x128xbf16, #tpu.memory_space<vmem>>, vector<1x33x128xbf16>
      tpu.vector_store %arg12[%c0_87, %c0_88, %c0_89], %83 {strides = array<i32>} : memref<10x33x128xbf16, #tpu.memory_space<vmem>>, vector<1x33x128xbf16>,
    } else {
    }
    %c1_i32 = arith.constant 1 : i32
    %48 = arith.cmpi eq, %arg1, %c1_i32 : i32
    %49 = arith.extui %48 : i1 to i32
    %c0_i32_40 = arith.constant 0 : i32
    %50 = arith.cmpi ne, %49, %c0_i32_40 : i32
    scf.if %50 {
      %cst_86 = arith.constant 0.000000e+00 : bf16
      %83 = vector.broadcast %cst_86 : bf16 to vector<1x33x128xbf16>
      %c9_87 = arith.constant 9 : index
      %c0_88 = arith.constant 0 : index
      %c0_89 = arith.constant 0 : index
      %84 = vector.load %arg12[%c9_87, %c0_88, %c0_89] : memref<10x33x128xbf16, #tpu.memory_space<vmem>>, vector<1x33x128xbf16>
      tpu.vector_store %arg12[%c9_87, %c0_88, %c0_89], %83 {strides = array<i32>} : memref<10x33x128xbf16, #tpu.memory_space<vmem>>, vector<1x33x128xbf16>,
    } else {
    }
    %c0_41 = arith.constant 0 : index
    %c15_42 = arith.constant 15 : index
    %c0_43 = arith.constant 0 : index
    %51 = vector.load %arg12[%c0_41, %c15_42, %c0_43] : memref<10x33x128xbf16, #tpu.memory_space<vmem>>, vector<8x16x128xbf16>
    %c0_44 = arith.constant 0 : index
    %c16_45 = arith.constant 16 : index
    %c0_46 = arith.constant 0 : index
    %52 = vector.load %arg12[%c0_44, %c16_45, %c0_46] : memref<10x33x128xbf16, #tpu.memory_space<vmem>>, vector<8x16x128xbf16>
    %c0_47 = arith.constant 0 : index
    %c17 = arith.constant 17 : index
    %c0_48 = arith.constant 0 : index
    %53 = vector.load %arg12[%c0_47, %c17, %c0_48] : memref<10x33x128xbf16, #tpu.memory_space<vmem>>, vector<8x16x128xbf16>
    %c1_49 = arith.constant 1 : index
    %c15_50 = arith.constant 15 : index
    %c0_51 = arith.constant 0 : index
    %54 = vector.load %arg12[%c1_49, %c15_50, %c0_51] : memref<10x33x128xbf16, #tpu.memory_space<vmem>>, vector<8x16x128xbf16>
    %c1_52 = arith.constant 1 : index
    %c16_53 = arith.constant 16 : index
    %c0_54 = arith.constant 0 : index
    %55 = vector.load %arg12[%c1_52, %c16_53, %c0_54] : memref<10x33x128xbf16, #tpu.memory_space<vmem>>, vector<8x16x128xbf16>
    %c1_55 = arith.constant 1 : index
    %c17_56 = arith.constant 17 : index
    %c0_57 = arith.constant 0 : index
    %56 = vector.load %arg12[%c1_55, %c17_56, %c0_57] : memref<10x33x128xbf16, #tpu.memory_space<vmem>>, vector<8x16x128xbf16>
    %c2 = arith.constant 2 : index
    %c15_58 = arith.constant 15 : index
    %c0_59 = arith.constant 0 : index
    %57 = vector.load %arg12[%c2, %c15_58, %c0_59] : memref<10x33x128xbf16, #tpu.memory_space<vmem>>, vector<8x16x128xbf16>
    %c2_60 = arith.constant 2 : index
    %c16_61 = arith.constant 16 : index
    %c0_62 = arith.constant 0 : index
    %58 = vector.load %arg12[%c2_60, %c16_61, %c0_62] : memref<10x33x128xbf16, #tpu.memory_space<vmem>>, vector<8x16x128xbf16>
    %c2_63 = arith.constant 2 : index
    %c17_64 = arith.constant 17 : index
    %c0_65 = arith.constant 0 : index
    %59 = vector.load %arg12[%c2_63, %c17_64, %c0_65] : memref<10x33x128xbf16, #tpu.memory_space<vmem>>, vector<8x16x128xbf16>
    %60 = tpu.concatenate %51, %52, %53, %54, %55, %56, %57, %58, %59 in 2 : vector<8x16x128xbf16>, vector<8x16x128xbf16>, vector<8x16x128xbf16>, vector<8x16x128xbf16>, vector<8x16x128xbf16>, vector<8x16x128xbf16>, vector<8x16x128xbf16>, vector<8x16x128xbf16>, vector<8x16x128xbf16> -> vector<8x16x1152xbf16>
    %61 = vector.shape_cast %60 : vector<8x16x1152xbf16> to vector<128x1152xbf16>
    %c0_66 = arith.constant 0 : index
    %c0_67 = arith.constant 0 : index
    %62 = vector.load %arg7[%c0_66, %c0_67] : memref<1152x128xbf16, #tpu.memory_space<vmem>>, vector<1152x128xbf16>
    %cst_68 = arith.constant dense<0.000000e+00> : vector<128x128xf32>
    %63 = tpu.matmul %61, %62, %cst_68 {dimension_numbers = #tpu.dot_dimension_numbers<[1], [0], [0], [1], [0, 0, 1, 1], [], []>} : vector<128x1152xbf16>, vector<1152x128xbf16>, vector<128x128xf32> -> vector<128x128xf32>
    %c0_69 = arith.constant 0 : index
    %c0_70 = arith.constant 0 : index
    %64 = vector.load %arg8[%c0_69, %c0_70] : memref<1x128xf32, #tpu.memory_space<vmem>>, vector<1x128xf32>
    %65 = vector.broadcast %64 : vector<1x128xf32> to vector<128x128xf32>
    %66 = arith.addf %63, %65 : vector<128x128xf32>
    %cst_71 = arith.constant 0.000000e+00 : f32
    %67 = vector.broadcast %cst_71 : f32 to vector<128x128xf32>
    %68 = arith.maximumf %66, %67 : vector<128x128xf32>
    %69 = arith.truncf %68 : vector<128x128xf32> to vector<128x128xbf16>
    %c0_72 = arith.constant 0 : index
    %c0_73 = arith.constant 0 : index
    %c0_74 = arith.constant 0 : index
    %c0_75 = arith.constant 0 : index
    %70 = vector.load %arg2[%c0_72, %c0_73, %c0_74, %c0_75] : memref<1x8x16x128xf32, #tpu.memory_space<vmem>>, vector<1x8x16x128xf32>
    %71 = vector.shape_cast %70 : vector<1x8x16x128xf32> to vector<8x16x128xf32>
    %72 = vector.shape_cast %71 : vector<8x16x128xf32> to vector<128x128xf32>
    %c0_76 = arith.constant 0 : index
    %c0_77 = arith.constant 0 : index
    %73 = vector.load %arg9[%c0_76, %c0_77] : memref<128x128xbf16, #tpu.memory_space<vmem>>, vector<128x128xbf16>
    %cst_78 = arith.constant dense<0.000000e+00> : vector<128x128xf32>
    %74 = tpu.matmul %69, %73, %cst_78 {dimension_numbers = #tpu.dot_dimension_numbers<[1], [0], [0], [1], [0, 0, 1, 1], [], []>} : vector<128x128xbf16>, vector<128x128xbf16>, vector<128x128xf32> -> vector<128x128xf32>
    %c0_79 = arith.constant 0 : index
    %c0_80 = arith.constant 0 : index
    %75 = vector.load %arg10[%c0_79, %c0_80] : memref<1x128xf32, #tpu.memory_space<vmem>>, vector<1x128xf32>
    %76 = vector.broadcast %75 : vector<1x128xf32> to vector<128x128xf32>
    %77 = arith.addf %74, %76 : vector<128x128xf32>
    %78 = arith.addf %77, %72 : vector<128x128xf32>
    %cst_81 = arith.constant 0.000000e+00 : f32
    %79 = vector.broadcast %cst_81 : f32 to vector<128x128xf32>
    %80 = arith.maximumf %78, %79 : vector<128x128xf32>
    %81 = vector.shape_cast %80 : vector<128x128xf32> to vector<1x8x16x128xf32>
    %c0_82 = arith.constant 0 : index
    %c0_83 = arith.constant 0 : index
    %c0_84 = arith.constant 0 : index
    %c0_85 = arith.constant 0 : index
    %82 = vector.load %arg11[%c0_82, %c0_83, %c0_84, %c0_85] : memref<1x8x16x128xf32, #tpu.memory_space<vmem>>, vector<1x8x16x128xf32>
    tpu.vector_store %arg11[%c0_82, %c0_83, %c0_84, %c0_85], %81 {strides = array<i32>} : memref<1x8x16x128xf32, #tpu.memory_space<vmem>>, vector<1x8x16x128xf32>,
    return
  }
  func.func @transform_0(%arg0: i32, %arg1: i32) -> (i32, i32, i32, i32) {
    %c0_i32 = arith.constant 0 : i32
    %c0_i32_0 = arith.constant 0 : i32
    %c0_i32_1 = arith.constant 0 : i32
    return %arg0, %arg1, %c0_i32, %c0_i32_0 : i32, i32, i32, i32
  }
  func.func @transform_1(%arg0: i32, %arg1: i32) -> (i32, i32, i32, i32) {
    %c8_i32 = arith.constant 8 : i32
    %0 = arith.muli %arg1, %c8_i32 : i32
    %c1_i32 = arith.constant 1 : i32
    %1 = arith.subi %0, %c1_i32 : i32
    %c0_i32 = arith.constant 0 : i32
    %2 = arith.maxsi %1, %c0_i32 : i32
    %c0_i32_0 = arith.constant 0 : i32
    %c0_i32_1 = arith.constant 0 : i32
    %c0_i32_2 = arith.constant 0 : i32
    return %arg0, %2, %c0_i32_0, %c0_i32_1 : i32, i32, i32, i32
  }
  func.func @transform_2(%arg0: i32, %arg1: i32) -> (i32, i32, i32, i32) {
    %c1_i32 = arith.constant 1 : i32
    %0 = arith.addi %arg1, %c1_i32 : i32
    %c8_i32 = arith.constant 8 : i32
    %1 = arith.muli %0, %c8_i32 : i32
    %c15_i32 = arith.constant 15 : i32
    %2 = arith.minsi %1, %c15_i32 : i32
    %c0_i32 = arith.constant 0 : i32
    %c0_i32_0 = arith.constant 0 : i32
    %c0_i32_1 = arith.constant 0 : i32
    return %arg0, %2, %c0_i32, %c0_i32_0 : i32, i32, i32, i32
  }
  func.func @transform_3(%arg0: i32, %arg1: i32) -> (i32, i32) {
    %c0_i32 = arith.constant 0 : i32
    %c0_i32_0 = arith.constant 0 : i32
    %c0_i32_1 = arith.constant 0 : i32
    return %c0_i32, %c0_i32_0 : i32, i32
  }
  func.func @transform_4(%arg0: i32, %arg1: i32) -> (i32, i32) {
    %c0_i32 = arith.constant 0 : i32
    %c0_i32_0 = arith.constant 0 : i32
    %c0_i32_1 = arith.constant 0 : i32
    return %c0_i32, %c0_i32_0 : i32, i32
  }
  func.func @transform_5(%arg0: i32, %arg1: i32) -> (i32, i32) {
    %c0_i32 = arith.constant 0 : i32
    %c0_i32_0 = arith.constant 0 : i32
    %c0_i32_1 = arith.constant 0 : i32
    return %c0_i32, %c0_i32_0 : i32, i32
  }
  func.func @transform_6(%arg0: i32, %arg1: i32) -> (i32, i32) {
    %c0_i32 = arith.constant 0 : i32
    %c0_i32_0 = arith.constant 0 : i32
    %c0_i32_1 = arith.constant 0 : i32
    return %c0_i32, %c0_i32_0 : i32, i32
  }
  func.func @transform_7(%arg0: i32, %arg1: i32) -> (i32, i32) {
    %c0_i32 = arith.constant 0 : i32
    %c0_i32_0 = arith.constant 0 : i32
    %c0_i32_1 = arith.constant 0 : i32
    return %c0_i32, %c0_i32_0 : i32, i32
  }
  func.func @transform_8(%arg0: i32, %arg1: i32) -> (i32, i32) {
    %c0_i32 = arith.constant 0 : i32
    %c0_i32_0 = arith.constant 0 : i32
    %c0_i32_1 = arith.constant 0 : i32
    return %c0_i32, %c0_i32_0 : i32, i32
  }
  func.func @transform_9(%arg0: i32, %arg1: i32) -> (i32, i32, i32, i32) {
    %c0_i32 = arith.constant 0 : i32
    %c0_i32_0 = arith.constant 0 : i32
    %c0_i32_1 = arith.constant 0 : i32
    return %arg0, %arg1, %c0_i32, %c0_i32_0 : i32, i32, i32, i32
  }
}

</mosaic_0001>

<llo_original>
// kernel: tpu_custom_call.1
$region0: #{tpu_custom_call.1}
  #allocation0 [shape = 'u32[]', space=smem, size = 0x4, offset = 0x4, fixed_abs, tag = 'smem constant byte address 0x4 - core index']
  #allocation1 [shape = 'u32[72,128]{1,0:T(1,128)}', space=vmem, size = 0x9000, scoped, tag = 'internal scratch']
  #allocation2 [shape = 'bf16[10,33,128]{2,1,0:T(8,128)(2,1)}', space=vmem, size = 0x19000, scoped, tag = 'scratch operand']
  %s0 = inlined_call_operand.hbm [shape: f32[2,16,16,128], index: 0, kind: input, shape index: {}]
  %s1 = inlined_call_operand.hbm [shape: f32[2,16,16,128], index: 1, kind: input, shape index: {}]
  %s2 = inlined_call_operand.hbm [shape: f32[2,16,16,128], index: 2, kind: input, shape index: {}]
  %s3 = inlined_call_operand.hbm [shape: bf16[128,128], index: 3, kind: input, shape index: {}]
  %s4 = inlined_call_operand.vmem [shape: f32[1,128], index: 4, kind: input, shape index: {}]
  %s5 = inlined_call_operand.hbm [shape: bf16[1152,128], index: 5, kind: input, shape index: {}]
  %s6 = inlined_call_operand.vmem [shape: f32[1,128], index: 6, kind: input, shape index: {}]
  %s7 = inlined_call_operand.hbm [shape: bf16[128,128], index: 7, kind: input, shape index: {}]
  %s8 = inlined_call_operand.vmem [shape: f32[1,128], index: 8, kind: input, shape index: {}]
  %s9 = inlined_call_operand.hbm [shape: f32[2,16,16,128], index: 9, kind: output, shape index: {}]
  %s10 = sld [smem:[#allocation0]]
  $region101: #{tpu_custom_call.1} parent=0
    _
  %s12 = ssub.s32 1, %s10
  %s13 = scalar_select 0, %s12, %s10
  $region1: #{tpu_custom_call.1} parent=0
    #allocation3 [shape = 'u8[131072]{0}', space=vmem, size = 0x20000, scoped, tag = 'input window, operand 0']
    #allocation4 [shape = 's32[2]{0}', space=sflag, size = 0x8, scoped, tag = 'scoped memory for tpu_custom_call.1']
    #allocation5 [shape = 's32[2]{0}', space=sflag, size = 0x8, scoped, tag = 'scoped memory for tpu_custom_call.1']
    #allocation6 [shape = 'u8[16384]{0}', space=vmem, size = 0x4000, scoped, tag = 'input window, operand 1']
    #allocation7 [shape = 's32[2]{0}', space=sflag, size = 0x8, scoped, tag = 'scoped memory for tpu_custom_call.1']
    #allocation8 [shape = 'u8[16384]{0}', space=vmem, size = 0x4000, scoped, tag = 'input window, operand 2']
    #allocation9 [shape = 'u8[32768]{0}', space=vmem, size = 0x8000, scoped, tag = 'input window, operand 3, single buffered']
    #allocation10 [shape = 's32[1]{0}', space=sflag, size = 0x4, scoped, tag = 'scoped memory for tpu_custom_call.1']
    #allocation11 [shape = 'u8[294912]{0}', space=vmem, size = 0x48000, scoped, tag = 'input window, operand 5, single buffered']
    #allocation12 [shape = 'u8[32768]{0}', space=vmem, size = 0x8000, scoped, tag = 'input window, operand 7, single buffered']
    #allocation13 [shape = 's32[1]{0}', space=sflag, size = 0x4, scoped, tag = 'scoped memory for tpu_custom_call.1']
    #allocation14 [shape = 'u8[131072]{0}', space=vmem, size = 0x20000, scoped, tag = 'output window, operand 0']
    %14 = vsyncpa [#allocation4], 0
    %s15 = scalar_lea.sflag [#allocation4], 1
    %16 = vsyncpa %s15, 0
    %17 = vsyncpa [#allocation7], 0
    %s18 = scalar_lea.sflag [#allocation7], 1
    %19 = vsyncpa %s18, 0
    %20 = vsyncpa [#allocation10], 0
    %21 = vsyncpa [#allocation13], 0
    %22 = vsyncpa [#allocation5], 0
    %s23 = scalar_lea.sflag [#allocation5], 1
    %24 = vsyncpa %s23, 0
    loop: start=0, step=1, limit=6
    $region2: #{tpu_custom_call.1} parent=1 // loop_pre_header
      _
    $region3: #{tpu_custom_call.1} parent=1 // loop_header
      %s26 = sphi 0, %s30
      %p27 = scmp.ge.s32.totalorder %s26, 6
      %s33 = sphi 0, %s45
      %s34 = sphi 0, %s41
      %s35 = sphi 0, %s33
      %s36 = sphi 0, %s34
      %s37 = sphi 0, %s35
      %s38 = sphi 0, %s36
      %s50 = sphi 0, %s52
      %s53 = sphi 0, %s50
      %s54 = sphi 0, %s53
      %s70 = sphi 0, %s54
      %s86 = sphi 0, %s88
      %s89 = sphi 0, %s86
      %s90 = sphi 0, %s89
      %s106 = sphi 0, %s90
      %s122 = sphi 0, %s124
      %s125 = sphi 0, %s122
      %s126 = sphi 0, %s125
      %s142 = sphi 0, %s126
      %s146 = sphi 0, %s146
      %s148 = sphi 0, %s146
      %s149 = sphi 0, %s148
      %s163 = sphi 0, %s149
      %s167 = sphi 0, %s167
      %s169 = sphi 0, %s167
      %s170 = sphi 0, %s169
      %s184 = sphi 0, %s170
      %s188 = sphi 0, %s188
      %s190 = sphi 0, %s188
      %s191 = sphi 0, %s190
      %s205 = sphi 0, %s191
      %s209 = sphi 0, %s209
      %s211 = sphi 0, %s209
      %s212 = sphi 0, %s211
      %s226 = sphi 0, %s212
      %s230 = sphi 0, %s230
      %s232 = sphi 0, %s230
      %s233 = sphi 0, %s232
      %s247 = sphi 0, %s233
      %s251 = sphi 0, %s251
      %s253 = sphi 0, %s251
      %s254 = sphi 0, %s253
      %s268 = sphi 0, %s254
      %s276 = sphi 0, %s278
      %s279 = sphi 0, %s276
      %s280 = sphi 0, %s279
      %s296 = sphi 0, %s280
    $region4: #{tpu_custom_call.1} parent=1 // loop_header_branch
      %29 = sbr.rel (%p27) target = $region8
    $region5: #{tpu_custom_call.1} parent=1 // loop_body
      %s31 = ssub.s32 %s26, 1
      %s32 = ssub.s32 %s26, 2
      %s39 = sadd.s32 1, %s34
      %p40 = scmp.ge.s32.totalorder %s39, 2
      %s41 = scalar_select %p40, 0, %s39
      %s42 = sadd.s32 1, %s33
      %s43 = scalar_select %p40, %s42, %s33
      %p44 = scmp.ge.s32.totalorder %s43, 2
      %s45 = scalar_select %p44, 0, %s43
      %s46 = ssub.s32 %s33, %s45
      %s47 = ssub.s32 %s34, %s41
      %s48 = sor.u32 %s46, %s47
      %p49 = scmp.eq.s32.totalorder %s48, 0
      %s51 = sadd.s32 %s50, 1
      %s52 = scalar_select %p49, %s50, %s51
      %p55 = pneg %p49
      %p56 = scmp.eq.s32.totalorder %s26, 3
      %p57 = por %p55, %p56
      %p58 = scmp.ne.s32.totalorder %s50, %s53
      %p59 = scmp.eq.s32.totalorder %s26, 0
      %p60 = por %p58, %p59
      %p61 = scmp.ne.s32.totalorder %s50, %s53
      %p62 = scmp.eq.s32.totalorder %s31, 3
      %p63 = por %p61, %p62
      %p64 = scmp.ne.s32.totalorder %s53, %s54
      %p65 = scmp.eq.s32.totalorder %s31, 0
      %p66 = por %p64, %p65
      %p67 = scmp.ne.s32.totalorder %s53, %s54
      %p68 = scmp.eq.s32.totalorder %s32, 3
      %p69 = por %p67, %p68
      %p71 = scmp.ne.s32.totalorder %s54, %s70
      %p72 = scmp.eq.s32.totalorder %s32, 0
      %p73 = por %p71, %p72
      %s74 = smul.u32 %s34, 8
      %s75 = ssub.s32 %s74, 1
      %p76 = scmp.gt.s32.totalorder %s75, 0
      %s77 = scalar_select %p76, %s75, 0
      %s78 = smul.u32 %s41, 8
      %s79 = ssub.s32 %s78, 1
      %p80 = scmp.gt.s32.totalorder %s79, 0
      %s81 = scalar_select %p80, %s79, 0
      %s82 = ssub.s32 %s33, %s45
      %s83 = ssub.s32 %s77, %s81
      %s84 = sor.u32 %s82, %s83
      %p85 = scmp.eq.s32.totalorder %s84, 0
      %s87 = sadd.s32 %s86, 1
      %s88 = scalar_select %p85, %s86, %s87
      %p91 = pneg %p85
      %p92 = scmp.eq.s32.totalorder %s26, 3
      %p93 = por %p91, %p92
      %p94 = scmp.ne.s32.totalorder %s86, %s89
      %p95 = scmp.eq.s32.totalorder %s26, 0
      %p96 = por %p94, %p95
      %p97 = scmp.ne.s32.totalorder %s86, %s89
      %p98 = scmp.eq.s32.totalorder %s31, 3
      %p99 = por %p97, %p98
      %p100 = scmp.ne.s32.totalorder %s89, %s90
      %p101 = scmp.eq.s32.totalorder %s31, 0
      %p102 = por %p100, %p101
      %p103 = scmp.ne.s32.totalorder %s89, %s90
      %p104 = scmp.eq.s32.totalorder %s32, 3
      %p105 = por %p103, %p104
      %p107 = scmp.ne.s32.totalorder %s90, %s106
      %p108 = scmp.eq.s32.totalorder %s32, 0
      %p109 = por %p107, %p108
      %s110 = sadd.s32 %s34, 1
      %s111 = smul.u32 %s110, 8
      %p112 = scmp.lt.s32.totalorder %s111, 15
      %s113 = scalar_select %p112, %s111, 15
      %s114 = sadd.s32 %s41, 1
      %s115 = smul.u32 %s114, 8
      %p116 = scmp.lt.s32.totalorder %s115, 15
      %s117 = scalar_select %p116, %s115, 15
      %s118 = ssub.s32 %s33, %s45
      %s119 = ssub.s32 %s113, %s117
      %s120 = sor.u32 %s118, %s119
      %p121 = scmp.eq.s32.totalorder %s120, 0
      %s123 = sadd.s32 %s122, 1
      %s124 = scalar_select %p121, %s122, %s123
      %p127 = pneg %p121
      %p128 = scmp.eq.s32.totalorder %s26, 3
      %p129 = por %p127, %p128
      %p130 = scmp.ne.s32.totalorder %s122, %s125
      %p131 = scmp.eq.s32.totalorder %s26, 0
      %p132 = por %p130, %p131
      %p133 = scmp.ne.s32.totalorder %s122, %s125
      %p134 = scmp.eq.s32.totalorder %s31, 3
      %p135 = por %p133, %p134
      %p136 = scmp.ne.s32.totalorder %s125, %s126
      %p137 = scmp.eq.s32.totalorder %s31, 0
      %p138 = por %p136, %p137
      %p139 = scmp.ne.s32.totalorder %s125, %s126
      %p140 = scmp.eq.s32.totalorder %s32, 3
      %p141 = por %p139, %p140
      %p143 = scmp.ne.s32.totalorder %s126, %s142
      %p144 = scmp.eq.s32.totalorder %s32, 0
      %p145 = por %p143, %p144
      %s147 = sadd.s32 %s146, 1
      %p150 = scmp.eq.s32.totalorder %s26, 3
      %p151 = scmp.ne.s32.totalorder %s146, %s148
      %p152 = scmp.eq.s32.totalorder %s26, 0
      %p153 = por %p151, %p152
      %p154 = scmp.ne.s32.totalorder %s146, %s148
      %p155 = scmp.eq.s32.totalorder %s31, 3
      %p156 = por %p154, %p155
      %p157 = scmp.ne.s32.totalorder %s148, %s149
      %p158 = scmp.eq.s32.totalorder %s31, 0
      %p159 = por %p157, %p158
      %p160 = scmp.ne.s32.totalorder %s148, %s149
      %p161 = scmp.eq.s32.totalorder %s32, 3
      %p162 = por %p160, %p161
      %p164 = scmp.ne.s32.totalorder %s149, %s163
      %p165 = scmp.eq.s32.totalorder %s32, 0
      %p166 = por %p164, %p165
      %s168 = sadd.s32 %s167, 1
      %p171 = scmp.eq.s32.totalorder %s26, 3
      %p172 = scmp.ne.s32.totalorder %s167, %s169
      %p173 = scmp.eq.s32.totalorder %s26, 0
      %p174 = por %p172, %p173
      %p175 = scmp.ne.s32.totalorder %s167, %s169
      %p176 = scmp.eq.s32.totalorder %s31, 3
      %p177 = por %p175, %p176
      %p178 = scmp.ne.s32.totalorder %s169, %s170
      %p179 = scmp.eq.s32.totalorder %s31, 0
      %p180 = por %p178, %p179
      %p181 = scmp.ne.s32.totalorder %s169, %s170
      %p182 = scmp.eq.s32.totalorder %s32, 3
      %p183 = por %p181, %p182
      %p185 = scmp.ne.s32.totalorder %s170, %s184
      %p186 = scmp.eq.s32.totalorder %s32, 0
      %p187 = por %p185, %p186
      %s189 = sadd.s32 %s188, 1
      %p192 = scmp.eq.s32.totalorder %s26, 3
      %p193 = scmp.ne.s32.totalorder %s188, %s190
      %p194 = scmp.eq.s32.totalorder %s26, 0
      %p195 = por %p193, %p194
      %p196 = scmp.ne.s32.totalorder %s188, %s190
      %p197 = scmp.eq.s32.totalorder %s31, 3
      %p198 = por %p196, %p197
      %p199 = scmp.ne.s32.totalorder %s190, %s191
      %p200 = scmp.eq.s32.totalorder %s31, 0
      %p201 = por %p199, %p200
      %p202 = scmp.ne.s32.totalorder %s190, %s191
      %p203 = scmp.eq.s32.totalorder %s32, 3
      %p204 = por %p202, %p203
      %p206 = scmp.ne.s32.totalorder %s191, %s205
      %p207 = scmp.eq.s32.totalorder %s32, 0
      %p208 = por %p206, %p207
      %s210 = sadd.s32 %s209, 1
      %p213 = scmp.eq.s32.totalorder %s26, 3
      %p214 = scmp.ne.s32.totalorder %s209, %s211
      %p215 = scmp.eq.s32.totalorder %s26, 0
      %p216 = por %p214, %p215
      %p217 = scmp.ne.s32.totalorder %s209, %s211
      %p218 = scmp.eq.s32.totalorder %s31, 3
      %p219 = por %p217, %p218
      %p220 = scmp.ne.s32.totalorder %s211, %s212
      %p221 = scmp.eq.s32.totalorder %s31, 0
      %p222 = por %p220, %p221
      %p223 = scmp.ne.s32.totalorder %s211, %s212
      %p224 = scmp.eq.s32.totalorder %s32, 3
      %p225 = por %p223, %p224
      %p227 = scmp.ne.s32.totalorder %s212, %s226
      %p228 = scmp.eq.s32.totalorder %s32, 0
      %p229 = por %p227, %p228
      %s231 = sadd.s32 %s230, 1
      %p234 = scmp.eq.s32.totalorder %s26, 3
      %p235 = scmp.ne.s32.totalorder %s230, %s232
      %p236 = scmp.eq.s32.totalorder %s26, 0
      %p237 = por %p235, %p236
      %p238 = scmp.ne.s32.totalorder %s230, %s232
      %p239 = scmp.eq.s32.totalorder %s31, 3
      %p240 = por %p238, %p239
      %p241 = scmp.ne.s32.totalorder %s232, %s233
      %p242 = scmp.eq.s32.totalorder %s31, 0
      %p243 = por %p241, %p242
      %p244 = scmp.ne.s32.totalorder %s232, %s233
      %p245 = scmp.eq.s32.totalorder %s32, 3
      %p246 = por %p244, %p245
      %p248 = scmp.ne.s32.totalorder %s233, %s247
      %p249 = scmp.eq.s32.totalorder %s32, 0
      %p250 = por %p248, %p249
      %s252 = sadd.s32 %s251, 1
      %p255 = scmp.eq.s32.totalorder %s26, 3
      %p256 = scmp.ne.s32.totalorder %s251, %s253
      %p257 = scmp.eq.s32.totalorder %s26, 0
      %p258 = por %p256, %p257
      %p259 = scmp.ne.s32.totalorder %s251, %s253
      %p260 = scmp.eq.s32.totalorder %s31, 3
      %p261 = por %p259, %p260
      %p262 = scmp.ne.s32.totalorder %s253, %s254
      %p263 = scmp.eq.s32.totalorder %s31, 0
      %p264 = por %p262, %p263
      %p265 = scmp.ne.s32.totalorder %s253, %s254
      %p266 = scmp.eq.s32.totalorder %s32, 3
      %p267 = por %p265, %p266
      %p269 = scmp.ne.s32.totalorder %s254, %s268
      %p270 = scmp.eq.s32.totalorder %s32, 0
      %p271 = por %p269, %p270
      %s272 = ssub.s32 %s33, %s45
      %s273 = ssub.s32 %s34, %s41
      %s274 = sor.u32 %s272, %s273
      %p275 = scmp.eq.s32.totalorder %s274, 0
      %s277 = sadd.s32 %s276, 1
      %s278 = scalar_select %p275, %s276, %s277
      %p281 = pneg %p275
      %p282 = scmp.eq.s32.totalorder %s26, 3
      %p283 = por %p281, %p282
      %p284 = scmp.ne.s32.totalorder %s276, %s279
      %p285 = scmp.eq.s32.totalorder %s26, 0
      %p286 = por %p284, %p285
      %p287 = scmp.ne.s32.totalorder %s276, %s279
      %p288 = scmp.eq.s32.totalorder %s31, 3
      %p289 = por %p287, %p288
      %p290 = scmp.ne.s32.totalorder %s279, %s280
      %p291 = scmp.eq.s32.totalorder %s31, 0
      %p292 = por %p290, %p291
      %p293 = scmp.ne.s32.totalorder %s279, %s280
      %p294 = scmp.eq.s32.totalorder %s32, 3
      %p295 = por %p293, %p294
      %p297 = scmp.ne.s32.totalorder %s280, %s296
      %p298 = scmp.eq.s32.totalorder %s32, 0
      %p299 = por %p297, %p298
      %p300 = scmp.le.s32.totalorder 1, %s26
      %p301 = scmp.lt.s32.totalorder %s26, 5
      %p302 = pnand %p300, %p301
      %p303 = pneg %p302
      // Predicated region
      $region9: #{tpu_custom_call.1} parent=5 // pred_check
        _
      $region10: #{tpu_custom_call.1} parent=5 // pred_check_branch
        %305 = sbr.rel (%p302) target = $region12
      $region11: #{tpu_custom_call.1} parent=5 // pred_region
        %s306 = ssub.s32 %s26, 1
        // Predicated region
        $region13: #{tpu_custom_call.1} parent=11 // pred_check
          %p307 = pneg %p159
        $region14: #{tpu_custom_call.1} parent=11 // pred_check_branch
          %309 = sbr.rel (%p307) target = $region16
        $region15: #{tpu_custom_call.1} parent=11 // pred_region
          %311 = vsyncadd [#allocation10], 0
          %s312 = sshll.u32 %s3, 4
          %s313 = int_to_ptr.hbm [resolvable:$true] %s312
          %s314 = sshll.u32 [#allocation9], 4
          %s315 = int_to_ptr.vmem [resolvable:$true] %s314
          %320 = dma.hbm_to_vmem [thread:$0]  %s313, 1024, %s315, [#allocation10], 64, 64, 4
        $region16: #{tpu_custom_call.1} parent=11 // pred_fallthru
          _
        // Predicated region
        $region17: #{tpu_custom_call.1} parent=11 // pred_check
          %p321 = pneg %p180
        $region18: #{tpu_custom_call.1} parent=11 // pred_check_branch
          %323 = sbr.rel (%p321) target = $region20
        $region19: #{tpu_custom_call.1} parent=11 // pred_region
          _
        $region20: #{tpu_custom_call.1} parent=11 // pred_fallthru
          _
        // Predicated region
        $region21: #{tpu_custom_call.1} parent=11 // pred_check
          %p324 = pneg %p201
        $region22: #{tpu_custom_call.1} parent=11 // pred_check_branch
          %326 = sbr.rel (%p324) target = $region24
        $region23: #{tpu_custom_call.1} parent=11 // pred_region
          %328 = vsyncadd [#allocation10], 0
          %s329 = sshll.u32 %s5, 4
          %s330 = int_to_ptr.hbm [resolvable:$true] %s329
          %s331 = sshll.u32 [#allocation11], 4
          %s332 = int_to_ptr.vmem [resolvable:$true] %s331
          %337 = dma.hbm_to_vmem [thread:$0]  %s330, 9216, %s332, [#allocation10], 64, 64, 4
        $region24: #{tpu_custom_call.1} parent=11 // pred_fallthru
          _
        // Predicated region
        $region25: #{tpu_custom_call.1} parent=11 // pred_check
          %p338 = pneg %p222
        $region26: #{tpu_custom_call.1} parent=11 // pred_check_branch
          %340 = sbr.rel (%p338) target = $region28
        $region27: #{tpu_custom_call.1} parent=11 // pred_region
          _
        $region28: #{tpu_custom_call.1} parent=11 // pred_fallthru
          _
        // Predicated region
        $region29: #{tpu_custom_call.1} parent=11 // pred_check
          %p341 = pneg %p243
        $region30: #{tpu_custom_call.1} parent=11 // pred_check_branch
          %343 = sbr.rel (%p341) target = $region32
        $region31: #{tpu_custom_call.1} parent=11 // pred_region
          %345 = vsyncadd [#allocation13], 0
          %s346 = sshll.u32 %s7, 4
          %s347 = int_to_ptr.hbm [resolvable:$true] %s346
          %s348 = sshll.u32 [#allocation12], 4
          %s349 = int_to_ptr.vmem [resolvable:$true] %s348
          %354 = dma.hbm_to_vmem [thread:$0]  %s347, 1024, %s349, [#allocation13], 64, 64, 4
        $region32: #{tpu_custom_call.1} parent=11 // pred_fallthru
          _
        // Predicated region
        $region33: #{tpu_custom_call.1} parent=11 // pred_check
          %p355 = pneg %p264
        $region34: #{tpu_custom_call.1} parent=11 // pred_check_branch
          %357 = sbr.rel (%p355) target = $region36
        $region35: #{tpu_custom_call.1} parent=11 // pred_region
          _
        $region36: #{tpu_custom_call.1} parent=11 // pred_fallthru
          _
      $region12: #{tpu_custom_call.1} parent=5 // pred_fallthru
        _
      %p358 = scmp.lt.s32.totalorder %s26, 4
      // Predicated region
      $region37: #{tpu_custom_call.1} parent=5 // pred_check
        %p359 = pneg %p358
      $region38: #{tpu_custom_call.1} parent=5 // pred_check_branch
        %361 = sbr.rel (%p359) target = $region40
      $region39: #{tpu_custom_call.1} parent=5 // pred_region
        // Predicated region
        $region41: #{tpu_custom_call.1} parent=39 // pred_check
          %p362 = pneg %p60
        $region42: #{tpu_custom_call.1} parent=39 // pred_check_branch
          %364 = sbr.rel (%p362) target = $region44
        $region43: #{tpu_custom_call.1} parent=39 // pred_region
          %s365 = sand.u32 %s50, 1
          %s366 = scalar_lea.sflag [#allocation4], %s365
          %s367 = sand.u32 %s50, 1
          %s368 = smul.addr %s367, 128
          %s369 = scalar_lea.vmem [#allocation3], %s368
          %s370 = smul.u32 8, %s34
          %372 = vsyncadd %s366, 0
          %s373 = smul.addr %s370, 2
          %s374 = smul.addr %s33, 32
          %s375 = sadd.s32 %s373, %s374
          %s376 = smul.addr %s375, 8
          %s377 = scalar_lea.hbm %s0, %s376
          %s378 = sshll.u32 %s377, 4
          %s379 = int_to_ptr.hbm [resolvable:$true] %s378
          %s380 = sshll.u32 %s369, 4
          %s381 = int_to_ptr.vmem [resolvable:$true] %s380
          %386 = dma.hbm_to_vmem [thread:$0]  %s379, 2048, %s381, %s366, 128, 128, 8
        $region44: #{tpu_custom_call.1} parent=39 // pred_fallthru
          _
        // Predicated region
        $region45: #{tpu_custom_call.1} parent=39 // pred_check
          %p387 = pneg %p96
        $region46: #{tpu_custom_call.1} parent=39 // pred_check_branch
          %389 = sbr.rel (%p387) target = $region48
        $region47: #{tpu_custom_call.1} parent=39 // pred_region
          %s390 = sand.u32 %s26, 1
          %s391 = scalar_lea.sflag [#allocation7], %s390
          %s392 = sand.u32 %s86, 1
          %s393 = smul.addr %s392, 16
          %s394 = scalar_lea.vmem [#allocation6], %s393
          %s395 = smul.u32 %s34, 8
          %s396 = ssub.s32 %s395, 1
          %p397 = scmp.gt.s32.totalorder %s396, 0
          %s398 = scalar_select %p397, %s396, 0
          %400 = vsyncadd %s391, 0
          %s401 = smul.addr %s398, 2
          %s402 = smul.addr %s33, 32
          %s403 = sadd.s32 %s401, %s402
          %s404 = smul.addr %s403, 8
          %s405 = scalar_lea.hbm %s1, %s404
          %s406 = sshll.u32 %s405, 4
          %s407 = int_to_ptr.hbm [resolvable:$true] %s406
          %s408 = sshll.u32 %s394, 4
          %s409 = int_to_ptr.vmem [resolvable:$true] %s408
          %414 = dma.hbm_to_vmem [thread:$0]  %s407, 256, %s409, %s391, 128, 128, 8
        $region48: #{tpu_custom_call.1} parent=39 // pred_fallthru
          _
        // Predicated region
        $region49: #{tpu_custom_call.1} parent=39 // pred_check
          %p415 = pneg %p132
        $region50: #{tpu_custom_call.1} parent=39 // pred_check_branch
          %417 = sbr.rel (%p415) target = $region52
        $region51: #{tpu_custom_call.1} parent=39 // pred_region
          %s418 = sand.u32 %s26, 1
          %s419 = scalar_lea.sflag [#allocation7], %s418
          %s420 = sand.u32 %s122, 1
          %s421 = smul.addr %s420, 16
          %s422 = scalar_lea.vmem [#allocation8], %s421
          %s423 = sadd.s32 %s34, 1
          %s424 = smul.u32 %s423, 8
          %p425 = scmp.lt.s32.totalorder %s424, 15
          %s426 = scalar_select %p425, %s424, 15
          %428 = vsyncadd %s419, 0
          %s429 = smul.addr %s426, 2
          %s430 = smul.addr %s33, 32
          %s431 = sadd.s32 %s429, %s430
          %s432 = smul.addr %s431, 8
          %s433 = scalar_lea.hbm %s2, %s432
          %s434 = sshll.u32 %s433, 4
          %s435 = int_to_ptr.hbm [resolvable:$true] %s434
          %s436 = sshll.u32 %s422, 4
          %s437 = int_to_ptr.vmem [resolvable:$true] %s436
          %442 = dma.hbm_to_vmem [thread:$0]  %s435, 256, %s437, %s419, 128, 128, 8
        $region52: #{tpu_custom_call.1} parent=39 // pred_fallthru
          _
      $region40: #{tpu_custom_call.1} parent=5 // pred_fallthru
        _
      %p443 = scmp.le.s32.totalorder 1, %s26
      %p444 = scmp.lt.s32.totalorder %s26, 5
      %p445 = pnand %p443, %p444
      %p446 = pneg %p445
      // Predicated region
      $region53: #{tpu_custom_call.1} parent=5 // pred_check
        _
      $region54: #{tpu_custom_call.1} parent=5 // pred_check_branch
        %448 = sbr.rel (%p445) target = $region56
      $region55: #{tpu_custom_call.1} parent=5 // pred_region
        %s449 = ssub.s32 %s26, 1
        %s450 = sand.u32 %s53, 1
        %s451 = scalar_lea.sflag [#allocation4], %s450
        %s452 = sand.u32 %s53, 1
        %s453 = smul.addr %s452, 128
        %s454 = scalar_lea.vmem [#allocation3], %s453
        // Predicated region
        $region57: #{tpu_custom_call.1} parent=55 // pred_check
          %p455 = pneg %p66
        $region58: #{tpu_custom_call.1} parent=55 // pred_check_branch
          %457 = sbr.rel (%p455) target = $region60
        $region59: #{tpu_custom_call.1} parent=55 // pred_region
          %459 = dma.done %s451, 2048
        $region60: #{tpu_custom_call.1} parent=55 // pred_fallthru
          _
        %s460 = sand.u32 %s31, 1
        %s461 = scalar_lea.sflag [#allocation7], %s460
        %s462 = sand.u32 %s89, 1
        %s463 = smul.addr %s462, 16
        %s464 = scalar_lea.vmem [#allocation6], %s463
        // Predicated region
        $region61: #{tpu_custom_call.1} parent=55 // pred_check
          %p465 = pneg %p102
        $region62: #{tpu_custom_call.1} parent=55 // pred_check_branch
          %467 = sbr.rel (%p465) target = $region64
        $region63: #{tpu_custom_call.1} parent=55 // pred_region
          %469 = dma.done %s461, 256
        $region64: #{tpu_custom_call.1} parent=55 // pred_fallthru
          _
        %s470 = sand.u32 %s31, 1
        %s471 = scalar_lea.sflag [#allocation7], %s470
        %s472 = sand.u32 %s125, 1
        %s473 = smul.addr %s472, 16
        %s474 = scalar_lea.vmem [#allocation8], %s473
        // Predicated region
        $region65: #{tpu_custom_call.1} parent=55 // pred_check
          %p475 = pneg %p138
        $region66: #{tpu_custom_call.1} parent=55 // pred_check_branch
          %477 = sbr.rel (%p475) target = $region68
        $region67: #{tpu_custom_call.1} parent=55 // pred_region
          %479 = dma.done %s471, 256
        $region68: #{tpu_custom_call.1} parent=55 // pred_fallthru
          _
        // Predicated region
        $region69: #{tpu_custom_call.1} parent=55 // pred_check
          %p480 = pneg %p159
        $region70: #{tpu_custom_call.1} parent=55 // pred_check_branch
          %482 = sbr.rel (%p480) target = $region72
        $region71: #{tpu_custom_call.1} parent=55 // pred_region
          %484 = dma.done [#allocation10], 1024
        $region72: #{tpu_custom_call.1} parent=55 // pred_fallthru
          _
        // Predicated region
        $region73: #{tpu_custom_call.1} parent=55 // pred_check
          %p485 = pneg %p201
        $region74: #{tpu_custom_call.1} parent=55 // pred_check_branch
          %487 = sbr.rel (%p485) target = $region76
        $region75: #{tpu_custom_call.1} parent=55 // pred_region
          %489 = dma.done [#allocation10], 9216
        $region76: #{tpu_custom_call.1} parent=55 // pred_fallthru
          _
        // Predicated region
        $region77: #{tpu_custom_call.1} parent=55 // pred_check
          %p490 = pneg %p243
        $region78: #{tpu_custom_call.1} parent=55 // pred_check_branch
          %492 = sbr.rel (%p490) target = $region80
        $region79: #{tpu_custom_call.1} parent=55 // pred_region
          %494 = dma.done [#allocation13], 1024
        $region80: #{tpu_custom_call.1} parent=55 // pred_fallthru
          _
        %s495 = sand.u32 %s53, 1
        %s496 = scalar_lea.sflag [#allocation4], %s495
        %s497 = sand.u32 %s53, 1
        %s498 = smul.addr %s497, 128
        %s499 = scalar_lea.vmem [#allocation3], %s498
        %p500 = pneg %p66
        %p501 = pneg %p63
        %s502 = sand.u32 %s31, 1
        %s503 = scalar_lea.sflag [#allocation7], %s502
        %s504 = sand.u32 %s89, 1
        %s505 = smul.addr %s504, 16
        %s506 = scalar_lea.vmem [#allocation6], %s505
        %p507 = pneg %p102
        %p508 = pneg %p99
        %s509 = sand.u32 %s31, 1
        %s510 = scalar_lea.sflag [#allocation7], %s509
        %s511 = sand.u32 %s125, 1
        %s512 = smul.addr %s511, 16
        %s513 = scalar_lea.vmem [#allocation8], %s512
        %p514 = pneg %p138
        %p515 = pneg %p135
        %p516 = pneg %p159
        %p517 = pneg %p156
        %p518 = pneg %p180
        %p519 = pneg %p177
        %p520 = pneg %p201
        %p521 = pneg %p198
        %p522 = pneg %p222
        %p523 = pneg %p219
        %p524 = pneg %p243
        %p525 = pneg %p240
        %p526 = pneg %p264
        %p527 = pneg %p261
        %p528 = pneg %p292
        %p529 = pneg %p289
        %s530 = sand.u32 %s279, 1
        %s531 = scalar_lea.sflag [#allocation5], %s530
        %s532 = sand.u32 %s279, 1
        %s533 = smul.addr %s532, 128
        %s534 = scalar_lea.vmem [#allocation14], %s533
        %s535 = smul.u32 8, %s36
        %s536 = smul.u32 %s36, 8
        %s537 = ssub.s32 %s536, 1
        %p538 = scmp.gt.s32.totalorder %s537, 0
        %s539 = scalar_select %p538, %s537, 0
        %s540 = sadd.s32 %s36, 1
        %s541 = smul.u32 %s540, 8
        %p542 = scmp.lt.s32.totalorder %s541, 15
        %s543 = scalar_select %p542, %s541, 15
        %s544 = smul.u32 8, %s36
        %vm546 = vcmask 1043459
        %vm547 = vsmask.f32 7950
        %vm548 = vmand %vm546, %vm547
        %v549 = vld [vmem:[#allocation2 + $0x4] sm:$0x8]
        %v550 = vsel %vm548, 0, %v549
        %551 = vst [vmem:[#allocation2 + $0x4] sm:$0x8] %v550
        %v552 = vld [vmem:[#allocation2 + $0x18] sm:$0x8]
        %v553 = vsel %vm548, 0, %v552
        %554 = vst [vmem:[#allocation2 + $0x18] sm:$0x8] %v553
        %v555 = vld [vmem:[#allocation2 + $0x2c] sm:$0x8]
        %v556 = vsel %vm548, 0, %v555
        %557 = vst [vmem:[#allocation2 + $0x2c] sm:$0x8] %v556
        %v558 = vld [vmem:[#allocation2 + $0x40] sm:$0x8]
        %v559 = vsel %vm548, 0, %v558
        %560 = vst [vmem:[#allocation2 + $0x40] sm:$0x8] %v559
        %v561 = vld [vmem:[#allocation2 + $0x54] sm:$0x8]
        %v562 = vsel %vm548, 0, %v561
        %563 = vst [vmem:[#allocation2 + $0x54] sm:$0x8] %v562
        %v564 = vld [vmem:[#allocation2 + $0x68] sm:$0x8]
        %v565 = vsel %vm548, 0, %v564
        %566 = vst [vmem:[#allocation2 + $0x68] sm:$0x8] %v565
        %v567 = vld [vmem:[#allocation2 + $0x7c] sm:$0x8]
        %v568 = vsel %vm548, 0, %v567
        %569 = vst [vmem:[#allocation2 + $0x7c] sm:$0x8] %v568
        %v570 = vld [vmem:[#allocation2 + $0x90] sm:$0x8]
        %v571 = vsel %vm548, 0, %v570
        %572 = vst [vmem:[#allocation2 + $0x90] sm:$0x8] %v571
        %v573 = vld [vmem:[#allocation2 + $0xa4] sm:$0x8]
        %v574 = vsel %vm548, 0, %v573
        %575 = vst [vmem:[#allocation2 + $0xa4] sm:$0x8] %v574
        %v576 = vld [vmem:[#allocation2 + $0xb8] sm:$0x8]
        %v577 = vsel %vm548, 0, %v576
        %578 = vst [vmem:[#allocation2 + $0xb8] sm:$0x8] %v577
        %vm579 = vcmask 1040384
        %vm580 = vsmask.f32 256
        %vm581 = vmand %vm579, %vm580
        %v582 = vld [vmem:[#allocation2 + $0x10] sm:$0x1]
        %v583 = vsel %vm581, 0, %v582
        %584 = vst [vmem:[#allocation2 + $0x10] sm:$0x1] %v583
        %v585 = vld [vmem:[#allocation2 + $0x24] sm:$0x1]
        %v586 = vsel %vm581, 0, %v585
        %587 = vst [vmem:[#allocation2 + $0x24] sm:$0x1] %v586
        %v588 = vld [vmem:[#allocation2 + $0x38] sm:$0x1]
        %v589 = vsel %vm581, 0, %v588
        %590 = vst [vmem:[#allocation2 + $0x38] sm:$0x1] %v589
        %v591 = vld [vmem:[#allocation2 + $0x4c] sm:$0x1]
        %v592 = vsel %vm581, 0, %v591
        %593 = vst [vmem:[#allocation2 + $0x4c] sm:$0x1] %v592
        %v594 = vld [vmem:[#allocation2 + $0x60] sm:$0x1]
        %v595 = vsel %vm581, 0, %v594
        %596 = vst [vmem:[#allocation2 + $0x60] sm:$0x1] %v595
        %v597 = vld [vmem:[#allocation2 + $0x74] sm:$0x1]
        %v598 = vsel %vm581, 0, %v597
        %599 = vst [vmem:[#allocation2 + $0x74] sm:$0x1] %v598
        %v600 = vld [vmem:[#allocation2 + $0x88] sm:$0x1]
        %v601 = vsel %vm581, 0, %v600
        %602 = vst [vmem:[#allocation2 + $0x88] sm:$0x1] %v601
        %v603 = vld [vmem:[#allocation2 + $0x9c] sm:$0x1]
        %v604 = vsel %vm581, 0, %v603
        %605 = vst [vmem:[#allocation2 + $0x9c] sm:$0x1] %v604
        %v606 = vld [vmem:[#allocation2 + $0xb0] sm:$0x1]
        %v607 = vsel %vm581, 0, %v606
        %608 = vst [vmem:[#allocation2 + $0xb0] sm:$0x1] %v607
        %v609 = vld [vmem:[#allocation2 + $0xc4] sm:$0x1]
        %v610 = vsel %vm581, 0, %v609
        %611 = vst [vmem:[#allocation2 + $0xc4] sm:$0x1] %v610
        %v612 = vld [vmem:[%s454] sm:$0xff]
        %v613 = vld [vmem:[%s454 + $0x8] sm:$0xff]
        %v614 = vld [vmem:[%s454 + $0x10] sm:$0xff]
        %v615 = vld [vmem:[%s454 + $0x18] sm:$0xff]
        %v616 = vld [vmem:[%s454 + $0x20] sm:$0xff]
        %v617 = vld [vmem:[%s454 + $0x28] sm:$0xff]
        %v618 = vld [vmem:[%s454 + $0x30] sm:$0xff]
        %v619 = vld [vmem:[%s454 + $0x38] sm:$0xff]
        %v620 = vld [vmem:[%s454 + $0x40] sm:$0xff]
        %v621 = vld [vmem:[%s454 + $0x48] sm:$0xff]
        %v622 = vld [vmem:[%s454 + $0x50] sm:$0xff]
        %v623 = vld [vmem:[%s454 + $0x58] sm:$0xff]
        %v624 = vld [vmem:[%s454 + $0x60] sm:$0xff]
        %v625 = vld [vmem:[%s454 + $0x68] sm:$0xff]
        %v626 = vld [vmem:[%s454 + $0x70] sm:$0xff]
        %v627 = vld [vmem:[%s454 + $0x78] sm:$0xff]
        %v628 = vpack.c.bf16 %v612, %v612
        %v629 = vpack.c.bf16 %v613, %v613
        %v630 = vpack.c.bf16 %v614, %v614
        %v631 = vpack.c.bf16 %v615, %v615
        %v632 = vpack.c.bf16 %v616, %v616
        %v633 = vpack.c.bf16 %v617, %v617
        %v634 = vpack.c.bf16 %v618, %v618
        %v635 = vpack.c.bf16 %v619, %v619
        %v636 = vpack.c.bf16 %v620, %v620
        %v637 = vpack.c.bf16 %v621, %v621
        %v638 = vpack.c.bf16 %v622, %v622
        %v639 = vpack.c.bf16 %v623, %v623
        %v640 = vpack.c.bf16 %v624, %v624
        %v641 = vpack.c.bf16 %v625, %v625
        %v642 = vpack.c.bf16 %v626, %v626
        %v643 = vpack.c.bf16 %v627, %v627
        %v644 = vld [vmem:[#allocation9] sm:$0xf]
        %v645 = vld [vmem:[#allocation9 + $0x4] sm:$0xf]
        %v646 = vld [vmem:[#allocation9 + $0x8] sm:$0xf]
        %v647 = vld [vmem:[#allocation9 + $0xc] sm:$0xf]
        %v648 = vld [vmem:[#allocation9 + $0x10] sm:$0xf]
        %v649 = vld [vmem:[#allocation9 + $0x14] sm:$0xf]
        %v650 = vld [vmem:[#allocation9 + $0x18] sm:$0xf]
        %v651 = vld [vmem:[#allocation9 + $0x1c] sm:$0xf]
        %v652 = vld [vmem:[#allocation9 + $0x20] sm:$0xf]
        %v653 = vld [vmem:[#allocation9 + $0x24] sm:$0xf]
        %v654 = vld [vmem:[#allocation9 + $0x28] sm:$0xf]
        %v655 = vld [vmem:[#allocation9 + $0x2c] sm:$0xf]
        %v656 = vld [vmem:[#allocation9 + $0x30] sm:$0xf]
        %v657 = vld [vmem:[#allocation9 + $0x34] sm:$0xf]
        %v658 = vld [vmem:[#allocation9 + $0x38] sm:$0xf]
        %v659 = vld [vmem:[#allocation9 + $0x3c] sm:$0xf]
        %v660 = vld [vmem:[%s4] sm:$0x1]
        %v662 = vperm.slane %v660, 0
        %v680 = vunpack.c.l.b16 %v628
        %v681 = vunpack.c.l.b16 %v629
        %v682 = vunpack.c.l.b16 %v630
        %v683 = vunpack.c.l.b16 %v631
        %v684 = vunpack.c.l.b16 %v632
        %v685 = vunpack.c.l.b16 %v633
        %v686 = vunpack.c.l.b16 %v634
        %v687 = vunpack.c.l.b16 %v635
        %v688 = vunpack.c.l.b16 %v636
        %v689 = vunpack.c.l.b16 %v637
        %v690 = vunpack.c.l.b16 %v638
        %v691 = vunpack.c.l.b16 %v639
        %v692 = vunpack.c.l.b16 %v640
        %v693 = vunpack.c.l.b16 %v641
        %v694 = vunpack.c.l.b16 %v642
        %v695 = vunpack.c.l.b16 %v643
        %v696 = vpack.c.b16 %v681, %v680
        %v697 = vpack.c.b16 %v683, %v682
        %v698 = vpack.c.b16 %v685, %v684
        %v699 = vpack.c.b16 %v687, %v686
        %v700 = vpack.c.b16 %v689, %v688
        %v701 = vpack.c.b16 %v691, %v690
        %v702 = vpack.c.b16 %v693, %v692
        %v703 = vpack.c.b16 %v695, %v694
        %v728 = vunpack.c.l.b16 %v644
        %v729 = vunpack.c.l.b16 %v645
        %v730 = vunpack.c.l.b16 %v646
        %v731 = vunpack.c.l.b16 %v647
        %v732 = vunpack.c.l.b16 %v648
        %v733 = vunpack.c.l.b16 %v649
        %v734 = vunpack.c.l.b16 %v650
        %v735 = vunpack.c.l.b16 %v651
        %v736 = vunpack.c.l.b16 %v652
        %v737 = vunpack.c.l.b16 %v653
        %v738 = vunpack.c.l.b16 %v654
        %v739 = vunpack.c.l.b16 %v655
        %v740 = vunpack.c.l.b16 %v656
        %v741 = vunpack.c.l.b16 %v657
        %v742 = vunpack.c.l.b16 %v658
        %v743 = vunpack.c.l.b16 %v659
        %v744 = vpack.c.b16 %v729, %v728
        %v745 = vpack.c.b16 %v731, %v730
        %v746 = vpack.c.b16 %v733, %v732
        %v747 = vpack.c.b16 %v735, %v734
        %v748 = vpack.c.b16 %v737, %v736
        %v749 = vpack.c.b16 %v739, %v738
        %v750 = vpack.c.b16 %v741, %v740
        %v751 = vpack.c.b16 %v743, %v742
        %760 = vmatpush.bf16.msra.mxu0 %v751
        %761 = vmatpush.bf16.msra.mxu0 %v750
        %762 = vmatpush.bf16.msra.mxu0 %v749
        %763 = vmatpush.bf16.msra.mxu0 %v748
        %764 = vmatpush.bf16.msra.mxu0 %v747
        %765 = vmatpush.bf16.msra.mxu0 %v746
        %766 = vmatpush.bf16.msra.mxu0 %v745
        %767 = vmatpush.bf16.msra.mxu0 %v744
        %768 = vmatmul.bf16.gmra.mxu0 %v696
        %v769 = vpop.f32.mrf.mxu0
        %v770 = vadd.f32 %v662, %v769
        %v771 = vpop.f32.mrf.mxu0
        %v772 = vadd.f32 %v662, %v771
        %773 = vmatmul.bf16.gmra.mxu0 %v697
        %v774 = vpop.f32.mrf.mxu0
        %v775 = vadd.f32 %v662, %v774
        %v776 = vpop.f32.mrf.mxu0
        %v777 = vadd.f32 %v662, %v776
        %778 = vmatmul.bf16.gmra.mxu0 %v698
        %v779 = vpop.f32.mrf.mxu0
        %v780 = vadd.f32 %v662, %v779
        %v781 = vpop.f32.mrf.mxu0
        %v782 = vadd.f32 %v662, %v781
        %783 = vmatmul.bf16.gmra.mxu0 %v699
        %v784 = vpop.f32.mrf.mxu0
        %v785 = vadd.f32 %v662, %v784
        %v786 = vpop.f32.mrf.mxu0
        %v787 = vadd.f32 %v662, %v786
        %788 = vmatmul.bf16.gmra.mxu0 %v700
        %v789 = vpop.f32.mrf.mxu0
        %v790 = vadd.f32 %v662, %v789
        %v791 = vpop.f32.mrf.mxu0
        %v792 = vadd.f32 %v662, %v791
        %793 = vmatmul.bf16.gmra.mxu0 %v701
        %v794 = vpop.f32.mrf.mxu0
        %v795 = vadd.f32 %v662, %v794
        %v796 = vpop.f32.mrf.mxu0
        %v797 = vadd.f32 %v662, %v796
        %798 = vmatmul.bf16.gmra.mxu0 %v702
        %v799 = vpop.f32.mrf.mxu0
        %v800 = vadd.f32 %v662, %v799
        %v801 = vpop.f32.mrf.mxu0
        %v802 = vadd.f32 %v662, %v801
        %803 = vmatmul.bf16.gmra.mxu0 %v703
        %v804 = vpop.f32.mrf.mxu0
        %v805 = vadd.f32 %v662, %v804
        %v806 = vpop.f32.mrf.mxu0
        %v807 = vadd.f32 %v662, %v806
        %808 = vdwg.mxu0
        %v809 = vmax.f32 %v770, 0.0
        %v810 = vmax.f32 %v772, 0.0
        %v811 = vmax.f32 %v775, 0.0
        %v812 = vmax.f32 %v777, 0.0
        %v813 = vmax.f32 %v780, 0.0
        %v814 = vmax.f32 %v782, 0.0
        %v815 = vmax.f32 %v785, 0.0
        %v816 = vmax.f32 %v787, 0.0
        %v817 = vmax.f32 %v790, 0.0
        %v818 = vmax.f32 %v792, 0.0
        %v819 = vmax.f32 %v795, 0.0
        %v820 = vmax.f32 %v797, 0.0
        %v821 = vmax.f32 %v800, 0.0
        %v822 = vmax.f32 %v802, 0.0
        %v823 = vmax.f32 %v805, 0.0
        %v824 = vmax.f32 %v807, 0.0
        %v825 = vpack.c.bf16 %v809, %v809
        %v826 = vpack.c.bf16 %v810, %v810
        %v827 = vpack.c.bf16 %v811, %v811
        %v828 = vpack.c.bf16 %v812, %v812
        %v829 = vpack.c.bf16 %v813, %v813
        %v830 = vpack.c.bf16 %v814, %v814
        %v831 = vpack.c.bf16 %v815, %v815
        %v832 = vpack.c.bf16 %v816, %v816
        %v833 = vpack.c.bf16 %v817, %v817
        %v834 = vpack.c.bf16 %v818, %v818
        %v835 = vpack.c.bf16 %v819, %v819
        %v836 = vpack.c.bf16 %v820, %v820
        %v837 = vpack.c.bf16 %v821, %v821
        %v838 = vpack.c.bf16 %v822, %v822
        %v839 = vpack.c.bf16 %v823, %v823
        %v840 = vpack.c.bf16 %v824, %v824
        %s841 = scalar_lea.vmem [#allocation2], 20
        %842 = vst [vmem:[%s841 + $0x8] sm:$0xf] %v825
        %843 = vst [vmem:[%s841 + $0xc] sm:$0xf] %v826
        %844 = vst [vmem:[%s841 + $0x1c] sm:$0xf] %v827
        %845 = vst [vmem:[%s841 + $0x20] sm:$0xf] %v828
        %846 = vst [vmem:[%s841 + $0x30] sm:$0xf] %v829
        %847 = vst [vmem:[%s841 + $0x34] sm:$0xf] %v830
        %848 = vst [vmem:[%s841 + $0x44] sm:$0xf] %v831
        %849 = vst [vmem:[%s841 + $0x48] sm:$0xf] %v832
        %850 = vst [vmem:[%s841 + $0x58] sm:$0xf] %v833
        %851 = vst [vmem:[%s841 + $0x5c] sm:$0xf] %v834
        %852 = vst [vmem:[%s841 + $0x6c] sm:$0xf] %v835
        %853 = vst [vmem:[%s841 + $0x70] sm:$0xf] %v836
        %854 = vst [vmem:[%s841 + $0x80] sm:$0xf] %v837
        %855 = vst [vmem:[%s841 + $0x84] sm:$0xf] %v838
        %856 = vst [vmem:[%s841 + $0x94] sm:$0xf] %v839
        %857 = vst [vmem:[%s841 + $0x98] sm:$0xf] %v840
        %v858 = vld [vmem:[%s464] sm:$0xff]
        %v859 = vld [vmem:[%s464 + $0x8] sm:$0xff]
        %v860 = vpack.c.bf16 %v858, %v858
        %v861 = vpack.c.bf16 %v859, %v859
        %v862 = vld [vmem:[#allocation9] sm:$0xf]
        %v863 = vld [vmem:[#allocation9 + $0x4] sm:$0xf]
        %v864 = vld [vmem:[#allocation9 + $0x8] sm:$0xf]
        %v865 = vld [vmem:[#allocation9 + $0xc] sm:$0xf]
        %v866 = vld [vmem:[#allocation9 + $0x10] sm:$0xf]
        %v867 = vld [vmem:[#allocation9 + $0x14] sm:$0xf]
        %v868 = vld [vmem:[#allocation9 + $0x18] sm:$0xf]
        %v869 = vld [vmem:[#allocation9 + $0x1c] sm:$0xf]
        %v870 = vld [vmem:[#allocation9 + $0x20] sm:$0xf]
        %v871 = vld [vmem:[#allocation9 + $0x24] sm:$0xf]
        %v872 = vld [vmem:[#allocation9 + $0x28] sm:$0xf]
        %v873 = vld [vmem:[#allocation9 + $0x2c] sm:$0xf]
        %v874 = vld [vmem:[#allocation9 + $0x30] sm:$0xf]
        %v875 = vld [vmem:[#allocation9 + $0x34] sm:$0xf]
        %v876 = vld [vmem:[#allocation9 + $0x38] sm:$0xf]
        %v877 = vld [vmem:[#allocation9 + $0x3c] sm:$0xf]
        %v878 = vld [vmem:[%s4] sm:$0x1]
        %v880 = vperm.slane %v878, 0
        %v884 = vunpack.c.l.b16 %v860
        %v885 = vunpack.c.l.b16 %v861
        %v886 = vpack.c.b16 %v885, %v884
        %v904 = vunpack.c.l.b16 %v862
        %v905 = vunpack.c.l.b16 %v863
        %v906 = vunpack.c.l.b16 %v864
        %v907 = vunpack.c.l.b16 %v865
        %v908 = vunpack.c.l.b16 %v866
        %v909 = vunpack.c.l.b16 %v867
        %v910 = vunpack.c.l.b16 %v868
        %v911 = vunpack.c.l.b16 %v869
        %v912 = vunpack.c.l.b16 %v870
        %v913 = vunpack.c.l.b16 %v871
        %v914 = vunpack.c.l.b16 %v872
        %v915 = vunpack.c.l.b16 %v873
        %v916 = vunpack.c.l.b16 %v874
        %v917 = vunpack.c.l.b16 %v875
        %v918 = vunpack.c.l.b16 %v876
        %v919 = vunpack.c.l.b16 %v877
        %v920 = vpack.c.b16 %v905, %v904
        %v921 = vpack.c.b16 %v907, %v906
        %v922 = vpack.c.b16 %v909, %v908
        %v923 = vpack.c.b16 %v911, %v910
        %v924 = vpack.c.b16 %v913, %v912
        %v925 = vpack.c.b16 %v915, %v914
        %v926 = vpack.c.b16 %v917, %v916
        %v927 = vpack.c.b16 %v919, %v918
        %936 = vmatpush.bf16.msra.mxu0 %v927
        %937 = vmatpush.bf16.msra.mxu0 %v926
        %938 = vmatpush.bf16.msra.mxu0 %v925
        %939 = vmatpush.bf16.msra.mxu0 %v924
        %940 = vmatpush.bf16.msra.mxu0 %v923
        %941 = vmatpush.bf16.msra.mxu0 %v922
        %942 = vmatpush.bf16.msra.mxu0 %v921
        %943 = vmatpush.bf16.msra.mxu0 %v920
        %944 = vmatmul.bf16.gmra.mxu0 %v886
        %v945 = vpop.f32.mrf.mxu0
        %v946 = vadd.f32 %v880, %v945
        %v947 = vpop.f32.mrf.mxu0
        %v948 = vadd.f32 %v880, %v947
        %949 = vdwg.mxu0
        %v950 = vmax.f32 %v946, 0.0
        %v951 = vmax.f32 %v948, 0.0
        %v952 = vpack.c.bf16 %v950, %v950
        %v953 = vpack.c.bf16 %v951, %v951
        %954 = vst [vmem:[#allocation2 + $0x8] sm:$0xf] %v952
        %955 = vst [vmem:[#allocation2 + $0xc] sm:$0xf] %v953
        %v956 = vld [vmem:[%s474] sm:$0xff]
        %v957 = vld [vmem:[%s474 + $0x8] sm:$0xff]
        %v958 = vpack.c.bf16 %v956, %v956
        %v959 = vpack.c.bf16 %v957, %v957
        %v960 = vld [vmem:[#allocation9] sm:$0xf]
        %v961 = vld [vmem:[#allocation9 + $0x4] sm:$0xf]
        %v962 = vld [vmem:[#allocation9 + $0x8] sm:$0xf]
        %v963 = vld [vmem:[#allocation9 + $0xc] sm:$0xf]
        %v964 = vld [vmem:[#allocation9 + $0x10] sm:$0xf]
        %v965 = vld [vmem:[#allocation9 + $0x14] sm:$0xf]
        %v966 = vld [vmem:[#allocation9 + $0x18] sm:$0xf]
        %v967 = vld [vmem:[#allocation9 + $0x1c] sm:$0xf]
        %v968 = vld [vmem:[#allocation9 + $0x20] sm:$0xf]
        %v969 = vld [vmem:[#allocation9 + $0x24] sm:$0xf]
        %v970 = vld [vmem:[#allocation9 + $0x28] sm:$0xf]
        %v971 = vld [vmem:[#allocation9 + $0x2c] sm:$0xf]
        %v972 = vld [vmem:[#allocation9 + $0x30] sm:$0xf]
        %v973 = vld [vmem:[#allocation9 + $0x34] sm:$0xf]
        %v974 = vld [vmem:[#allocation9 + $0x38] sm:$0xf]
        %v975 = vld [vmem:[#allocation9 + $0x3c] sm:$0xf]
        %v976 = vld [vmem:[%s4] sm:$0x1]
        %v978 = vperm.slane %v976, 0
        %v982 = vunpack.c.l.b16 %v958
        %v983 = vunpack.c.l.b16 %v959
        %v984 = vpack.c.b16 %v983, %v982
        %v1002 = vunpack.c.l.b16 %v960
        %v1003 = vunpack.c.l.b16 %v961
        %v1004 = vunpack.c.l.b16 %v962
        %v1005 = vunpack.c.l.b16 %v963
        %v1006 = vunpack.c.l.b16 %v964
        %v1007 = vunpack.c.l.b16 %v965
        %v1008 = vunpack.c.l.b16 %v966
        %v1009 = vunpack.c.l.b16 %v967
        %v1010 = vunpack.c.l.b16 %v968
        %v1011 = vunpack.c.l.b16 %v969
        %v1012 = vunpack.c.l.b16 %v970
        %v1013 = vunpack.c.l.b16 %v971
        %v1014 = vunpack.c.l.b16 %v972
        %v1015 = vunpack.c.l.b16 %v973
        %v1016 = vunpack.c.l.b16 %v974
        %v1017 = vunpack.c.l.b16 %v975
        %v1018 = vpack.c.b16 %v1003, %v1002
        %v1019 = vpack.c.b16 %v1005, %v1004
        %v1020 = vpack.c.b16 %v1007, %v1006
        %v1021 = vpack.c.b16 %v1009, %v1008
        %v1022 = vpack.c.b16 %v1011, %v1010
        %v1023 = vpack.c.b16 %v1013, %v1012
        %v1024 = vpack.c.b16 %v1015, %v1014
        %v1025 = vpack.c.b16 %v1017, %v1016
        %1034 = vmatpush.bf16.msra.mxu0 %v1025
        %1035 = vmatpush.bf16.msra.mxu0 %v1024
        %1036 = vmatpush.bf16.msra.mxu0 %v1023
        %1037 = vmatpush.bf16.msra.mxu0 %v1022
        %1038 = vmatpush.bf16.msra.mxu0 %v1021
        %1039 = vmatpush.bf16.msra.mxu0 %v1020
        %1040 = vmatpush.bf16.msra.mxu0 %v1019
        %1041 = vmatpush.bf16.msra.mxu0 %v1018
        %1042 = vmatmul.bf16.gmra.mxu0 %v984
        %v1043 = vpop.f32.mrf.mxu0
        %v1044 = vadd.f32 %v978, %v1043
        %v1045 = vpop.f32.mrf.mxu0
        %v1046 = vadd.f32 %v978, %v1045
        %1047 = vdwg.mxu0
        %v1048 = vmax.f32 %v1044, 0.0
        %v1049 = vmax.f32 %v1046, 0.0
        %v1050 = vpack.c.bf16 %v1048, %v1048
        %v1051 = vpack.c.bf16 %v1049, %v1049
        %s1052 = scalar_lea.vmem [#allocation2], 180
        %1053 = vst [vmem:[%s1052 + $0x8] sm:$0xf] %v1050
        %1054 = vst [vmem:[%s1052 + $0xc] sm:$0xf] %v1051
        %p1055 = scmp.eq.s32.totalorder %s36, 0
        // Predicated region
        $region81: #{tpu_custom_call.1} parent=55 // pred_check
          %p1056 = pneg %p1055
        $region82: #{tpu_custom_call.1} parent=55 // pred_check_branch
          %1058 = sbr.rel (%p1056) target = $region84
        $region83: #{tpu_custom_call.1} parent=55 // pred_region
          %1059 = vst [vmem:[#allocation2] sm:$0xf] 0
          %1060 = vst [vmem:[#allocation2 + $0x4] sm:$0xf] 0
          %1061 = vst [vmem:[#allocation2 + $0x8] sm:$0xf] 0
          %1062 = vst [vmem:[#allocation2 + $0xc] sm:$0xf] 0
          %v1063 = vld [vmem:[#allocation2 + $0x10] sm:$0x1]
          %v1064 = vsel %vm581, 0, %v1063
          %1065 = vst [vmem:[#allocation2 + $0x10] sm:$0x1] %v1064
        $region84: #{tpu_custom_call.1} parent=55 // pred_fallthru
          _
        %p1066 = scmp.eq.s32.totalorder %s36, 1
        // Predicated region
        $region85: #{tpu_custom_call.1} parent=55 // pred_check
          %p1067 = pneg %p1066
        $region86: #{tpu_custom_call.1} parent=55 // pred_check_branch
          %1069 = sbr.rel (%p1067) target = $region88
        $region87: #{tpu_custom_call.1} parent=55 // pred_region
          %1070 = vst [vmem:[%s1052] sm:$0xf] 0
          %1071 = vst [vmem:[%s1052 + $0x4] sm:$0xf] 0
          %1072 = vst [vmem:[%s1052 + $0x8] sm:$0xf] 0
          %1073 = vst [vmem:[%s1052 + $0xc] sm:$0xf] 0
          %v1074 = vld [vmem:[%s1052 + $0x10] sm:$0x1]
          %v1075 = vsel %vm581, 0, %v1074
          %1076 = vst [vmem:[%s1052 + $0x10] sm:$0x1] %v1075
        $region88: #{tpu_custom_call.1} parent=55 // pred_fallthru
          _
        %v1077 = vld [vmem:[#allocation2 + $0x4] sm:$0x8]
        %v1078 = vld [vmem:[#allocation2 + $0x8] sm:$0xf]
        %v1079 = vld [vmem:[#allocation2 + $0xc] sm:$0xf]
        %v1080 = vld [vmem:[#allocation2 + $0x18] sm:$0x8]
        %v1081 = vld [vmem:[#allocation2 + $0x1c] sm:$0xf]
        %v1082 = vld [vmem:[#allocation2 + $0x20] sm:$0xf]
        %v1083 = vld [vmem:[#allocation2 + $0x2c] sm:$0x8]
        %v1084 = vld [vmem:[#allocation2 + $0x30] sm:$0xf]
        %v1085 = vld [vmem:[#allocation2 + $0x34] sm:$0xf]
        %v1086 = vld [vmem:[#allocation2 + $0x40] sm:$0x8]
        %v1087 = vld [vmem:[#allocation2 + $0x44] sm:$0xf]
        %v1088 = vld [vmem:[#allocation2 + $0x48] sm:$0xf]
        %v1089 = vld [vmem:[#allocation2 + $0x54] sm:$0x8]
        %v1090 = vld [vmem:[#allocation2 + $0x58] sm:$0xf]
        %v1091 = vld [vmem:[#allocation2 + $0x5c] sm:$0xf]
        %v1092 = vld [vmem:[#allocation2 + $0x68] sm:$0x8]
        %v1093 = vld [vmem:[#allocation2 + $0x6c] sm:$0xf]
        %v1094 = vld [vmem:[#allocation2 + $0x70] sm:$0xf]
        %v1095 = vld [vmem:[#allocation2 + $0x7c] sm:$0x8]
        %v1096 = vld [vmem:[#allocation2 + $0x80] sm:$0xf]
        %v1097 = vld [vmem:[#allocation2 + $0x84] sm:$0xf]
        %v1098 = vld [vmem:[#allocation2 + $0x90] sm:$0x8]
        %v1099 = vld [vmem:[#allocation2 + $0x94] sm:$0xf]
        %v1100 = vld [vmem:[#allocation2 + $0x98] sm:$0xf]
        %v1101 = vld [vmem:[#allocation2 + $0x10] sm:$0x1]
        %v1102 = vld [vmem:[#allocation2 + $0x24] sm:$0x1]
        %v1103 = vld [vmem:[#allocation2 + $0x38] sm:$0x1]
        %v1104 = vld [vmem:[#allocation2 + $0x4c] sm:$0x1]
        %v1105 = vld [vmem:[#allocation2 + $0x60] sm:$0x1]
        %v1106 = vld [vmem:[#allocation2 + $0x74] sm:$0x1]
        %v1107 = vld [vmem:[#allocation2 + $0x88] sm:$0x1]
        %v1108 = vld [vmem:[#allocation2 + $0x9c] sm:$0x1]
        %v1109 = vld [vmem:[%s841 + $0x4] sm:$0x8]
        %v1110 = vld [vmem:[%s841 + $0x8] sm:$0xf]
        %v1111 = vld [vmem:[%s841 + $0xc] sm:$0xf]
        %v1112 = vld [vmem:[%s841 + $0x18] sm:$0x8]
        %v1113 = vld [vmem:[%s841 + $0x1c] sm:$0xf]
        %v1114 = vld [vmem:[%s841 + $0x20] sm:$0xf]
        %v1115 = vld [vmem:[%s841 + $0x2c] sm:$0x8]
        %v1116 = vld [vmem:[%s841 + $0x30] sm:$0xf]
        %v1117 = vld [vmem:[%s841 + $0x34] sm:$0xf]
        %v1118 = vld [vmem:[%s841 + $0x40] sm:$0x8]
        %v1119 = vld [vmem:[%s841 + $0x44] sm:$0xf]
        %v1120 = vld [vmem:[%s841 + $0x48] sm:$0xf]
        %v1121 = vld [vmem:[%s841 + $0x54] sm:$0x8]
        %v1122 = vld [vmem:[%s841 + $0x58] sm:$0xf]
        %v1123 = vld [vmem:[%s841 + $0x5c] sm:$0xf]
        %v1124 = vld [vmem:[%s841 + $0x68] sm:$0x8]
        %v1125 = vld [vmem:[%s841 + $0x6c] sm:$0xf]
        %v1126 = vld [vmem:[%s841 + $0x70] sm:$0xf]
        %v1127 = vld [vmem:[%s841 + $0x7c] sm:$0x8]
        %v1128 = vld [vmem:[%s841 + $0x80] sm:$0xf]
        %v1129 = vld [vmem:[%s841 + $0x84] sm:$0xf]
        %v1130 = vld [vmem:[%s841 + $0x90] sm:$0x8]
        %v1131 = vld [vmem:[%s841 + $0x94] sm:$0xf]
        %v1132 = vld [vmem:[%s841 + $0x98] sm:$0xf]
        %v1133 = vld [vmem:[%s841 + $0x10] sm:$0x1]
        %v1134 = vld [vmem:[%s841 + $0x24] sm:$0x1]
        %v1135 = vld [vmem:[%s841 + $0x38] sm:$0x1]
        %v1136 = vld [vmem:[%s841 + $0x4c] sm:$0x1]
        %v1137 = vld [vmem:[%s841 + $0x60] sm:$0x1]
        %v1138 = vld [vmem:[%s841 + $0x74] sm:$0x1]
        %v1139 = vld [vmem:[%s841 + $0x88] sm:$0x1]
        %v1140 = vld [vmem:[%s841 + $0x9c] sm:$0x1]
        %s1141 = scalar_lea.vmem [#allocation2], 40
        %v1142 = vld [vmem:[%s1141 + $0x4] sm:$0x8]
        %v1143 = vld [vmem:[%s1141 + $0x8] sm:$0xf]
        %v1144 = vld [vmem:[%s1141 + $0xc] sm:$0xf]
        %v1145 = vld [vmem:[%s1141 + $0x18] sm:$0x8]
        %v1146 = vld [vmem:[%s1141 + $0x1c] sm:$0xf]
        %v1147 = vld [vmem:[%s1141 + $0x20] sm:$0xf]
        %v1148 = vld [vmem:[%s1141 + $0x2c] sm:$0x8]
        %v1149 = vld [vmem:[%s1141 + $0x30] sm:$0xf]
        %v1150 = vld [vmem:[%s1141 + $0x34] sm:$0xf]
        %v1151 = vld [vmem:[%s1141 + $0x40] sm:$0x8]
        %v1152 = vld [vmem:[%s1141 + $0x44] sm:$0xf]
        %v1153 = vld [vmem:[%s1141 + $0x48] sm:$0xf]
        %v1154 = vld [vmem:[%s1141 + $0x54] sm:$0x8]
        %v1155 = vld [vmem:[%s1141 + $0x58] sm:$0xf]
        %v1156 = vld [vmem:[%s1141 + $0x5c] sm:$0xf]
        %v1157 = vld [vmem:[%s1141 + $0x68] sm:$0x8]
        %v1158 = vld [vmem:[%s1141 + $0x6c] sm:$0xf]
        %v1159 = vld [vmem:[%s1141 + $0x70] sm:$0xf]
        %v1160 = vld [vmem:[%s1141 + $0x7c] sm:$0x8]
        %v1161 = vld [vmem:[%s1141 + $0x80] sm:$0xf]
        %v1162 = vld [vmem:[%s1141 + $0x84] sm:$0xf]
        %v1163 = vld [vmem:[%s1141 + $0x90] sm:$0x8]
        %v1164 = vld [vmem:[%s1141 + $0x94] sm:$0xf]
        %v1165 = vld [vmem:[%s1141 + $0x98] sm:$0xf]
        %v1166 = vld [vmem:[%s1141 + $0x10] sm:$0x1]
        %v1167 = vld [vmem:[%s1141 + $0x24] sm:$0x1]
        %v1168 = vld [vmem:[%s1141 + $0x38] sm:$0x1]
        %v1169 = vld [vmem:[%s1141 + $0x4c] sm:$0x1]
        %v1170 = vld [vmem:[%s1141 + $0x60] sm:$0x1]
        %v1171 = vld [vmem:[%s1141 + $0x74] sm:$0x1]
        %v1172 = vld [vmem:[%s1141 + $0x88] sm:$0x1]
        %v1173 = vld [vmem:[%s1141 + $0x9c] sm:$0x1]
        %v1198 = vunpack.c.l.b16 %v1077
        %v1199 = vunpack.c.l.b16 %v1078
        %v1200 = vunpack.c.l.b16 %v1079
        %v1201 = vunpack.c.l.b16 %v1080
        %v1202 = vunpack.c.l.b16 %v1081
        %v1203 = vunpack.c.l.b16 %v1082
        %v1204 = vunpack.c.l.b16 %v1083
        %v1205 = vunpack.c.l.b16 %v1084
        %v1206 = vunpack.c.l.b16 %v1085
        %v1207 = vunpack.c.l.b16 %v1086
        %v1208 = vunpack.c.l.b16 %v1087
        %v1209 = vunpack.c.l.b16 %v1088
        %v1210 = vunpack.c.l.b16 %v1089
        %v1211 = vunpack.c.l.b16 %v1090
        %v1212 = vunpack.c.l.b16 %v1091
        %v1213 = vunpack.c.l.b16 %v1092
        %v1214 = vunpack.c.l.b16 %v1093
        %v1215 = vunpack.c.l.b16 %v1094
        %v1216 = vunpack.c.l.b16 %v1095
        %v1217 = vunpack.c.l.b16 %v1096
        %v1218 = vunpack.c.l.b16 %v1097
        %v1219 = vunpack.c.l.b16 %v1098
        %v1220 = vunpack.c.l.b16 %v1099
        %v1221 = vunpack.c.l.b16 %v1100
        %v1222 = vpack.c.b16 %v1199, %v1198
        %v1223 = vpack.c.b16 %v1200, %v1200
        %v1224 = vpack.c.b16 %v1202, %v1201
        %v1225 = vpack.c.b16 %v1203, %v1203
        %v1226 = vpack.c.b16 %v1205, %v1204
        %v1227 = vpack.c.b16 %v1206, %v1206
        %v1228 = vpack.c.b16 %v1208, %v1207
        %v1229 = vpack.c.b16 %v1209, %v1209
        %v1230 = vpack.c.b16 %v1211, %v1210
        %v1231 = vpack.c.b16 %v1212, %v1212
        %v1232 = vpack.c.b16 %v1214, %v1213
        %v1233 = vpack.c.b16 %v1215, %v1215
        %v1234 = vpack.c.b16 %v1217, %v1216
        %v1235 = vpack.c.b16 %v1218, %v1218
        %v1236 = vpack.c.b16 %v1220, %v1219
        %v1237 = vpack.c.b16 %v1221, %v1221
        %v1238 = vpack.c.b16 %v1200, %v1199
        %v1239 = vpack.c.b16 %v1203, %v1202
        %v1240 = vpack.c.b16 %v1206, %v1205
        %v1241 = vpack.c.b16 %v1209, %v1208
        %v1242 = vpack.c.b16 %v1212, %v1211
        %v1243 = vpack.c.b16 %v1215, %v1214
        %v1244 = vpack.c.b16 %v1218, %v1217
        %v1245 = vpack.c.b16 %v1221, %v1220
        %v1247 = vshrl.u32 %v1238, 16
        %v1249 = vrot.slane %v1247, 4
        %v1250 = vshll.u32 %v1238, 16
        %v1252 = vrot.slane %v1250, 5
        %v1253 = vor.u32 %v1249, %v1252
        %v1255 = vshrl.u32 %v1239, 16
        %v1257 = vrot.slane %v1255, 4
        %v1258 = vshll.u32 %v1239, 16
        %v1260 = vrot.slane %v1258, 5
        %v1261 = vor.u32 %v1257, %v1260
        %v1263 = vshrl.u32 %v1240, 16
        %v1265 = vrot.slane %v1263, 4
        %v1266 = vshll.u32 %v1240, 16
        %v1268 = vrot.slane %v1266, 5
        %v1269 = vor.u32 %v1265, %v1268
        %v1271 = vshrl.u32 %v1241, 16
        %v1273 = vrot.slane %v1271, 4
        %v1274 = vshll.u32 %v1241, 16
        %v1276 = vrot.slane %v1274, 5
        %v1277 = vor.u32 %v1273, %v1276
        %v1279 = vshrl.u32 %v1242, 16
        %v1281 = vrot.slane %v1279, 4
        %v1282 = vshll.u32 %v1242, 16
        %v1284 = vrot.slane %v1282, 5
        %v1285 = vor.u32 %v1281, %v1284
        %v1287 = vshrl.u32 %v1243, 16
        %v1289 = vrot.slane %v1287, 4
        %v1290 = vshll.u32 %v1243, 16
        %v1292 = vrot.slane %v1290, 5
        %v1293 = vor.u32 %v1289, %v1292
        %v1295 = vshrl.u32 %v1244, 16
        %v1297 = vrot.slane %v1295, 4
        %v1298 = vshll.u32 %v1244, 16
        %v1300 = vrot.slane %v1298, 5
        %v1301 = vor.u32 %v1297, %v1300
        %v1303 = vshrl.u32 %v1245, 16
        %v1305 = vrot.slane %v1303, 4
        %v1306 = vshll.u32 %v1245, 16
        %v1308 = vrot.slane %v1306, 5
        %v1309 = vor.u32 %v1305, %v1308
        %v1318 = vunpack.c.l.b16 %v1101
        %v1319 = vunpack.c.l.b16 %v1102
        %v1320 = vunpack.c.l.b16 %v1103
        %v1321 = vunpack.c.l.b16 %v1104
        %v1322 = vunpack.c.l.b16 %v1105
        %v1323 = vunpack.c.l.b16 %v1106
        %v1324 = vunpack.c.l.b16 %v1107
        %v1325 = vunpack.c.l.b16 %v1108
        %v1326 = vpack.c.b16 %v1318, %v1318
        %v1327 = vpack.c.b16 %v1319, %v1319
        %v1328 = vpack.c.b16 %v1320, %v1320
        %v1329 = vpack.c.b16 %v1321, %v1321
        %v1330 = vpack.c.b16 %v1322, %v1322
        %v1331 = vpack.c.b16 %v1323, %v1323
        %v1332 = vpack.c.b16 %v1324, %v1324
        %v1333 = vpack.c.b16 %v1325, %v1325
        %vm1334 = vcmask 1042432
        %v1335 = vrot.slane %v1238, 5
        %v1336 = vrot.slane %v1326, 5
        %v1337 = vsel %vm1334, %v1335, %v1336
        %v1338 = vrot.slane %v1239, 5
        %v1339 = vrot.slane %v1327, 5
        %v1340 = vsel %vm1334, %v1338, %v1339
        %v1341 = vrot.slane %v1240, 5
        %v1342 = vrot.slane %v1328, 5
        %v1343 = vsel %vm1334, %v1341, %v1342
        %v1344 = vrot.slane %v1241, 5
        %v1345 = vrot.slane %v1329, 5
        %v1346 = vsel %vm1334, %v1344, %v1345
        %v1347 = vrot.slane %v1242, 5
        %v1348 = vrot.slane %v1330, 5
        %v1349 = vsel %vm1334, %v1347, %v1348
        %v1350 = vrot.slane %v1243, 5
        %v1351 = vrot.slane %v1331, 5
        %v1352 = vsel %vm1334, %v1350, %v1351
        %v1353 = vrot.slane %v1244, 5
        %v1354 = vrot.slane %v1332, 5
        %v1355 = vsel %vm1334, %v1353, %v1354
        %v1356 = vrot.slane %v1245, 5
        %v1357 = vrot.slane %v1333, 5
        %v1358 = vsel %vm1334, %v1356, %v1357
        %v1383 = vunpack.c.l.b16 %v1109
        %v1384 = vunpack.c.l.b16 %v1110
        %v1385 = vunpack.c.l.b16 %v1111
        %v1386 = vunpack.c.l.b16 %v1112
        %v1387 = vunpack.c.l.b16 %v1113
        %v1388 = vunpack.c.l.b16 %v1114
        %v1389 = vunpack.c.l.b16 %v1115
        %v1390 = vunpack.c.l.b16 %v1116
        %v1391 = vunpack.c.l.b16 %v1117
        %v1392 = vunpack.c.l.b16 %v1118
        %v1393 = vunpack.c.l.b16 %v1119
        %v1394 = vunpack.c.l.b16 %v1120
        %v1395 = vunpack.c.l.b16 %v1121
        %v1396 = vunpack.c.l.b16 %v1122
        %v1397 = vunpack.c.l.b16 %v1123
        %v1398 = vunpack.c.l.b16 %v1124
        %v1399 = vunpack.c.l.b16 %v1125
        %v1400 = vunpack.c.l.b16 %v1126
        %v1401 = vunpack.c.l.b16 %v1127
        %v1402 = vunpack.c.l.b16 %v1128
        %v1403 = vunpack.c.l.b16 %v1129
        %v1404 = vunpack.c.l.b16 %v1130
        %v1405 = vunpack.c.l.b16 %v1131
        %v1406 = vunpack.c.l.b16 %v1132
        %v1407 = vpack.c.b16 %v1384, %v1383
        %v1408 = vpack.c.b16 %v1385, %v1385
        %v1409 = vpack.c.b16 %v1387, %v1386
        %v1410 = vpack.c.b16 %v1388, %v1388
        %v1411 = vpack.c.b16 %v1390, %v1389
        %v1412 = vpack.c.b16 %v1391, %v1391
        %v1413 = vpack.c.b16 %v1393, %v1392
        %v1414 = vpack.c.b16 %v1394, %v1394
        %v1415 = vpack.c.b16 %v1396, %v1395
        %v1416 = vpack.c.b16 %v1397, %v1397
        %v1417 = vpack.c.b16 %v1399, %v1398
        %v1418 = vpack.c.b16 %v1400, %v1400
        %v1419 = vpack.c.b16 %v1402, %v1401
        %v1420 = vpack.c.b16 %v1403, %v1403
        %v1421 = vpack.c.b16 %v1405, %v1404
        %v1422 = vpack.c.b16 %v1406, %v1406
        %v1423 = vpack.c.b16 %v1385, %v1384
        %v1424 = vpack.c.b16 %v1388, %v1387
        %v1425 = vpack.c.b16 %v1391, %v1390
        %v1426 = vpack.c.b16 %v1394, %v1393
        %v1427 = vpack.c.b16 %v1397, %v1396
        %v1428 = vpack.c.b16 %v1400, %v1399
        %v1429 = vpack.c.b16 %v1403, %v1402
        %v1430 = vpack.c.b16 %v1406, %v1405
        %v1432 = vshrl.u32 %v1423, 16
        %v1434 = vrot.slane %v1432, 4
        %v1435 = vshll.u32 %v1423, 16
        %v1437 = vrot.slane %v1435, 5
        %v1438 = vor.u32 %v1434, %v1437
        %v1440 = vshrl.u32 %v1424, 16
        %v1442 = vrot.slane %v1440, 4
        %v1443 = vshll.u32 %v1424, 16
        %v1445 = vrot.slane %v1443, 5
        %v1446 = vor.u32 %v1442, %v1445
        %v1448 = vshrl.u32 %v1425, 16
        %v1450 = vrot.slane %v1448, 4
        %v1451 = vshll.u32 %v1425, 16
        %v1453 = vrot.slane %v1451, 5
        %v1454 = vor.u32 %v1450, %v1453
        %v1456 = vshrl.u32 %v1426, 16
        %v1458 = vrot.slane %v1456, 4
        %v1459 = vshll.u32 %v1426, 16
        %v1461 = vrot.slane %v1459, 5
        %v1462 = vor.u32 %v1458, %v1461
        %v1464 = vshrl.u32 %v1427, 16
        %v1466 = vrot.slane %v1464, 4
        %v1467 = vshll.u32 %v1427, 16
        %v1469 = vrot.slane %v1467, 5
        %v1470 = vor.u32 %v1466, %v1469
        %v1472 = vshrl.u32 %v1428, 16
        %v1474 = vrot.slane %v1472, 4
        %v1475 = vshll.u32 %v1428, 16
        %v1477 = vrot.slane %v1475, 5
        %v1478 = vor.u32 %v1474, %v1477
        %v1480 = vshrl.u32 %v1429, 16
        %v1482 = vrot.slane %v1480, 4
        %v1483 = vshll.u32 %v1429, 16
        %v1485 = vrot.slane %v1483, 5
        %v1486 = vor.u32 %v1482, %v1485
        %v1488 = vshrl.u32 %v1430, 16
        %v1490 = vrot.slane %v1488, 4
        %v1491 = vshll.u32 %v1430, 16
        %v1493 = vrot.slane %v1491, 5
        %v1494 = vor.u32 %v1490, %v1493
        %v1503 = vunpack.c.l.b16 %v1133
        %v1504 = vunpack.c.l.b16 %v1134
        %v1505 = vunpack.c.l.b16 %v1135
        %v1506 = vunpack.c.l.b16 %v1136
        %v1507 = vunpack.c.l.b16 %v1137
        %v1508 = vunpack.c.l.b16 %v1138
        %v1509 = vunpack.c.l.b16 %v1139
        %v1510 = vunpack.c.l.b16 %v1140
        %v1511 = vpack.c.b16 %v1503, %v1503
        %v1512 = vpack.c.b16 %v1504, %v1504
        %v1513 = vpack.c.b16 %v1505, %v1505
        %v1514 = vpack.c.b16 %v1506, %v1506
        %v1515 = vpack.c.b16 %v1507, %v1507
        %v1516 = vpack.c.b16 %v1508, %v1508
        %v1517 = vpack.c.b16 %v1509, %v1509
        %v1518 = vpack.c.b16 %v1510, %v1510
        %v1519 = vrot.slane %v1423, 5
        %v1520 = vrot.slane %v1511, 5
        %v1521 = vsel %vm1334, %v1519, %v1520
        %v1522 = vrot.slane %v1424, 5
        %v1523 = vrot.slane %v1512, 5
        %v1524 = vsel %vm1334, %v1522, %v1523
        %v1525 = vrot.slane %v1425, 5
        %v1526 = vrot.slane %v1513, 5
        %v1527 = vsel %vm1334, %v1525, %v1526
        %v1528 = vrot.slane %v1426, 5
        %v1529 = vrot.slane %v1514, 5
        %v1530 = vsel %vm1334, %v1528, %v1529
        %v1531 = vrot.slane %v1427, 5
        %v1532 = vrot.slane %v1515, 5
        %v1533 = vsel %vm1334, %v1531, %v1532
        %v1534 = vrot.slane %v1428, 5
        %v1535 = vrot.slane %v1516, 5
        %v1536 = vsel %vm1334, %v1534, %v1535
        %v1537 = vrot.slane %v1429, 5
        %v1538 = vrot.slane %v1517, 5
        %v1539 = vsel %vm1334, %v1537, %v1538
        %v1540 = vrot.slane %v1430, 5
        %v1541 = vrot.slane %v1518, 5
        %v1542 = vsel %vm1334, %v1540, %v1541
        %v1567 = vunpack.c.l.b16 %v1142
        %v1568 = vunpack.c.l.b16 %v1143
        %v1569 = vunpack.c.l.b16 %v1144
        %v1570 = vunpack.c.l.b16 %v1145
        %v1571 = vunpack.c.l.b16 %v1146
        %v1572 = vunpack.c.l.b16 %v1147
        %v1573 = vunpack.c.l.b16 %v1148
        %v1574 = vunpack.c.l.b16 %v1149
        %v1575 = vunpack.c.l.b16 %v1150
        %v1576 = vunpack.c.l.b16 %v1151
        %v1577 = vunpack.c.l.b16 %v1152
        %v1578 = vunpack.c.l.b16 %v1153
        %v1579 = vunpack.c.l.b16 %v1154
        %v1580 = vunpack.c.l.b16 %v1155
        %v1581 = vunpack.c.l.b16 %v1156
        %v1582 = vunpack.c.l.b16 %v1157
        %v1583 = vunpack.c.l.b16 %v1158
        %v1584 = vunpack.c.l.b16 %v1159
        %v1585 = vunpack.c.l.b16 %v1160
        %v1586 = vunpack.c.l.b16 %v1161
        %v1587 = vunpack.c.l.b16 %v1162
        %v1588 = vunpack.c.l.b16 %v1163
        %v1589 = vunpack.c.l.b16 %v1164
        %v1590 = vunpack.c.l.b16 %v1165
        %v1591 = vpack.c.b16 %v1568, %v1567
        %v1592 = vpack.c.b16 %v1569, %v1569
        %v1593 = vpack.c.b16 %v1571, %v1570
        %v1594 = vpack.c.b16 %v1572, %v1572
        %v1595 = vpack.c.b16 %v1574, %v1573
        %v1596 = vpack.c.b16 %v1575, %v1575
        %v1597 = vpack.c.b16 %v1577, %v1576
        %v1598 = vpack.c.b16 %v1578, %v1578
        %v1599 = vpack.c.b16 %v1580, %v1579
        %v1600 = vpack.c.b16 %v1581, %v1581
        %v1601 = vpack.c.b16 %v1583, %v1582
        %v1602 = vpack.c.b16 %v1584, %v1584
        %v1603 = vpack.c.b16 %v1586, %v1585
        %v1604 = vpack.c.b16 %v1587, %v1587
        %v1605 = vpack.c.b16 %v1589, %v1588
        %v1606 = vpack.c.b16 %v1590, %v1590
        %v1607 = vpack.c.b16 %v1569, %v1568
        %v1608 = vpack.c.b16 %v1572, %v1571
        %v1609 = vpack.c.b16 %v1575, %v1574
        %v1610 = vpack.c.b16 %v1578, %v1577
        %v1611 = vpack.c.b16 %v1581, %v1580
        %v1612 = vpack.c.b16 %v1584, %v1583
        %v1613 = vpack.c.b16 %v1587, %v1586
        %v1614 = vpack.c.b16 %v1590, %v1589
        %v1616 = vshrl.u32 %v1607, 16
        %v1618 = vrot.slane %v1616, 4
        %v1619 = vshll.u32 %v1607, 16
        %v1621 = vrot.slane %v1619, 5
        %v1622 = vor.u32 %v1618, %v1621
        %v1624 = vshrl.u32 %v1608, 16
        %v1626 = vrot.slane %v1624, 4
        %v1627 = vshll.u32 %v1608, 16
        %v1629 = vrot.slane %v1627, 5
        %v1630 = vor.u32 %v1626, %v1629
        %v1632 = vshrl.u32 %v1609, 16
        %v1634 = vrot.slane %v1632, 4
        %v1635 = vshll.u32 %v1609, 16
        %v1637 = vrot.slane %v1635, 5
        %v1638 = vor.u32 %v1634, %v1637
        %v1640 = vshrl.u32 %v1610, 16
        %v1642 = vrot.slane %v1640, 4
        %v1643 = vshll.u32 %v1610, 16
        %v1645 = vrot.slane %v1643, 5
        %v1646 = vor.u32 %v1642, %v1645
        %v1648 = vshrl.u32 %v1611, 16
        %v1650 = vrot.slane %v1648, 4
        %v1651 = vshll.u32 %v1611, 16
        %v1653 = vrot.slane %v1651, 5
        %v1654 = vor.u32 %v1650, %v1653
        %v1656 = vshrl.u32 %v1612, 16
        %v1658 = vrot.slane %v1656, 4
        %v1659 = vshll.u32 %v1612, 16
        %v1661 = vrot.slane %v1659, 5
        %v1662 = vor.u32 %v1658, %v1661
        %v1664 = vshrl.u32 %v1613, 16
        %v1666 = vrot.slane %v1664, 4
        %v1667 = vshll.u32 %v1613, 16
        %v1669 = vrot.slane %v1667, 5
        %v1670 = vor.u32 %v1666, %v1669
        %v1672 = vshrl.u32 %v1614, 16
        %v1674 = vrot.slane %v1672, 4
        %v1675 = vshll.u32 %v1614, 16
        %v1677 = vrot.slane %v1675, 5
        %v1678 = vor.u32 %v1674, %v1677
        %v1687 = vunpack.c.l.b16 %v1166
        %v1688 = vunpack.c.l.b16 %v1167
        %v1689 = vunpack.c.l.b16 %v1168
        %v1690 = vunpack.c.l.b16 %v1169
        %v1691 = vunpack.c.l.b16 %v1170
        %v1692 = vunpack.c.l.b16 %v1171
        %v1693 = vunpack.c.l.b16 %v1172
        %v1694 = vunpack.c.l.b16 %v1173
        %v1695 = vpack.c.b16 %v1687, %v1687
        %v1696 = vpack.c.b16 %v1688, %v1688
        %v1697 = vpack.c.b16 %v1689, %v1689
        %v1698 = vpack.c.b16 %v1690, %v1690
        %v1699 = vpack.c.b16 %v1691, %v1691
        %v1700 = vpack.c.b16 %v1692, %v1692
        %v1701 = vpack.c.b16 %v1693, %v1693
        %v1702 = vpack.c.b16 %v1694, %v1694
        %v1703 = vrot.slane %v1607, 5
        %v1704 = vrot.slane %v1695, 5
        %v1705 = vsel %vm1334, %v1703, %v1704
        %v1706 = vrot.slane %v1608, 5
        %v1707 = vrot.slane %v1696, 5
        %v1708 = vsel %vm1334, %v1706, %v1707
        %v1709 = vrot.slane %v1609, 5
        %v1710 = vrot.slane %v1697, 5
        %v1711 = vsel %vm1334, %v1709, %v1710
        %v1712 = vrot.slane %v1610, 5
        %v1713 = vrot.slane %v1698, 5
        %v1714 = vsel %vm1334, %v1712, %v1713
        %v1715 = vrot.slane %v1611, 5
        %v1716 = vrot.slane %v1699, 5
        %v1717 = vsel %vm1334, %v1715, %v1716
        %v1718 = vrot.slane %v1612, 5
        %v1719 = vrot.slane %v1700, 5
        %v1720 = vsel %vm1334, %v1718, %v1719
        %v1721 = vrot.slane %v1613, 5
        %v1722 = vrot.slane %v1701, 5
        %v1723 = vsel %vm1334, %v1721, %v1722
        %v1724 = vrot.slane %v1614, 5
        %v1725 = vrot.slane %v1702, 5
        %v1726 = vsel %vm1334, %v1724, %v1725
        %vm1727 = vsmask.f32 4352
        %v1729 = vshrl.u32 %v1222, 16
        %v1731 = vrot.slane %v1729, 3
        %v1732 = vshll.u32 %v1222, 16
        %v1734 = vrot.slane %v1732, 4
        %v1735 = vor.u32 %v1731, %v1734
        %v1737 = vshrl.u32 %v1223, 16
        %v1739 = vrot.slane %v1737, 3
        %v1740 = vshll.u32 %v1223, 16
        %v1742 = vrot.slane %v1740, 4
        %v1743 = vor.u32 %v1739, %v1742
        %v1744 = vsel %vm1727, %v1735, %v1743
        %v1746 = vshrl.u32 %v1253, 16
        %v1748 = vrot.slane %v1746, 3
        %v1749 = vshll.u32 %v1253, 16
        %v1751 = vrot.slane %v1749, 4
        %v1752 = vor.u32 %v1748, %v1751
        %v1753 = vsel %vm1727, %v1752, %v1752
        %v1755 = vshrl.u32 %v1335, 16
        %v1757 = vrot.slane %v1755, 3
        %v1758 = vshll.u32 %v1335, 16
        %v1760 = vrot.slane %v1758, 4
        %v1761 = vor.u32 %v1757, %v1760
        %v1763 = vshrl.u32 %v1337, 16
        %v1765 = vrot.slane %v1763, 3
        %v1766 = vshll.u32 %v1337, 16
        %v1768 = vrot.slane %v1766, 4
        %v1769 = vor.u32 %v1765, %v1768
        %v1770 = vsel %vm1727, %v1761, %v1769
        %v1772 = vshrl.u32 %v1407, 16
        %v1774 = vrot.slane %v1772, 3
        %v1775 = vshll.u32 %v1407, 16
        %v1777 = vrot.slane %v1775, 4
        %v1778 = vor.u32 %v1774, %v1777
        %v1780 = vshrl.u32 %v1408, 16
        %v1782 = vrot.slane %v1780, 3
        %v1783 = vshll.u32 %v1408, 16
        %v1785 = vrot.slane %v1783, 4
        %v1786 = vor.u32 %v1782, %v1785
        %v1787 = vsel %vm1727, %v1778, %v1786
        %v1789 = vshrl.u32 %v1438, 16
        %v1791 = vrot.slane %v1789, 3
        %v1792 = vshll.u32 %v1438, 16
        %v1794 = vrot.slane %v1792, 4
        %v1795 = vor.u32 %v1791, %v1794
        %v1796 = vsel %vm1727, %v1795, %v1795
        %v1798 = vshrl.u32 %v1519, 16
        %v1800 = vrot.slane %v1798, 3
        %v1801 = vshll.u32 %v1519, 16
        %v1803 = vrot.slane %v1801, 4
        %v1804 = vor.u32 %v1800, %v1803
        %v1806 = vshrl.u32 %v1521, 16
        %v1808 = vrot.slane %v1806, 3
        %v1809 = vshll.u32 %v1521, 16
        %v1811 = vrot.slane %v1809, 4
        %v1812 = vor.u32 %v1808, %v1811
        %v1813 = vsel %vm1727, %v1804, %v1812
        %v1815 = vshrl.u32 %v1591, 16
        %v1817 = vrot.slane %v1815, 3
        %v1818 = vshll.u32 %v1591, 16
        %v1820 = vrot.slane %v1818, 4
        %v1821 = vor.u32 %v1817, %v1820
        %v1823 = vshrl.u32 %v1592, 16
        %v1825 = vrot.slane %v1823, 3
        %v1826 = vshll.u32 %v1592, 16
        %v1828 = vrot.slane %v1826, 4
        %v1829 = vor.u32 %v1825, %v1828
        %v1830 = vsel %vm1727, %v1821, %v1829
        %v1832 = vshrl.u32 %v1622, 16
        %v1834 = vrot.slane %v1832, 3
        %v1835 = vshll.u32 %v1622, 16
        %v1837 = vrot.slane %v1835, 4
        %v1838 = vor.u32 %v1834, %v1837
        %v1839 = vsel %vm1727, %v1838, %v1838
        %v1841 = vshrl.u32 %v1703, 16
        %v1843 = vrot.slane %v1841, 3
        %v1844 = vshll.u32 %v1703, 16
        %v1846 = vrot.slane %v1844, 4
        %v1847 = vor.u32 %v1843, %v1846
        %v1849 = vshrl.u32 %v1705, 16
        %v1851 = vrot.slane %v1849, 3
        %v1852 = vshll.u32 %v1705, 16
        %v1854 = vrot.slane %v1852, 4
        %v1855 = vor.u32 %v1851, %v1854
        %v1856 = vsel %vm1727, %v1847, %v1855
        %v1858 = vshrl.u32 %v1224, 16
        %v1860 = vrot.slane %v1858, 3
        %v1861 = vshll.u32 %v1224, 16
        %v1863 = vrot.slane %v1861, 4
        %v1864 = vor.u32 %v1860, %v1863
        %v1866 = vshrl.u32 %v1225, 16
        %v1868 = vrot.slane %v1866, 3
        %v1869 = vshll.u32 %v1225, 16
        %v1871 = vrot.slane %v1869, 4
        %v1872 = vor.u32 %v1868, %v1871
        %v1873 = vsel %vm1727, %v1864, %v1872
        %v1875 = vshrl.u32 %v1261, 16
        %v1877 = vrot.slane %v1875, 3
        %v1878 = vshll.u32 %v1261, 16
        %v1880 = vrot.slane %v1878, 4
        %v1881 = vor.u32 %v1877, %v1880
        %v1882 = vsel %vm1727, %v1881, %v1881
        %v1884 = vshrl.u32 %v1338, 16
        %v1886 = vrot.slane %v1884, 3
        %v1887 = vshll.u32 %v1338, 16
        %v1889 = vrot.slane %v1887, 4
        %v1890 = vor.u32 %v1886, %v1889
        %v1892 = vshrl.u32 %v1340, 16
        %v1894 = vrot.slane %v1892, 3
        %v1895 = vshll.u32 %v1340, 16
        %v1897 = vrot.slane %v1895, 4
        %v1898 = vor.u32 %v1894, %v1897
        %v1899 = vsel %vm1727, %v1890, %v1898
        %v1901 = vshrl.u32 %v1409, 16
        %v1903 = vrot.slane %v1901, 3
        %v1904 = vshll.u32 %v1409, 16
        %v1906 = vrot.slane %v1904, 4
        %v1907 = vor.u32 %v1903, %v1906
        %v1909 = vshrl.u32 %v1410, 16
        %v1911 = vrot.slane %v1909, 3
        %v1912 = vshll.u32 %v1410, 16
        %v1914 = vrot.slane %v1912, 4
        %v1915 = vor.u32 %v1911, %v1914
        %v1916 = vsel %vm1727, %v1907, %v1915
        %v1918 = vshrl.u32 %v1446, 16
        %v1920 = vrot.slane %v1918, 3
        %v1921 = vshll.u32 %v1446, 16
        %v1923 = vrot.slane %v1921, 4
        %v1924 = vor.u32 %v1920, %v1923
        %v1925 = vsel %vm1727, %v1924, %v1924
        %v1927 = vshrl.u32 %v1522, 16
        %v1929 = vrot.slane %v1927, 3
        %v1930 = vshll.u32 %v1522, 16
        %v1932 = vrot.slane %v1930, 4
        %v1933 = vor.u32 %v1929, %v1932
        %v1935 = vshrl.u32 %v1524, 16
        %v1937 = vrot.slane %v1935, 3
        %v1938 = vshll.u32 %v1524, 16
        %v1940 = vrot.slane %v1938, 4
        %v1941 = vor.u32 %v1937, %v1940
        %v1942 = vsel %vm1727, %v1933, %v1941
        %v1944 = vshrl.u32 %v1593, 16
        %v1946 = vrot.slane %v1944, 3
        %v1947 = vshll.u32 %v1593, 16
        %v1949 = vrot.slane %v1947, 4
        %v1950 = vor.u32 %v1946, %v1949
        %v1952 = vshrl.u32 %v1594, 16
        %v1954 = vrot.slane %v1952, 3
        %v1955 = vshll.u32 %v1594, 16
        %v1957 = vrot.slane %v1955, 4
        %v1958 = vor.u32 %v1954, %v1957
        %v1959 = vsel %vm1727, %v1950, %v1958
        %v1961 = vshrl.u32 %v1630, 16
        %v1963 = vrot.slane %v1961, 3
        %v1964 = vshll.u32 %v1630, 16
        %v1966 = vrot.slane %v1964, 4
        %v1967 = vor.u32 %v1963, %v1966
        %v1968 = vsel %vm1727, %v1967, %v1967
        %v1970 = vshrl.u32 %v1706, 16
        %v1972 = vrot.slane %v1970, 3
        %v1973 = vshll.u32 %v1706, 16
        %v1975 = vrot.slane %v1973, 4
        %v1976 = vor.u32 %v1972, %v1975
        %v1978 = vshrl.u32 %v1708, 16
        %v1980 = vrot.slane %v1978, 3
        %v1981 = vshll.u32 %v1708, 16
        %v1983 = vrot.slane %v1981, 4
        %v1984 = vor.u32 %v1980, %v1983
        %v1985 = vsel %vm1727, %v1976, %v1984
        %v1987 = vshrl.u32 %v1226, 16
        %v1989 = vrot.slane %v1987, 3
        %v1990 = vshll.u32 %v1226, 16
        %v1992 = vrot.slane %v1990, 4
        %v1993 = vor.u32 %v1989, %v1992
        %v1995 = vshrl.u32 %v1227, 16
        %v1997 = vrot.slane %v1995, 3
        %v1998 = vshll.u32 %v1227, 16
        %v2000 = vrot.slane %v1998, 4
        %v2001 = vor.u32 %v1997, %v2000
        %v2002 = vsel %vm1727, %v1993, %v2001
        %v2004 = vshrl.u32 %v1269, 16
        %v2006 = vrot.slane %v2004, 3
        %v2007 = vshll.u32 %v1269, 16
        %v2009 = vrot.slane %v2007, 4
        %v2010 = vor.u32 %v2006, %v2009
        %v2011 = vsel %vm1727, %v2010, %v2010
        %v2013 = vshrl.u32 %v1341, 16
        %v2015 = vrot.slane %v2013, 3
        %v2016 = vshll.u32 %v1341, 16
        %v2018 = vrot.slane %v2016, 4
        %v2019 = vor.u32 %v2015, %v2018
        %v2021 = vshrl.u32 %v1343, 16
        %v2023 = vrot.slane %v2021, 3
        %v2024 = vshll.u32 %v1343, 16
        %v2026 = vrot.slane %v2024, 4
        %v2027 = vor.u32 %v2023, %v2026
        %v2028 = vsel %vm1727, %v2019, %v2027
        %v2030 = vshrl.u32 %v1411, 16
        %v2032 = vrot.slane %v2030, 3
        %v2033 = vshll.u32 %v1411, 16
        %v2035 = vrot.slane %v2033, 4
        %v2036 = vor.u32 %v2032, %v2035
        %v2038 = vshrl.u32 %v1412, 16
        %v2040 = vrot.slane %v2038, 3
        %v2041 = vshll.u32 %v1412, 16
        %v2043 = vrot.slane %v2041, 4
        %v2044 = vor.u32 %v2040, %v2043
        %v2045 = vsel %vm1727, %v2036, %v2044
        %v2047 = vshrl.u32 %v1454, 16
        %v2049 = vrot.slane %v2047, 3
        %v2050 = vshll.u32 %v1454, 16
        %v2052 = vrot.slane %v2050, 4
        %v2053 = vor.u32 %v2049, %v2052
        %v2054 = vsel %vm1727, %v2053, %v2053
        %v2056 = vshrl.u32 %v1525, 16
        %v2058 = vrot.slane %v2056, 3
        %v2059 = vshll.u32 %v1525, 16
        %v2061 = vrot.slane %v2059, 4
        %v2062 = vor.u32 %v2058, %v2061
        %v2064 = vshrl.u32 %v1527, 16
        %v2066 = vrot.slane %v2064, 3
        %v2067 = vshll.u32 %v1527, 16
        %v2069 = vrot.slane %v2067, 4
        %v2070 = vor.u32 %v2066, %v2069
        %v2071 = vsel %vm1727, %v2062, %v2070
        %v2073 = vshrl.u32 %v1595, 16
        %v2075 = vrot.slane %v2073, 3
        %v2076 = vshll.u32 %v1595, 16
        %v2078 = vrot.slane %v2076, 4
        %v2079 = vor.u32 %v2075, %v2078
        %v2081 = vshrl.u32 %v1596, 16
        %v2083 = vrot.slane %v2081, 3
        %v2084 = vshll.u32 %v1596, 16
        %v2086 = vrot.slane %v2084, 4
        %v2087 = vor.u32 %v2083, %v2086
        %v2088 = vsel %vm1727, %v2079, %v2087
        %v2090 = vshrl.u32 %v1638, 16
        %v2092 = vrot.slane %v2090, 3
        %v2093 = vshll.u32 %v1638, 16
        %v2095 = vrot.slane %v2093, 4
        %v2096 = vor.u32 %v2092, %v2095
        %v2097 = vsel %vm1727, %v2096, %v2096
        %v2099 = vshrl.u32 %v1709, 16
        %v2101 = vrot.slane %v2099, 3
        %v2102 = vshll.u32 %v1709, 16
        %v2104 = vrot.slane %v2102, 4
        %v2105 = vor.u32 %v2101, %v2104
        %v2107 = vshrl.u32 %v1711, 16
        %v2109 = vrot.slane %v2107, 3
        %v2110 = vshll.u32 %v1711, 16
        %v2112 = vrot.slane %v2110, 4
        %v2113 = vor.u32 %v2109, %v2112
        %v2114 = vsel %vm1727, %v2105, %v2113
        %v2116 = vshrl.u32 %v1228, 16
        %v2118 = vrot.slane %v2116, 3
        %v2119 = vshll.u32 %v1228, 16
        %v2121 = vrot.slane %v2119, 4
        %v2122 = vor.u32 %v2118, %v2121
        %v2124 = vshrl.u32 %v1229, 16
        %v2126 = vrot.slane %v2124, 3
        %v2127 = vshll.u32 %v1229, 16
        %v2129 = vrot.slane %v2127, 4
        %v2130 = vor.u32 %v2126, %v2129
        %v2131 = vsel %vm1727, %v2122, %v2130
        %v2133 = vshrl.u32 %v1277, 16
        %v2135 = vrot.slane %v2133, 3
        %v2136 = vshll.u32 %v1277, 16
        %v2138 = vrot.slane %v2136, 4
        %v2139 = vor.u32 %v2135, %v2138
        %v2140 = vsel %vm1727, %v2139, %v2139
        %v2142 = vshrl.u32 %v1344, 16
        %v2144 = vrot.slane %v2142, 3
        %v2145 = vshll.u32 %v1344, 16
        %v2147 = vrot.slane %v2145, 4
        %v2148 = vor.u32 %v2144, %v2147
        %v2150 = vshrl.u32 %v1346, 16
        %v2152 = vrot.slane %v2150, 3
        %v2153 = vshll.u32 %v1346, 16
        %v2155 = vrot.slane %v2153, 4
        %v2156 = vor.u32 %v2152, %v2155
        %v2157 = vsel %vm1727, %v2148, %v2156
        %v2159 = vshrl.u32 %v1413, 16
        %v2161 = vrot.slane %v2159, 3
        %v2162 = vshll.u32 %v1413, 16
        %v2164 = vrot.slane %v2162, 4
        %v2165 = vor.u32 %v2161, %v2164
        %v2167 = vshrl.u32 %v1414, 16
        %v2169 = vrot.slane %v2167, 3
        %v2170 = vshll.u32 %v1414, 16
        %v2172 = vrot.slane %v2170, 4
        %v2173 = vor.u32 %v2169, %v2172
        %v2174 = vsel %vm1727, %v2165, %v2173
        %v2176 = vshrl.u32 %v1462, 16
        %v2178 = vrot.slane %v2176, 3
        %v2179 = vshll.u32 %v1462, 16
        %v2181 = vrot.slane %v2179, 4
        %v2182 = vor.u32 %v2178, %v2181
        %v2183 = vsel %vm1727, %v2182, %v2182
        %v2185 = vshrl.u32 %v1528, 16
        %v2187 = vrot.slane %v2185, 3
        %v2188 = vshll.u32 %v1528, 16
        %v2190 = vrot.slane %v2188, 4
        %v2191 = vor.u32 %v2187, %v2190
        %v2193 = vshrl.u32 %v1530, 16
        %v2195 = vrot.slane %v2193, 3
        %v2196 = vshll.u32 %v1530, 16
        %v2198 = vrot.slane %v2196, 4
        %v2199 = vor.u32 %v2195, %v2198
        %v2200 = vsel %vm1727, %v2191, %v2199
        %v2202 = vshrl.u32 %v1597, 16
        %v2204 = vrot.slane %v2202, 3
        %v2205 = vshll.u32 %v1597, 16
        %v2207 = vrot.slane %v2205, 4
        %v2208 = vor.u32 %v2204, %v2207
        %v2210 = vshrl.u32 %v1598, 16
        %v2212 = vrot.slane %v2210, 3
        %v2213 = vshll.u32 %v1598, 16
        %v2215 = vrot.slane %v2213, 4
        %v2216 = vor.u32 %v2212, %v2215
        %v2217 = vsel %vm1727, %v2208, %v2216
        %v2219 = vshrl.u32 %v1646, 16
        %v2221 = vrot.slane %v2219, 3
        %v2222 = vshll.u32 %v1646, 16
        %v2224 = vrot.slane %v2222, 4
        %v2225 = vor.u32 %v2221, %v2224
        %v2226 = vsel %vm1727, %v2225, %v2225
        %v2228 = vshrl.u32 %v1712, 16
        %v2230 = vrot.slane %v2228, 3
        %v2231 = vshll.u32 %v1712, 16
        %v2233 = vrot.slane %v2231, 4
        %v2234 = vor.u32 %v2230, %v2233
        %v2236 = vshrl.u32 %v1714, 16
        %v2238 = vrot.slane %v2236, 3
        %v2239 = vshll.u32 %v1714, 16
        %v2241 = vrot.slane %v2239, 4
        %v2242 = vor.u32 %v2238, %v2241
        %v2243 = vsel %vm1727, %v2234, %v2242
        %v2245 = vshrl.u32 %v1230, 16
        %v2247 = vrot.slane %v2245, 3
        %v2248 = vshll.u32 %v1230, 16
        %v2250 = vrot.slane %v2248, 4
        %v2251 = vor.u32 %v2247, %v2250
        %v2253 = vshrl.u32 %v1231, 16
        %v2255 = vrot.slane %v2253, 3
        %v2256 = vshll.u32 %v1231, 16
        %v2258 = vrot.slane %v2256, 4
        %v2259 = vor.u32 %v2255, %v2258
        %v2260 = vsel %vm1727, %v2251, %v2259
        %v2262 = vshrl.u32 %v1285, 16
        %v2264 = vrot.slane %v2262, 3
        %v2265 = vshll.u32 %v1285, 16
        %v2267 = vrot.slane %v2265, 4
        %v2268 = vor.u32 %v2264, %v2267
        %v2269 = vsel %vm1727, %v2268, %v2268
        %v2271 = vshrl.u32 %v1347, 16
        %v2273 = vrot.slane %v2271, 3
        %v2274 = vshll.u32 %v1347, 16
        %v2276 = vrot.slane %v2274, 4
        %v2277 = vor.u32 %v2273, %v2276
        %v2279 = vshrl.u32 %v1349, 16
        %v2281 = vrot.slane %v2279, 3
        %v2282 = vshll.u32 %v1349, 16
        %v2284 = vrot.slane %v2282, 4
        %v2285 = vor.u32 %v2281, %v2284
        %v2286 = vsel %vm1727, %v2277, %v2285
        %v2288 = vshrl.u32 %v1415, 16
        %v2290 = vrot.slane %v2288, 3
        %v2291 = vshll.u32 %v1415, 16
        %v2293 = vrot.slane %v2291, 4
        %v2294 = vor.u32 %v2290, %v2293
        %v2296 = vshrl.u32 %v1416, 16
        %v2298 = vrot.slane %v2296, 3
        %v2299 = vshll.u32 %v1416, 16
        %v2301 = vrot.slane %v2299, 4
        %v2302 = vor.u32 %v2298, %v2301
        %v2303 = vsel %vm1727, %v2294, %v2302
        %v2305 = vshrl.u32 %v1470, 16
        %v2307 = vrot.slane %v2305, 3
        %v2308 = vshll.u32 %v1470, 16
        %v2310 = vrot.slane %v2308, 4
        %v2311 = vor.u32 %v2307, %v2310
        %v2312 = vsel %vm1727, %v2311, %v2311
        %v2314 = vshrl.u32 %v1531, 16
        %v2316 = vrot.slane %v2314, 3
        %v2317 = vshll.u32 %v1531, 16
        %v2319 = vrot.slane %v2317, 4
        %v2320 = vor.u32 %v2316, %v2319
        %v2322 = vshrl.u32 %v1533, 16
        %v2324 = vrot.slane %v2322, 3
        %v2325 = vshll.u32 %v1533, 16
        %v2327 = vrot.slane %v2325, 4
        %v2328 = vor.u32 %v2324, %v2327
        %v2329 = vsel %vm1727, %v2320, %v2328
        %v2331 = vshrl.u32 %v1599, 16
        %v2333 = vrot.slane %v2331, 3
        %v2334 = vshll.u32 %v1599, 16
        %v2336 = vrot.slane %v2334, 4
        %v2337 = vor.u32 %v2333, %v2336
        %v2339 = vshrl.u32 %v1600, 16
        %v2341 = vrot.slane %v2339, 3
        %v2342 = vshll.u32 %v1600, 16
        %v2344 = vrot.slane %v2342, 4
        %v2345 = vor.u32 %v2341, %v2344
        %v2346 = vsel %vm1727, %v2337, %v2345
        %v2348 = vshrl.u32 %v1654, 16
        %v2350 = vrot.slane %v2348, 3
        %v2351 = vshll.u32 %v1654, 16
        %v2353 = vrot.slane %v2351, 4
        %v2354 = vor.u32 %v2350, %v2353
        %v2355 = vsel %vm1727, %v2354, %v2354
        %v2357 = vshrl.u32 %v1715, 16
        %v2359 = vrot.slane %v2357, 3
        %v2360 = vshll.u32 %v1715, 16
        %v2362 = vrot.slane %v2360, 4
        %v2363 = vor.u32 %v2359, %v2362
        %v2365 = vshrl.u32 %v1717, 16
        %v2367 = vrot.slane %v2365, 3
        %v2368 = vshll.u32 %v1717, 16
        %v2370 = vrot.slane %v2368, 4
        %v2371 = vor.u32 %v2367, %v2370
        %v2372 = vsel %vm1727, %v2363, %v2371
        %v2374 = vshrl.u32 %v1232, 16
        %v2376 = vrot.slane %v2374, 3
        %v2377 = vshll.u32 %v1232, 16
        %v2379 = vrot.slane %v2377, 4
        %v2380 = vor.u32 %v2376, %v2379
        %v2382 = vshrl.u32 %v1233, 16
        %v2384 = vrot.slane %v2382, 3
        %v2385 = vshll.u32 %v1233, 16
        %v2387 = vrot.slane %v2385, 4
        %v2388 = vor.u32 %v2384, %v2387
        %v2389 = vsel %vm1727, %v2380, %v2388
        %v2391 = vshrl.u32 %v1293, 16
        %v2393 = vrot.slane %v2391, 3
        %v2394 = vshll.u32 %v1293, 16
        %v2396 = vrot.slane %v2394, 4
        %v2397 = vor.u32 %v2393, %v2396
        %v2398 = vsel %vm1727, %v2397, %v2397
        %v2400 = vshrl.u32 %v1350, 16
        %v2402 = vrot.slane %v2400, 3
        %v2403 = vshll.u32 %v1350, 16
        %v2405 = vrot.slane %v2403, 4
        %v2406 = vor.u32 %v2402, %v2405
        %v2408 = vshrl.u32 %v1352, 16
        %v2410 = vrot.slane %v2408, 3
        %v2411 = vshll.u32 %v1352, 16
        %v2413 = vrot.slane %v2411, 4
        %v2414 = vor.u32 %v2410, %v2413
        %v2415 = vsel %vm1727, %v2406, %v2414
        %v2417 = vshrl.u32 %v1417, 16
        %v2419 = vrot.slane %v2417, 3
        %v2420 = vshll.u32 %v1417, 16
        %v2422 = vrot.slane %v2420, 4
        %v2423 = vor.u32 %v2419, %v2422
        %v2425 = vshrl.u32 %v1418, 16
        %v2427 = vrot.slane %v2425, 3
        %v2428 = vshll.u32 %v1418, 16
        %v2430 = vrot.slane %v2428, 4
        %v2431 = vor.u32 %v2427, %v2430
        %v2432 = vsel %vm1727, %v2423, %v2431
        %v2434 = vshrl.u32 %v1478, 16
        %v2436 = vrot.slane %v2434, 3
        %v2437 = vshll.u32 %v1478, 16
        %v2439 = vrot.slane %v2437, 4
        %v2440 = vor.u32 %v2436, %v2439
        %v2441 = vsel %vm1727, %v2440, %v2440
        %v2443 = vshrl.u32 %v1534, 16
        %v2445 = vrot.slane %v2443, 3
        %v2446 = vshll.u32 %v1534, 16
        %v2448 = vrot.slane %v2446, 4
        %v2449 = vor.u32 %v2445, %v2448
        %v2451 = vshrl.u32 %v1536, 16
        %v2453 = vrot.slane %v2451, 3
        %v2454 = vshll.u32 %v1536, 16
        %v2456 = vrot.slane %v2454, 4
        %v2457 = vor.u32 %v2453, %v2456
        %v2458 = vsel %vm1727, %v2449, %v2457
        %v2460 = vshrl.u32 %v1601, 16
        %v2462 = vrot.slane %v2460, 3
        %v2463 = vshll.u32 %v1601, 16
        %v2465 = vrot.slane %v2463, 4
        %v2466 = vor.u32 %v2462, %v2465
        %v2468 = vshrl.u32 %v1602, 16
        %v2470 = vrot.slane %v2468, 3
        %v2471 = vshll.u32 %v1602, 16
        %v2473 = vrot.slane %v2471, 4
        %v2474 = vor.u32 %v2470, %v2473
        %v2475 = vsel %vm1727, %v2466, %v2474
        %v2477 = vshrl.u32 %v1662, 16
        %v2479 = vrot.slane %v2477, 3
        %v2480 = vshll.u32 %v1662, 16
        %v2482 = vrot.slane %v2480, 4
        %v2483 = vor.u32 %v2479, %v2482
        %v2484 = vsel %vm1727, %v2483, %v2483
        %v2486 = vshrl.u32 %v1718, 16
        %v2488 = vrot.slane %v2486, 3
        %v2489 = vshll.u32 %v1718, 16
        %v2491 = vrot.slane %v2489, 4
        %v2492 = vor.u32 %v2488, %v2491
        %v2494 = vshrl.u32 %v1720, 16
        %v2496 = vrot.slane %v2494, 3
        %v2497 = vshll.u32 %v1720, 16
        %v2499 = vrot.slane %v2497, 4
        %v2500 = vor.u32 %v2496, %v2499
        %v2501 = vsel %vm1727, %v2492, %v2500
        %v2503 = vshrl.u32 %v1234, 16
        %v2505 = vrot.slane %v2503, 3
        %v2506 = vshll.u32 %v1234, 16
        %v2508 = vrot.slane %v2506, 4
        %v2509 = vor.u32 %v2505, %v2508
        %v2511 = vshrl.u32 %v1235, 16
        %v2513 = vrot.slane %v2511, 3
        %v2514 = vshll.u32 %v1235, 16
        %v2516 = vrot.slane %v2514, 4
        %v2517 = vor.u32 %v2513, %v2516
        %v2518 = vsel %vm1727, %v2509, %v2517
        %v2520 = vshrl.u32 %v1301, 16
        %v2522 = vrot.slane %v2520, 3
        %v2523 = vshll.u32 %v1301, 16
        %v2525 = vrot.slane %v2523, 4
        %v2526 = vor.u32 %v2522, %v2525
        %v2527 = vsel %vm1727, %v2526, %v2526
        %v2529 = vshrl.u32 %v1353, 16
        %v2531 = vrot.slane %v2529, 3
        %v2532 = vshll.u32 %v1353, 16
        %v2534 = vrot.slane %v2532, 4
        %v2535 = vor.u32 %v2531, %v2534
        %v2537 = vshrl.u32 %v1355, 16
        %v2539 = vrot.slane %v2537, 3
        %v2540 = vshll.u32 %v1355, 16
        %v2542 = vrot.slane %v2540, 4
        %v2543 = vor.u32 %v2539, %v2542
        %v2544 = vsel %vm1727, %v2535, %v2543
        %v2546 = vshrl.u32 %v1419, 16
        %v2548 = vrot.slane %v2546, 3
        %v2549 = vshll.u32 %v1419, 16
        %v2551 = vrot.slane %v2549, 4
        %v2552 = vor.u32 %v2548, %v2551
        %v2554 = vshrl.u32 %v1420, 16
        %v2556 = vrot.slane %v2554, 3
        %v2557 = vshll.u32 %v1420, 16
        %v2559 = vrot.slane %v2557, 4
        %v2560 = vor.u32 %v2556, %v2559
        %v2561 = vsel %vm1727, %v2552, %v2560
        %v2563 = vshrl.u32 %v1486, 16
        %v2565 = vrot.slane %v2563, 3
        %v2566 = vshll.u32 %v1486, 16
        %v2568 = vrot.slane %v2566, 4
        %v2569 = vor.u32 %v2565, %v2568
        %v2570 = vsel %vm1727, %v2569, %v2569
        %v2572 = vshrl.u32 %v1537, 16
        %v2574 = vrot.slane %v2572, 3
        %v2575 = vshll.u32 %v1537, 16
        %v2577 = vrot.slane %v2575, 4
        %v2578 = vor.u32 %v2574, %v2577
        %v2580 = vshrl.u32 %v1539, 16
        %v2582 = vrot.slane %v2580, 3
        %v2583 = vshll.u32 %v1539, 16
        %v2585 = vrot.slane %v2583, 4
        %v2586 = vor.u32 %v2582, %v2585
        %v2587 = vsel %vm1727, %v2578, %v2586
        %v2589 = vshrl.u32 %v1603, 16
        %v2591 = vrot.slane %v2589, 3
        %v2592 = vshll.u32 %v1603, 16
        %v2594 = vrot.slane %v2592, 4
        %v2595 = vor.u32 %v2591, %v2594
        %v2597 = vshrl.u32 %v1604, 16
        %v2599 = vrot.slane %v2597, 3
        %v2600 = vshll.u32 %v1604, 16
        %v2602 = vrot.slane %v2600, 4
        %v2603 = vor.u32 %v2599, %v2602
        %v2604 = vsel %vm1727, %v2595, %v2603
        %v2606 = vshrl.u32 %v1670, 16
        %v2608 = vrot.slane %v2606, 3
        %v2609 = vshll.u32 %v1670, 16
        %v2611 = vrot.slane %v2609, 4
        %v2612 = vor.u32 %v2608, %v2611
        %v2613 = vsel %vm1727, %v2612, %v2612
        %v2615 = vshrl.u32 %v1721, 16
        %v2617 = vrot.slane %v2615, 3
        %v2618 = vshll.u32 %v1721, 16
        %v2620 = vrot.slane %v2618, 4
        %v2621 = vor.u32 %v2617, %v2620
        %v2623 = vshrl.u32 %v1723, 16
        %v2625 = vrot.slane %v2623, 3
        %v2626 = vshll.u32 %v1723, 16
        %v2628 = vrot.slane %v2626, 4
        %v2629 = vor.u32 %v2625, %v2628
        %v2630 = vsel %vm1727, %v2621, %v2629
        %v2632 = vshrl.u32 %v1236, 16
        %v2634 = vrot.slane %v2632, 3
        %v2635 = vshll.u32 %v1236, 16
        %v2637 = vrot.slane %v2635, 4
        %v2638 = vor.u32 %v2634, %v2637
        %v2640 = vshrl.u32 %v1237, 16
        %v2642 = vrot.slane %v2640, 3
        %v2643 = vshll.u32 %v1237, 16
        %v2645 = vrot.slane %v2643, 4
        %v2646 = vor.u32 %v2642, %v2645
        %v2647 = vsel %vm1727, %v2638, %v2646
        %v2649 = vshrl.u32 %v1309, 16
        %v2651 = vrot.slane %v2649, 3
        %v2652 = vshll.u32 %v1309, 16
        %v2654 = vrot.slane %v2652, 4
        %v2655 = vor.u32 %v2651, %v2654
        %v2656 = vsel %vm1727, %v2655, %v2655
        %v2658 = vshrl.u32 %v1356, 16
        %v2660 = vrot.slane %v2658, 3
        %v2661 = vshll.u32 %v1356, 16
        %v2663 = vrot.slane %v2661, 4
        %v2664 = vor.u32 %v2660, %v2663
        %v2666 = vshrl.u32 %v1358, 16
        %v2668 = vrot.slane %v2666, 3
        %v2669 = vshll.u32 %v1358, 16
        %v2671 = vrot.slane %v2669, 4
        %v2672 = vor.u32 %v2668, %v2671
        %v2673 = vsel %vm1727, %v2664, %v2672
        %v2675 = vshrl.u32 %v1421, 16
        %v2677 = vrot.slane %v2675, 3
        %v2678 = vshll.u32 %v1421, 16
        %v2680 = vrot.slane %v2678, 4
        %v2681 = vor.u32 %v2677, %v2680
        %v2683 = vshrl.u32 %v1422, 16
        %v2685 = vrot.slane %v2683, 3
        %v2686 = vshll.u32 %v1422, 16
        %v2688 = vrot.slane %v2686, 4
        %v2689 = vor.u32 %v2685, %v2688
        %v2690 = vsel %vm1727, %v2681, %v2689
        %v2692 = vshrl.u32 %v1494, 16
        %v2694 = vrot.slane %v2692, 3
        %v2695 = vshll.u32 %v1494, 16
        %v2697 = vrot.slane %v2695, 4
        %v2698 = vor.u32 %v2694, %v2697
        %v2699 = vsel %vm1727, %v2698, %v2698
        %v2701 = vshrl.u32 %v1540, 16
        %v2703 = vrot.slane %v2701, 3
        %v2704 = vshll.u32 %v1540, 16
        %v2706 = vrot.slane %v2704, 4
        %v2707 = vor.u32 %v2703, %v2706
        %v2709 = vshrl.u32 %v1542, 16
        %v2711 = vrot.slane %v2709, 3
        %v2712 = vshll.u32 %v1542, 16
        %v2714 = vrot.slane %v2712, 4
        %v2715 = vor.u32 %v2711, %v2714
        %v2716 = vsel %vm1727, %v2707, %v2715
        %v2718 = vshrl.u32 %v1605, 16
        %v2720 = vrot.slane %v2718, 3
        %v2721 = vshll.u32 %v1605, 16
        %v2723 = vrot.slane %v2721, 4
        %v2724 = vor.u32 %v2720, %v2723
        %v2726 = vshrl.u32 %v1606, 16
        %v2728 = vrot.slane %v2726, 3
        %v2729 = vshll.u32 %v1606, 16
        %v2731 = vrot.slane %v2729, 4
        %v2732 = vor.u32 %v2728, %v2731
        %v2733 = vsel %vm1727, %v2724, %v2732
        %v2735 = vshrl.u32 %v1678, 16
        %v2737 = vrot.slane %v2735, 3
        %v2738 = vshll.u32 %v1678, 16
        %v2740 = vrot.slane %v2738, 4
        %v2741 = vor.u32 %v2737, %v2740
        %v2742 = vsel %vm1727, %v2741, %v2741
        %v2744 = vshrl.u32 %v1724, 16
        %v2746 = vrot.slane %v2744, 3
        %v2747 = vshll.u32 %v1724, 16
        %v2749 = vrot.slane %v2747, 4
        %v2750 = vor.u32 %v2746, %v2749
        %v2752 = vshrl.u32 %v1726, 16
        %v2754 = vrot.slane %v2752, 3
        %v2755 = vshll.u32 %v1726, 16
        %v2757 = vrot.slane %v2755, 4
        %v2758 = vor.u32 %v2754, %v2757
        %v2759 = vsel %vm1727, %v2750, %v2758
        %v2832 = vld [vmem:[#allocation11] sm:$0xf]
        %v2833 = vld [vmem:[#allocation11 + $0x4] sm:$0xf]
        %v2834 = vld [vmem:[#allocation11 + $0x8] sm:$0xf]
        %v2835 = vld [vmem:[#allocation11 + $0xc] sm:$0xf]
        %v2836 = vld [vmem:[#allocation11 + $0x10] sm:$0xf]
        %v2837 = vld [vmem:[#allocation11 + $0x14] sm:$0xf]
        %v2838 = vld [vmem:[#allocation11 + $0x18] sm:$0xf]
        %v2839 = vld [vmem:[#allocation11 + $0x1c] sm:$0xf]
        %v2840 = vld [vmem:[#allocation11 + $0x20] sm:$0xf]
        %v2841 = vld [vmem:[#allocation11 + $0x24] sm:$0xf]
        %v2842 = vld [vmem:[#allocation11 + $0x28] sm:$0xf]
        %v2843 = vld [vmem:[#allocation11 + $0x2c] sm:$0xf]
        %v2844 = vld [vmem:[#allocation11 + $0x30] sm:$0xf]
        %v2845 = vld [vmem:[#allocation11 + $0x34] sm:$0xf]
        %v2846 = vld [vmem:[#allocation11 + $0x38] sm:$0xf]
        %v2847 = vld [vmem:[#allocation11 + $0x3c] sm:$0xf]
        %v2848 = vld [vmem:[#allocation11 + $0x40] sm:$0xf]
        %v2849 = vld [vmem:[#allocation11 + $0x44] sm:$0xf]
        %v2850 = vld [vmem:[#allocation11 + $0x48] sm:$0xf]
        %v2851 = vld [vmem:[#allocation11 + $0x4c] sm:$0xf]
        %v2852 = vld [vmem:[#allocation11 + $0x50] sm:$0xf]
        %v2853 = vld [vmem:[#allocation11 + $0x54] sm:$0xf]
        %v2854 = vld [vmem:[#allocation11 + $0x58] sm:$0xf]
        %v2855 = vld [vmem:[#allocation11 + $0x5c] sm:$0xf]
        %v2856 = vld [vmem:[#allocation11 + $0x60] sm:$0xf]
        %v2857 = vld [vmem:[#allocation11 + $0x64] sm:$0xf]
        %v2858 = vld [vmem:[#allocation11 + $0x68] sm:$0xf]
        %v2859 = vld [vmem:[#allocation11 + $0x6c] sm:$0xf]
        %v2860 = vld [vmem:[#allocation11 + $0x70] sm:$0xf]
        %v2861 = vld [vmem:[#allocation11 + $0x74] sm:$0xf]
        %v2862 = vld [vmem:[#allocation11 + $0x78] sm:$0xf]
        %v2863 = vld [vmem:[#allocation11 + $0x7c] sm:$0xf]
        %v2864 = vld [vmem:[#allocation11 + $0x80] sm:$0xf]
        %v2865 = vld [vmem:[#allocation11 + $0x84] sm:$0xf]
        %v2866 = vld [vmem:[#allocation11 + $0x88] sm:$0xf]
        %v2867 = vld [vmem:[#allocation11 + $0x8c] sm:$0xf]
        %v2868 = vld [vmem:[#allocation11 + $0x90] sm:$0xf]
        %v2869 = vld [vmem:[#allocation11 + $0x94] sm:$0xf]
        %v2870 = vld [vmem:[#allocation11 + $0x98] sm:$0xf]
        %v2871 = vld [vmem:[#allocation11 + $0x9c] sm:$0xf]
        %v2872 = vld [vmem:[#allocation11 + $0xa0] sm:$0xf]
        %v2873 = vld [vmem:[#allocation11 + $0xa4] sm:$0xf]
        %v2874 = vld [vmem:[#allocation11 + $0xa8] sm:$0xf]
        %v2875 = vld [vmem:[#allocation11 + $0xac] sm:$0xf]
        %v2876 = vld [vmem:[#allocation11 + $0xb0] sm:$0xf]
        %v2877 = vld [vmem:[#allocation11 + $0xb4] sm:$0xf]
        %v2878 = vld [vmem:[#allocation11 + $0xb8] sm:$0xf]
        %v2879 = vld [vmem:[#allocation11 + $0xbc] sm:$0xf]
        %v2880 = vld [vmem:[#allocation11 + $0xc0] sm:$0xf]
        %v2881 = vld [vmem:[#allocation11 + $0xc4] sm:$0xf]
        %v2882 = vld [vmem:[#allocation11 + $0xc8] sm:$0xf]
        %v2883 = vld [vmem:[#allocation11 + $0xcc] sm:$0xf]
        %v2884 = vld [vmem:[#allocation11 + $0xd0] sm:$0xf]
        %v2885 = vld [vmem:[#allocation11 + $0xd4] sm:$0xf]
        %v2886 = vld [vmem:[#allocation11 + $0xd8] sm:$0xf]
        %v2887 = vld [vmem:[#allocation11 + $0xdc] sm:$0xf]
        %v2888 = vld [vmem:[#allocation11 + $0xe0] sm:$0xf]
        %v2889 = vld [vmem:[#allocation11 + $0xe4] sm:$0xf]
        %v2890 = vld [vmem:[#allocation11 + $0xe8] sm:$0xf]
        %v2891 = vld [vmem:[#allocation11 + $0xec] sm:$0xf]
        %v2892 = vld [vmem:[#allocation11 + $0xf0] sm:$0xf]
        %v2893 = vld [vmem:[#allocation11 + $0xf4] sm:$0xf]
        %v2894 = vld [vmem:[#allocation11 + $0xf8] sm:$0xf]
        %v2895 = vld [vmem:[#allocation11 + $0xfc] sm:$0xf]
        %v2896 = vld [vmem:[#allocation11 + $0x100] sm:$0xf]
        %v2897 = vld [vmem:[#allocation11 + $0x104] sm:$0xf]
        %v2898 = vld [vmem:[#allocation11 + $0x108] sm:$0xf]
        %v2899 = vld [vmem:[#allocation11 + $0x10c] sm:$0xf]
        %v2900 = vld [vmem:[#allocation11 + $0x110] sm:$0xf]
        %v2901 = vld [vmem:[#allocation11 + $0x114] sm:$0xf]
        %v2902 = vld [vmem:[#allocation11 + $0x118] sm:$0xf]
        %v2903 = vld [vmem:[#allocation11 + $0x11c] sm:$0xf]
        %v2904 = vld [vmem:[#allocation11 + $0x120] sm:$0xf]
        %v2905 = vld [vmem:[#allocation11 + $0x124] sm:$0xf]
        %v2906 = vld [vmem:[#allocation11 + $0x128] sm:$0xf]
        %v2907 = vld [vmem:[#allocation11 + $0x12c] sm:$0xf]
        %v2908 = vld [vmem:[#allocation11 + $0x130] sm:$0xf]
        %v2909 = vld [vmem:[#allocation11 + $0x134] sm:$0xf]
        %v2910 = vld [vmem:[#allocation11 + $0x138] sm:$0xf]
        %v2911 = vld [vmem:[#allocation11 + $0x13c] sm:$0xf]
        %v2912 = vld [vmem:[#allocation11 + $0x140] sm:$0xf]
        %v2913 = vld [vmem:[#allocation11 + $0x144] sm:$0xf]
        %v2914 = vld [vmem:[#allocation11 + $0x148] sm:$0xf]
        %v2915 = vld [vmem:[#allocation11 + $0x14c] sm:$0xf]
        %v2916 = vld [vmem:[#allocation11 + $0x150] sm:$0xf]
        %v2917 = vld [vmem:[#allocation11 + $0x154] sm:$0xf]
        %v2918 = vld [vmem:[#allocation11 + $0x158] sm:$0xf]
        %v2919 = vld [vmem:[#allocation11 + $0x15c] sm:$0xf]
        %v2920 = vld [vmem:[#allocation11 + $0x160] sm:$0xf]
        %v2921 = vld [vmem:[#allocation11 + $0x164] sm:$0xf]
        %v2922 = vld [vmem:[#allocation11 + $0x168] sm:$0xf]
        %v2923 = vld [vmem:[#allocation11 + $0x16c] sm:$0xf]
        %v2924 = vld [vmem:[#allocation11 + $0x170] sm:$0xf]
        %v2925 = vld [vmem:[#allocation11 + $0x174] sm:$0xf]
        %v2926 = vld [vmem:[#allocation11 + $0x178] sm:$0xf]
        %v2927 = vld [vmem:[#allocation11 + $0x17c] sm:$0xf]
        %v2928 = vld [vmem:[#allocation11 + $0x180] sm:$0xf]
        %v2929 = vld [vmem:[#allocation11 + $0x184] sm:$0xf]
        %v2930 = vld [vmem:[#allocation11 + $0x188] sm:$0xf]
        %v2931 = vld [vmem:[#allocation11 + $0x18c] sm:$0xf]
        %v2932 = vld [vmem:[#allocation11 + $0x190] sm:$0xf]
        %v2933 = vld [vmem:[#allocation11 + $0x194] sm:$0xf]
        %v2934 = vld [vmem:[#allocation11 + $0x198] sm:$0xf]
        %v2935 = vld [vmem:[#allocation11 + $0x19c] sm:$0xf]
        %v2936 = vld [vmem:[#allocation11 + $0x1a0] sm:$0xf]
        %v2937 = vld [vmem:[#allocation11 + $0x1a4] sm:$0xf]
        %v2938 = vld [vmem:[#allocation11 + $0x1a8] sm:$0xf]
        %v2939 = vld [vmem:[#allocation11 + $0x1ac] sm:$0xf]
        %v2940 = vld [vmem:[#allocation11 + $0x1b0] sm:$0xf]
        %v2941 = vld [vmem:[#allocation11 + $0x1b4] sm:$0xf]
        %v2942 = vld [vmem:[#allocation11 + $0x1b8] sm:$0xf]
        %v2943 = vld [vmem:[#allocation11 + $0x1bc] sm:$0xf]
        %v2944 = vld [vmem:[#allocation11 + $0x1c0] sm:$0xf]
        %v2945 = vld [vmem:[#allocation11 + $0x1c4] sm:$0xf]
        %v2946 = vld [vmem:[#allocation11 + $0x1c8] sm:$0xf]
        %v2947 = vld [vmem:[#allocation11 + $0x1cc] sm:$0xf]
        %v2948 = vld [vmem:[#allocation11 + $0x1d0] sm:$0xf]
        %v2949 = vld [vmem:[#allocation11 + $0x1d4] sm:$0xf]
        %v2950 = vld [vmem:[#allocation11 + $0x1d8] sm:$0xf]
        %v2951 = vld [vmem:[#allocation11 + $0x1dc] sm:$0xf]
        %v2952 = vld [vmem:[#allocation11 + $0x1e0] sm:$0xf]
        %v2953 = vld [vmem:[#allocation11 + $0x1e4] sm:$0xf]
        %v2954 = vld [vmem:[#allocation11 + $0x1e8] sm:$0xf]
        %v2955 = vld [vmem:[#allocation11 + $0x1ec] sm:$0xf]
        %v2956 = vld [vmem:[#allocation11 + $0x1f0] sm:$0xf]
        %v2957 = vld [vmem:[#allocation11 + $0x1f4] sm:$0xf]
        %v2958 = vld [vmem:[#allocation11 + $0x1f8] sm:$0xf]
        %v2959 = vld [vmem:[#allocation11 + $0x1fc] sm:$0xf]
        %v2960 = vld [vmem:[#allocation11 + $0x200] sm:$0xf]
        %v2961 = vld [vmem:[#allocation11 + $0x204] sm:$0xf]
        %v2962 = vld [vmem:[#allocation11 + $0x208] sm:$0xf]
        %v2963 = vld [vmem:[#allocation11 + $0x20c] sm:$0xf]
        %v2964 = vld [vmem:[#allocation11 + $0x210] sm:$0xf]
        %v2965 = vld [vmem:[#allocation11 + $0x214] sm:$0xf]
        %v2966 = vld [vmem:[#allocation11 + $0x218] sm:$0xf]
        %v2967 = vld [vmem:[#allocation11 + $0x21c] sm:$0xf]
        %v2968 = vld [vmem:[#allocation11 + $0x220] sm:$0xf]
        %v2969 = vld [vmem:[#allocation11 + $0x224] sm:$0xf]
        %v2970 = vld [vmem:[#allocation11 + $0x228] sm:$0xf]
        %v2971 = vld [vmem:[#allocation11 + $0x22c] sm:$0xf]
        %v2972 = vld [vmem:[#allocation11 + $0x230] sm:$0xf]
        %v2973 = vld [vmem:[#allocation11 + $0x234] sm:$0xf]
        %v2974 = vld [vmem:[#allocation11 + $0x238] sm:$0xf]
        %v2975 = vld [vmem:[#allocation11 + $0x23c] sm:$0xf]
        %v2976 = vld [vmem:[%s6] sm:$0x1]
        %v2978 = vperm.slane %v2976, 0
        %v3124 = vunpack.c.l.b16 %v2832
        %v3125 = vunpack.c.l.b16 %v2833
        %v3126 = vunpack.c.l.b16 %v2834
        %v3127 = vunpack.c.l.b16 %v2835
        %v3128 = vunpack.c.l.b16 %v2836
        %v3129 = vunpack.c.l.b16 %v2837
        %v3130 = vunpack.c.l.b16 %v2838
        %v3131 = vunpack.c.l.b16 %v2839
        %v3132 = vunpack.c.l.b16 %v2840
        %v3133 = vunpack.c.l.b16 %v2841
        %v3134 = vunpack.c.l.b16 %v2842
        %v3135 = vunpack.c.l.b16 %v2843
        %v3136 = vunpack.c.l.b16 %v2844
        %v3137 = vunpack.c.l.b16 %v2845
        %v3138 = vunpack.c.l.b16 %v2846
        %v3139 = vunpack.c.l.b16 %v2847
        %v3140 = vunpack.c.l.b16 %v2848
        %v3141 = vunpack.c.l.b16 %v2849
        %v3142 = vunpack.c.l.b16 %v2850
        %v3143 = vunpack.c.l.b16 %v2851
        %v3144 = vunpack.c.l.b16 %v2852
        %v3145 = vunpack.c.l.b16 %v2853
        %v3146 = vunpack.c.l.b16 %v2854
        %v3147 = vunpack.c.l.b16 %v2855
        %v3148 = vunpack.c.l.b16 %v2856
        %v3149 = vunpack.c.l.b16 %v2857
        %v3150 = vunpack.c.l.b16 %v2858
        %v3151 = vunpack.c.l.b16 %v2859
        %v3152 = vunpack.c.l.b16 %v2860
        %v3153 = vunpack.c.l.b16 %v2861
        %v3154 = vunpack.c.l.b16 %v2862
        %v3155 = vunpack.c.l.b16 %v2863
        %v3156 = vunpack.c.l.b16 %v2864
        %v3157 = vunpack.c.l.b16 %v2865
        %v3158 = vunpack.c.l.b16 %v2866
        %v3159 = vunpack.c.l.b16 %v2867
        %v3160 = vunpack.c.l.b16 %v2868
        %v3161 = vunpack.c.l.b16 %v2869
        %v3162 = vunpack.c.l.b16 %v2870
        %v3163 = vunpack.c.l.b16 %v2871
        %v3164 = vunpack.c.l.b16 %v2872
        %v3165 = vunpack.c.l.b16 %v2873
        %v3166 = vunpack.c.l.b16 %v2874
        %v3167 = vunpack.c.l.b16 %v2875
        %v3168 = vunpack.c.l.b16 %v2876
        %v3169 = vunpack.c.l.b16 %v2877
        %v3170 = vunpack.c.l.b16 %v2878
        %v3171 = vunpack.c.l.b16 %v2879
        %v3172 = vunpack.c.l.b16 %v2880
        %v3173 = vunpack.c.l.b16 %v2881
        %v3174 = vunpack.c.l.b16 %v2882
        %v3175 = vunpack.c.l.b16 %v2883
        %v3176 = vunpack.c.l.b16 %v2884
        %v3177 = vunpack.c.l.b16 %v2885
        %v3178 = vunpack.c.l.b16 %v2886
        %v3179 = vunpack.c.l.b16 %v2887
        %v3180 = vunpack.c.l.b16 %v2888
        %v3181 = vunpack.c.l.b16 %v2889
        %v3182 = vunpack.c.l.b16 %v2890
        %v3183 = vunpack.c.l.b16 %v2891
        %v3184 = vunpack.c.l.b16 %v2892
        %v3185 = vunpack.c.l.b16 %v2893
        %v3186 = vunpack.c.l.b16 %v2894
        %v3187 = vunpack.c.l.b16 %v2895
        %v3188 = vunpack.c.l.b16 %v2896
        %v3189 = vunpack.c.l.b16 %v2897
        %v3190 = vunpack.c.l.b16 %v2898
        %v3191 = vunpack.c.l.b16 %v2899
        %v3192 = vunpack.c.l.b16 %v2900
        %v3193 = vunpack.c.l.b16 %v2901
        %v3194 = vunpack.c.l.b16 %v2902
        %v3195 = vunpack.c.l.b16 %v2903
        %v3196 = vunpack.c.l.b16 %v2904
        %v3197 = vunpack.c.l.b16 %v2905
        %v3198 = vunpack.c.l.b16 %v2906
        %v3199 = vunpack.c.l.b16 %v2907
        %v3200 = vunpack.c.l.b16 %v2908
        %v3201 = vunpack.c.l.b16 %v2909
        %v3202 = vunpack.c.l.b16 %v2910
        %v3203 = vunpack.c.l.b16 %v2911
        %v3204 = vunpack.c.l.b16 %v2912
        %v3205 = vunpack.c.l.b16 %v2913
        %v3206 = vunpack.c.l.b16 %v2914
        %v3207 = vunpack.c.l.b16 %v2915
        %v3208 = vunpack.c.l.b16 %v2916
        %v3209 = vunpack.c.l.b16 %v2917
        %v3210 = vunpack.c.l.b16 %v2918
        %v3211 = vunpack.c.l.b16 %v2919
        %v3212 = vunpack.c.l.b16 %v2920
        %v3213 = vunpack.c.l.b16 %v2921
        %v3214 = vunpack.c.l.b16 %v2922
        %v3215 = vunpack.c.l.b16 %v2923
        %v3216 = vunpack.c.l.b16 %v2924
        %v3217 = vunpack.c.l.b16 %v2925
        %v3218 = vunpack.c.l.b16 %v2926
        %v3219 = vunpack.c.l.b16 %v2927
        %v3220 = vunpack.c.l.b16 %v2928
        %v3221 = vunpack.c.l.b16 %v2929
        %v3222 = vunpack.c.l.b16 %v2930
        %v3223 = vunpack.c.l.b16 %v2931
        %v3224 = vunpack.c.l.b16 %v2932
        %v3225 = vunpack.c.l.b16 %v2933
        %v3226 = vunpack.c.l.b16 %v2934
        %v3227 = vunpack.c.l.b16 %v2935
        %v3228 = vunpack.c.l.b16 %v2936
        %v3229 = vunpack.c.l.b16 %v2937
        %v3230 = vunpack.c.l.b16 %v2938
        %v3231 = vunpack.c.l.b16 %v2939
        %v3232 = vunpack.c.l.b16 %v2940
        %v3233 = vunpack.c.l.b16 %v2941
        %v3234 = vunpack.c.l.b16 %v2942
        %v3235 = vunpack.c.l.b16 %v2943
        %v3236 = vunpack.c.l.b16 %v2944
        %v3237 = vunpack.c.l.b16 %v2945
        %v3238 = vunpack.c.l.b16 %v2946
        %v3239 = vunpack.c.l.b16 %v2947
        %v3240 = vunpack.c.l.b16 %v2948
        %v3241 = vunpack.c.l.b16 %v2949
        %v3242 = vunpack.c.l.b16 %v2950
        %v3243 = vunpack.c.l.b16 %v2951
        %v3244 = vunpack.c.l.b16 %v2952
        %v3245 = vunpack.c.l.b16 %v2953
        %v3246 = vunpack.c.l.b16 %v2954
        %v3247 = vunpack.c.l.b16 %v2955
        %v3248 = vunpack.c.l.b16 %v2956
        %v3249 = vunpack.c.l.b16 %v2957
        %v3250 = vunpack.c.l.b16 %v2958
        %v3251 = vunpack.c.l.b16 %v2959
        %v3252 = vunpack.c.l.b16 %v2960
        %v3253 = vunpack.c.l.b16 %v2961
        %v3254 = vunpack.c.l.b16 %v2962
        %v3255 = vunpack.c.l.b16 %v2963
        %v3256 = vunpack.c.l.b16 %v2964
        %v3257 = vunpack.c.l.b16 %v2965
        %v3258 = vunpack.c.l.b16 %v2966
        %v3259 = vunpack.c.l.b16 %v2967
        %v3260 = vunpack.c.l.b16 %v2968
        %v3261 = vunpack.c.l.b16 %v2969
        %v3262 = vunpack.c.l.b16 %v2970
        %v3263 = vunpack.c.l.b16 %v2971
        %v3264 = vunpack.c.l.b16 %v2972
        %v3265 = vunpack.c.l.b16 %v2973
        %v3266 = vunpack.c.l.b16 %v2974
        %v3267 = vunpack.c.l.b16 %v2975
        %v3268 = vpack.c.b16 %v3125, %v3124
        %v3269 = vpack.c.b16 %v3127, %v3126
        %v3270 = vpack.c.b16 %v3129, %v3128
        %v3271 = vpack.c.b16 %v3131, %v3130
        %v3272 = vpack.c.b16 %v3133, %v3132
        %v3273 = vpack.c.b16 %v3135, %v3134
        %v3274 = vpack.c.b16 %v3137, %v3136
        %v3275 = vpack.c.b16 %v3139, %v3138
        %v3276 = vpack.c.b16 %v3141, %v3140
        %v3277 = vpack.c.b16 %v3143, %v3142
        %v3278 = vpack.c.b16 %v3145, %v3144
        %v3279 = vpack.c.b16 %v3147, %v3146
        %v3280 = vpack.c.b16 %v3149, %v3148
        %v3281 = vpack.c.b16 %v3151, %v3150
        %v3282 = vpack.c.b16 %v3153, %v3152
        %v3283 = vpack.c.b16 %v3155, %v3154
        %v3284 = vpack.c.b16 %v3157, %v3156
        %v3285 = vpack.c.b16 %v3159, %v3158
        %v3286 = vpack.c.b16 %v3161, %v3160
        %v3287 = vpack.c.b16 %v3163, %v3162
        %v3288 = vpack.c.b16 %v3165, %v3164
        %v3289 = vpack.c.b16 %v3167, %v3166
        %v3290 = vpack.c.b16 %v3169, %v3168
        %v3291 = vpack.c.b16 %v3171, %v3170
        %v3292 = vpack.c.b16 %v3173, %v3172
        %v3293 = vpack.c.b16 %v3175, %v3174
        %v3294 = vpack.c.b16 %v3177, %v3176
        %v3295 = vpack.c.b16 %v3179, %v3178
        %v3296 = vpack.c.b16 %v3181, %v3180
        %v3297 = vpack.c.b16 %v3183, %v3182
        %v3298 = vpack.c.b16 %v3185, %v3184
        %v3299 = vpack.c.b16 %v3187, %v3186
        %v3300 = vpack.c.b16 %v3189, %v3188
        %v3301 = vpack.c.b16 %v3191, %v3190
        %v3302 = vpack.c.b16 %v3193, %v3192
        %v3303 = vpack.c.b16 %v3195, %v3194
        %v3304 = vpack.c.b16 %v3197, %v3196
        %v3305 = vpack.c.b16 %v3199, %v3198
        %v3306 = vpack.c.b16 %v3201, %v3200
        %v3307 = vpack.c.b16 %v3203, %v3202
        %v3308 = vpack.c.b16 %v3205, %v3204
        %v3309 = vpack.c.b16 %v3207, %v3206
        %v3310 = vpack.c.b16 %v3209, %v3208
        %v3311 = vpack.c.b16 %v3211, %v3210
        %v3312 = vpack.c.b16 %v3213, %v3212
        %v3313 = vpack.c.b16 %v3215, %v3214
        %v3314 = vpack.c.b16 %v3217, %v3216
        %v3315 = vpack.c.b16 %v3219, %v3218
        %v3316 = vpack.c.b16 %v3221, %v3220
        %v3317 = vpack.c.b16 %v3223, %v3222
        %v3318 = vpack.c.b16 %v3225, %v3224
        %v3319 = vpack.c.b16 %v3227, %v3226
        %v3320 = vpack.c.b16 %v3229, %v3228
        %v3321 = vpack.c.b16 %v3231, %v3230
        %v3322 = vpack.c.b16 %v3233, %v3232
        %v3323 = vpack.c.b16 %v3235, %v3234
        %v3324 = vpack.c.b16 %v3237, %v3236
        %v3325 = vpack.c.b16 %v3239, %v3238
        %v3326 = vpack.c.b16 %v3241, %v3240
        %v3327 = vpack.c.b16 %v3243, %v3242
        %v3328 = vpack.c.b16 %v3245, %v3244
        %v3329 = vpack.c.b16 %v3247, %v3246
        %v3330 = vpack.c.b16 %v3249, %v3248
        %v3331 = vpack.c.b16 %v3251, %v3250
        %v3332 = vpack.c.b16 %v3253, %v3252
        %v3333 = vpack.c.b16 %v3255, %v3254
        %v3334 = vpack.c.b16 %v3257, %v3256
        %v3335 = vpack.c.b16 %v3259, %v3258
        %v3336 = vpack.c.b16 %v3261, %v3260
        %v3337 = vpack.c.b16 %v3263, %v3262
        %v3338 = vpack.c.b16 %v3265, %v3264
        %v3339 = vpack.c.b16 %v3267, %v3266
        %3412 = vmatpush.bf16.msra.mxu0 %v3275
        %3413 = vmatpush.bf16.msra.mxu0 %v3274
        %3414 = vmatpush.bf16.msra.mxu0 %v3273
        %3415 = vmatpush.bf16.msra.mxu0 %v3272
        %3416 = vmatpush.bf16.msra.mxu0 %v3271
        %3417 = vmatpush.bf16.msra.mxu0 %v3270
        %3418 = vmatpush.bf16.msra.mxu0 %v3269
        %3419 = vmatpush.bf16.msra.mxu0 %v3268
        %3420 = vmatmul.bf16.gmra.mxu0 %v1744
        %v3421 = vpop.f32.mrf.mxu0
        %v3422 = vadd.f32 %v2978, %v3421
        %v3423 = vpop.f32.mrf.mxu0
        %v3424 = vadd.f32 %v2978, %v3423
        %3425 = vmatmul.bf16.gmra.mxu0 %v1873
        %v3426 = vpop.f32.mrf.mxu0
        %v3427 = vadd.f32 %v2978, %v3426
        %v3428 = vpop.f32.mrf.mxu0
        %v3429 = vadd.f32 %v2978, %v3428
        %3430 = vmatmul.bf16.gmra.mxu0 %v2002
        %v3431 = vpop.f32.mrf.mxu0
        %v3432 = vadd.f32 %v2978, %v3431
        %v3433 = vpop.f32.mrf.mxu0
        %v3434 = vadd.f32 %v2978, %v3433
        %3435 = vmatmul.bf16.gmra.mxu0 %v2131
        %v3436 = vpop.f32.mrf.mxu0
        %v3437 = vadd.f32 %v2978, %v3436
        %v3438 = vpop.f32.mrf.mxu0
        %v3439 = vadd.f32 %v2978, %v3438
        %3440 = vmatmul.bf16.gmra.mxu0 %v2260
        %v3441 = vpop.f32.mrf.mxu0
        %v3442 = vadd.f32 %v2978, %v3441
        %v3443 = vpop.f32.mrf.mxu0
        %v3444 = vadd.f32 %v2978, %v3443
        %3445 = vmatmul.bf16.gmra.mxu0 %v2389
        %v3446 = vpop.f32.mrf.mxu0
        %v3447 = vadd.f32 %v2978, %v3446
        %v3448 = vpop.f32.mrf.mxu0
        %v3449 = vadd.f32 %v2978, %v3448
        %3450 = vmatmul.bf16.gmra.mxu0 %v2518
        %v3451 = vpop.f32.mrf.mxu0
        %v3452 = vadd.f32 %v2978, %v3451
        %v3453 = vpop.f32.mrf.mxu0
        %v3454 = vadd.f32 %v2978, %v3453
        %3455 = vmatmul.bf16.gmra.mxu0 %v2647
        %v3456 = vpop.f32.mrf.mxu0
        %v3457 = vadd.f32 %v2978, %v3456
        %v3458 = vpop.f32.mrf.mxu0
        %v3459 = vadd.f32 %v2978, %v3458
        %3460 = vdwg.mxu0
        %3461 = vmatpush.bf16.msra.mxu0 %v3283
        %3462 = vmatpush.bf16.msra.mxu0 %v3282
        %3463 = vmatpush.bf16.msra.mxu0 %v3281
        %3464 = vmatpush.bf16.msra.mxu0 %v3280
        %3465 = vmatpush.bf16.msra.mxu0 %v3279
        %3466 = vmatpush.bf16.msra.mxu0 %v3278
        %3467 = vmatpush.bf16.msra.mxu0 %v3277
        %3468 = vmatpush.bf16.msra.mxu0 %v3276
        %3469 = vmatmul.bf16.gmra.mxu0 %v1753
        %v3470 = vpop.f32.mrf.mxu0
        %v3471 = vadd.f32 %v3422, %v3470
        %v3472 = vpop.f32.mrf.mxu0
        %v3473 = vadd.f32 %v3424, %v3472
        %3474 = vmatmul.bf16.gmra.mxu0 %v1882
        %v3475 = vpop.f32.mrf.mxu0
        %v3476 = vadd.f32 %v3427, %v3475
        %v3477 = vpop.f32.mrf.mxu0
        %v3478 = vadd.f32 %v3429, %v3477
        %3479 = vmatmul.bf16.gmra.mxu0 %v2011
        %v3480 = vpop.f32.mrf.mxu0
        %v3481 = vadd.f32 %v3432, %v3480
        %v3482 = vpop.f32.mrf.mxu0
        %v3483 = vadd.f32 %v3434, %v3482
        %3484 = vmatmul.bf16.gmra.mxu0 %v2140
        %v3485 = vpop.f32.mrf.mxu0
        %v3486 = vadd.f32 %v3437, %v3485
        %v3487 = vpop.f32.mrf.mxu0
        %v3488 = vadd.f32 %v3439, %v3487
        %3489 = vmatmul.bf16.gmra.mxu0 %v2269
        %v3490 = vpop.f32.mrf.mxu0
        %v3491 = vadd.f32 %v3442, %v3490
        %v3492 = vpop.f32.mrf.mxu0
        %v3493 = vadd.f32 %v3444, %v3492
        %3494 = vmatmul.bf16.gmra.mxu0 %v2398
        %v3495 = vpop.f32.mrf.mxu0
        %v3496 = vadd.f32 %v3447, %v3495
        %v3497 = vpop.f32.mrf.mxu0
        %v3498 = vadd.f32 %v3449, %v3497
        %3499 = vmatmul.bf16.gmra.mxu0 %v2527
        %v3500 = vpop.f32.mrf.mxu0
        %v3501 = vadd.f32 %v3452, %v3500
        %v3502 = vpop.f32.mrf.mxu0
        %v3503 = vadd.f32 %v3454, %v3502
        %3504 = vmatmul.bf16.gmra.mxu0 %v2656
        %v3505 = vpop.f32.mrf.mxu0
        %v3506 = vadd.f32 %v3457, %v3505
        %v3507 = vpop.f32.mrf.mxu0
        %v3508 = vadd.f32 %v3459, %v3507
        %3509 = vdwg.mxu0
        %3510 = vmatpush.bf16.msra.mxu0 %v3291
        %3511 = vmatpush.bf16.msra.mxu0 %v3290
        %3512 = vmatpush.bf16.msra.mxu0 %v3289
        %3513 = vmatpush.bf16.msra.mxu0 %v3288
        %3514 = vmatpush.bf16.msra.mxu0 %v3287
        %3515 = vmatpush.bf16.msra.mxu0 %v3286
        %3516 = vmatpush.bf16.msra.mxu0 %v3285
        %3517 = vmatpush.bf16.msra.mxu0 %v3284
        %3518 = vmatmul.bf16.gmra.mxu0 %v1770
        %v3519 = vpop.f32.mrf.mxu0
        %v3520 = vadd.f32 %v3471, %v3519
        %v3521 = vpop.f32.mrf.mxu0
        %v3522 = vadd.f32 %v3473, %v3521
        %3523 = vmatmul.bf16.gmra.mxu0 %v1899
        %v3524 = vpop.f32.mrf.mxu0
        %v3525 = vadd.f32 %v3476, %v3524
        %v3526 = vpop.f32.mrf.mxu0
        %v3527 = vadd.f32 %v3478, %v3526
        %3528 = vmatmul.bf16.gmra.mxu0 %v2028
        %v3529 = vpop.f32.mrf.mxu0
        %v3530 = vadd.f32 %v3481, %v3529
        %v3531 = vpop.f32.mrf.mxu0
        %v3532 = vadd.f32 %v3483, %v3531
        %3533 = vmatmul.bf16.gmra.mxu0 %v2157
        %v3534 = vpop.f32.mrf.mxu0
        %v3535 = vadd.f32 %v3486, %v3534
        %v3536 = vpop.f32.mrf.mxu0
        %v3537 = vadd.f32 %v3488, %v3536
        %3538 = vmatmul.bf16.gmra.mxu0 %v2286
        %v3539 = vpop.f32.mrf.mxu0
        %v3540 = vadd.f32 %v3491, %v3539
        %v3541 = vpop.f32.mrf.mxu0
        %v3542 = vadd.f32 %v3493, %v3541
        %3543 = vmatmul.bf16.gmra.mxu0 %v2415
        %v3544 = vpop.f32.mrf.mxu0
        %v3545 = vadd.f32 %v3496, %v3544
        %v3546 = vpop.f32.mrf.mxu0
        %v3547 = vadd.f32 %v3498, %v3546
        %3548 = vmatmul.bf16.gmra.mxu0 %v2544
        %v3549 = vpop.f32.mrf.mxu0
        %v3550 = vadd.f32 %v3501, %v3549
        %v3551 = vpop.f32.mrf.mxu0
        %v3552 = vadd.f32 %v3503, %v3551
        %3553 = vmatmul.bf16.gmra.mxu0 %v2673
        %v3554 = vpop.f32.mrf.mxu0
        %v3555 = vadd.f32 %v3506, %v3554
        %v3556 = vpop.f32.mrf.mxu0
        %v3557 = vadd.f32 %v3508, %v3556
        %3558 = vdwg.mxu0
        %3559 = vmatpush.bf16.msra.mxu0 %v3299
        %3560 = vmatpush.bf16.msra.mxu0 %v3298
        %3561 = vmatpush.bf16.msra.mxu0 %v3297
        %3562 = vmatpush.bf16.msra.mxu0 %v3296
        %3563 = vmatpush.bf16.msra.mxu0 %v3295
        %3564 = vmatpush.bf16.msra.mxu0 %v3294
        %3565 = vmatpush.bf16.msra.mxu0 %v3293
        %3566 = vmatpush.bf16.msra.mxu0 %v3292
        %3567 = vmatmul.bf16.gmra.mxu0 %v1787
        %v3568 = vpop.f32.mrf.mxu0
        %v3569 = vadd.f32 %v3520, %v3568
        %v3570 = vpop.f32.mrf.mxu0
        %v3571 = vadd.f32 %v3522, %v3570
        %3572 = vmatmul.bf16.gmra.mxu0 %v1916
        %v3573 = vpop.f32.mrf.mxu0
        %v3574 = vadd.f32 %v3525, %v3573
        %v3575 = vpop.f32.mrf.mxu0
        %v3576 = vadd.f32 %v3527, %v3575
        %3577 = vmatmul.bf16.gmra.mxu0 %v2045
        %v3578 = vpop.f32.mrf.mxu0
        %v3579 = vadd.f32 %v3530, %v3578
        %v3580 = vpop.f32.mrf.mxu0
        %v3581 = vadd.f32 %v3532, %v3580
        %3582 = vmatmul.bf16.gmra.mxu0 %v2174
        %v3583 = vpop.f32.mrf.mxu0
        %v3584 = vadd.f32 %v3535, %v3583
        %v3585 = vpop.f32.mrf.mxu0
        %v3586 = vadd.f32 %v3537, %v3585
        %3587 = vmatmul.bf16.gmra.mxu0 %v2303
        %v3588 = vpop.f32.mrf.mxu0
        %v3589 = vadd.f32 %v3540, %v3588
        %v3590 = vpop.f32.mrf.mxu0
        %v3591 = vadd.f32 %v3542, %v3590
        %3592 = vmatmul.bf16.gmra.mxu0 %v2432
        %v3593 = vpop.f32.mrf.mxu0
        %v3594 = vadd.f32 %v3545, %v3593
        %v3595 = vpop.f32.mrf.mxu0
        %v3596 = vadd.f32 %v3547, %v3595
        %3597 = vmatmul.bf16.gmra.mxu0 %v2561
        %v3598 = vpop.f32.mrf.mxu0
        %v3599 = vadd.f32 %v3550, %v3598
        %v3600 = vpop.f32.mrf.mxu0
        %v3601 = vadd.f32 %v3552, %v3600
        %3602 = vmatmul.bf16.gmra.mxu0 %v2690
        %v3603 = vpop.f32.mrf.mxu0
        %v3604 = vadd.f32 %v3555, %v3603
        %v3605 = vpop.f32.mrf.mxu0
        %v3606 = vadd.f32 %v3557, %v3605
        %3607 = vdwg.mxu0
        %3608 = vmatpush.bf16.msra.mxu0 %v3307
        %3609 = vmatpush.bf16.msra.mxu0 %v3306
        %3610 = vmatpush.bf16.msra.mxu0 %v3305
        %3611 = vmatpush.bf16.msra.mxu0 %v3304
        %3612 = vmatpush.bf16.msra.mxu0 %v3303
        %3613 = vmatpush.bf16.msra.mxu0 %v3302
        %3614 = vmatpush.bf16.msra.mxu0 %v3301
        %3615 = vmatpush.bf16.msra.mxu0 %v3300
        %3616 = vmatmul.bf16.gmra.mxu0 %v1796
        %v3617 = vpop.f32.mrf.mxu0
        %v3618 = vadd.f32 %v3569, %v3617
        %v3619 = vpop.f32.mrf.mxu0
        %v3620 = vadd.f32 %v3571, %v3619
        %3621 = vmatmul.bf16.gmra.mxu0 %v1925
        %v3622 = vpop.f32.mrf.mxu0
        %v3623 = vadd.f32 %v3574, %v3622
        %v3624 = vpop.f32.mrf.mxu0
        %v3625 = vadd.f32 %v3576, %v3624
        %3626 = vmatmul.bf16.gmra.mxu0 %v2054
        %v3627 = vpop.f32.mrf.mxu0
        %v3628 = vadd.f32 %v3579, %v3627
        %v3629 = vpop.f32.mrf.mxu0
        %v3630 = vadd.f32 %v3581, %v3629
        %3631 = vmatmul.bf16.gmra.mxu0 %v2183
        %v3632 = vpop.f32.mrf.mxu0
        %v3633 = vadd.f32 %v3584, %v3632
        %v3634 = vpop.f32.mrf.mxu0
        %v3635 = vadd.f32 %v3586, %v3634
        %3636 = vmatmul.bf16.gmra.mxu0 %v2312
        %v3637 = vpop.f32.mrf.mxu0
        %v3638 = vadd.f32 %v3589, %v3637
        %v3639 = vpop.f32.mrf.mxu0
        %v3640 = vadd.f32 %v3591, %v3639
        %3641 = vmatmul.bf16.gmra.mxu0 %v2441
        %v3642 = vpop.f32.mrf.mxu0
        %v3643 = vadd.f32 %v3594, %v3642
        %v3644 = vpop.f32.mrf.mxu0
        %v3645 = vadd.f32 %v3596, %v3644
        %3646 = vmatmul.bf16.gmra.mxu0 %v2570
        %v3647 = vpop.f32.mrf.mxu0
        %v3648 = vadd.f32 %v3599, %v3647
        %v3649 = vpop.f32.mrf.mxu0
        %v3650 = vadd.f32 %v3601, %v3649
        %3651 = vmatmul.bf16.gmra.mxu0 %v2699
        %v3652 = vpop.f32.mrf.mxu0
        %v3653 = vadd.f32 %v3604, %v3652
        %v3654 = vpop.f32.mrf.mxu0
        %v3655 = vadd.f32 %v3606, %v3654
        %3656 = vdwg.mxu0
        %3657 = vmatpush.bf16.msra.mxu0 %v3315
        %3658 = vmatpush.bf16.msra.mxu0 %v3314
        %3659 = vmatpush.bf16.msra.mxu0 %v3313
        %3660 = vmatpush.bf16.msra.mxu0 %v3312
        %3661 = vmatpush.bf16.msra.mxu0 %v3311
        %3662 = vmatpush.bf16.msra.mxu0 %v3310
        %3663 = vmatpush.bf16.msra.mxu0 %v3309
        %3664 = vmatpush.bf16.msra.mxu0 %v3308
        %3665 = vmatmul.bf16.gmra.mxu0 %v1813
        %v3666 = vpop.f32.mrf.mxu0
        %v3667 = vadd.f32 %v3618, %v3666
        %v3668 = vpop.f32.mrf.mxu0
        %v3669 = vadd.f32 %v3620, %v3668
        %3670 = vmatmul.bf16.gmra.mxu0 %v1942
        %v3671 = vpop.f32.mrf.mxu0
        %v3672 = vadd.f32 %v3623, %v3671
        %v3673 = vpop.f32.mrf.mxu0
        %v3674 = vadd.f32 %v3625, %v3673
        %3675 = vmatmul.bf16.gmra.mxu0 %v2071
        %v3676 = vpop.f32.mrf.mxu0
        %v3677 = vadd.f32 %v3628, %v3676
        %v3678 = vpop.f32.mrf.mxu0
        %v3679 = vadd.f32 %v3630, %v3678
        %3680 = vmatmul.bf16.gmra.mxu0 %v2200
        %v3681 = vpop.f32.mrf.mxu0
        %v3682 = vadd.f32 %v3633, %v3681
        %v3683 = vpop.f32.mrf.mxu0
        %v3684 = vadd.f32 %v3635, %v3683
        %3685 = vmatmul.bf16.gmra.mxu0 %v2329
        %v3686 = vpop.f32.mrf.mxu0
        %v3687 = vadd.f32 %v3638, %v3686
        %v3688 = vpop.f32.mrf.mxu0
        %v3689 = vadd.f32 %v3640, %v3688
        %3690 = vmatmul.bf16.gmra.mxu0 %v2458
        %v3691 = vpop.f32.mrf.mxu0
        %v3692 = vadd.f32 %v3643, %v3691
        %v3693 = vpop.f32.mrf.mxu0
        %v3694 = vadd.f32 %v3645, %v3693
        %3695 = vmatmul.bf16.gmra.mxu0 %v2587
        %v3696 = vpop.f32.mrf.mxu0
        %v3697 = vadd.f32 %v3648, %v3696
        %v3698 = vpop.f32.mrf.mxu0
        %v3699 = vadd.f32 %v3650, %v3698
        %3700 = vmatmul.bf16.gmra.mxu0 %v2716
        %v3701 = vpop.f32.mrf.mxu0
        %v3702 = vadd.f32 %v3653, %v3701
        %v3703 = vpop.f32.mrf.mxu0
        %v3704 = vadd.f32 %v3655, %v3703
        %3705 = vdwg.mxu0
        %3706 = vmatpush.bf16.msra.mxu0 %v3323
        %3707 = vmatpush.bf16.msra.mxu0 %v3322
        %3708 = vmatpush.bf16.msra.mxu0 %v3321
        %3709 = vmatpush.bf16.msra.mxu0 %v3320
        %3710 = vmatpush.bf16.msra.mxu0 %v3319
        %3711 = vmatpush.bf16.msra.mxu0 %v3318
        %3712 = vmatpush.bf16.msra.mxu0 %v3317
        %3713 = vmatpush.bf16.msra.mxu0 %v3316
        %3714 = vmatmul.bf16.gmra.mxu0 %v1830
        %v3715 = vpop.f32.mrf.mxu0
        %v3716 = vadd.f32 %v3667, %v3715
        %v3717 = vpop.f32.mrf.mxu0
        %v3718 = vadd.f32 %v3669, %v3717
        %3719 = vmatmul.bf16.gmra.mxu0 %v1959
        %v3720 = vpop.f32.mrf.mxu0
        %v3721 = vadd.f32 %v3672, %v3720
        %v3722 = vpop.f32.mrf.mxu0
        %v3723 = vadd.f32 %v3674, %v3722
        %3724 = vmatmul.bf16.gmra.mxu0 %v2088
        %v3725 = vpop.f32.mrf.mxu0
        %v3726 = vadd.f32 %v3677, %v3725
        %v3727 = vpop.f32.mrf.mxu0
        %v3728 = vadd.f32 %v3679, %v3727
        %3729 = vmatmul.bf16.gmra.mxu0 %v2217
        %v3730 = vpop.f32.mrf.mxu0
        %v3731 = vadd.f32 %v3682, %v3730
        %v3732 = vpop.f32.mrf.mxu0
        %v3733 = vadd.f32 %v3684, %v3732
        %3734 = vmatmul.bf16.gmra.mxu0 %v2346
        %v3735 = vpop.f32.mrf.mxu0
        %v3736 = vadd.f32 %v3687, %v3735
        %v3737 = vpop.f32.mrf.mxu0
        %v3738 = vadd.f32 %v3689, %v3737
        %3739 = vmatmul.bf16.gmra.mxu0 %v2475
        %v3740 = vpop.f32.mrf.mxu0
        %v3741 = vadd.f32 %v3692, %v3740
        %v3742 = vpop.f32.mrf.mxu0
        %v3743 = vadd.f32 %v3694, %v3742
        %3744 = vmatmul.bf16.gmra.mxu0 %v2604
        %v3745 = vpop.f32.mrf.mxu0
        %v3746 = vadd.f32 %v3697, %v3745
        %v3747 = vpop.f32.mrf.mxu0
        %v3748 = vadd.f32 %v3699, %v3747
        %3749 = vmatmul.bf16.gmra.mxu0 %v2733
        %v3750 = vpop.f32.mrf.mxu0
        %v3751 = vadd.f32 %v3702, %v3750
        %v3752 = vpop.f32.mrf.mxu0
        %v3753 = vadd.f32 %v3704, %v3752
        %3754 = vdwg.mxu0
        %3755 = vmatpush.bf16.msra.mxu0 %v3331
        %3756 = vmatpush.bf16.msra.mxu0 %v3330
        %3757 = vmatpush.bf16.msra.mxu0 %v3329
        %3758 = vmatpush.bf16.msra.mxu0 %v3328
        %3759 = vmatpush.bf16.msra.mxu0 %v3327
        %3760 = vmatpush.bf16.msra.mxu0 %v3326
        %3761 = vmatpush.bf16.msra.mxu0 %v3325
        %3762 = vmatpush.bf16.msra.mxu0 %v3324
        %3763 = vmatmul.bf16.gmra.mxu0 %v1839
        %v3764 = vpop.f32.mrf.mxu0
        %v3765 = vadd.f32 %v3716, %v3764
        %v3766 = vpop.f32.mrf.mxu0
        %v3767 = vadd.f32 %v3718, %v3766
        %3768 = vmatmul.bf16.gmra.mxu0 %v1968
        %v3769 = vpop.f32.mrf.mxu0
        %v3770 = vadd.f32 %v3721, %v3769
        %v3771 = vpop.f32.mrf.mxu0
        %v3772 = vadd.f32 %v3723, %v3771
        %3773 = vmatmul.bf16.gmra.mxu0 %v2097
        %v3774 = vpop.f32.mrf.mxu0
        %v3775 = vadd.f32 %v3726, %v3774
        %v3776 = vpop.f32.mrf.mxu0
        %v3777 = vadd.f32 %v3728, %v3776
        %3778 = vmatmul.bf16.gmra.mxu0 %v2226
        %v3779 = vpop.f32.mrf.mxu0
        %v3780 = vadd.f32 %v3731, %v3779
        %v3781 = vpop.f32.mrf.mxu0
        %v3782 = vadd.f32 %v3733, %v3781
        %3783 = vmatmul.bf16.gmra.mxu0 %v2355
        %v3784 = vpop.f32.mrf.mxu0
        %v3785 = vadd.f32 %v3736, %v3784
        %v3786 = vpop.f32.mrf.mxu0
        %v3787 = vadd.f32 %v3738, %v3786
        %3788 = vmatmul.bf16.gmra.mxu0 %v2484
        %v3789 = vpop.f32.mrf.mxu0
        %v3790 = vadd.f32 %v3741, %v3789
        %v3791 = vpop.f32.mrf.mxu0
        %v3792 = vadd.f32 %v3743, %v3791
        %3793 = vmatmul.bf16.gmra.mxu0 %v2613
        %v3794 = vpop.f32.mrf.mxu0
        %v3795 = vadd.f32 %v3746, %v3794
        %v3796 = vpop.f32.mrf.mxu0
        %v3797 = vadd.f32 %v3748, %v3796
        %3798 = vmatmul.bf16.gmra.mxu0 %v2742
        %v3799 = vpop.f32.mrf.mxu0
        %v3800 = vadd.f32 %v3751, %v3799
        %v3801 = vpop.f32.mrf.mxu0
        %v3802 = vadd.f32 %v3753, %v3801
        %3803 = vdwg.mxu0
        %3804 = vmatpush.bf16.msra.mxu0 %v3339
        %3805 = vmatpush.bf16.msra.mxu0 %v3338
        %3806 = vmatpush.bf16.msra.mxu0 %v3337
        %3807 = vmatpush.bf16.msra.mxu0 %v3336
        %3808 = vmatpush.bf16.msra.mxu0 %v3335
        %3809 = vmatpush.bf16.msra.mxu0 %v3334
        %3810 = vmatpush.bf16.msra.mxu0 %v3333
        %3811 = vmatpush.bf16.msra.mxu0 %v3332
        %3812 = vmatmul.bf16.gmra.mxu0 %v1856
        %v3813 = vpop.f32.mrf.mxu0
        %v3814 = vadd.f32 %v3765, %v3813
        %v3815 = vpop.f32.mrf.mxu0
        %v3816 = vadd.f32 %v3767, %v3815
        %3817 = vmatmul.bf16.gmra.mxu0 %v1985
        %v3818 = vpop.f32.mrf.mxu0
        %v3819 = vadd.f32 %v3770, %v3818
        %v3820 = vpop.f32.mrf.mxu0
        %v3821 = vadd.f32 %v3772, %v3820
        %3822 = vmatmul.bf16.gmra.mxu0 %v2114
        %v3823 = vpop.f32.mrf.mxu0
        %v3824 = vadd.f32 %v3775, %v3823
        %v3825 = vpop.f32.mrf.mxu0
        %v3826 = vadd.f32 %v3777, %v3825
        %3827 = vmatmul.bf16.gmra.mxu0 %v2243
        %v3828 = vpop.f32.mrf.mxu0
        %v3829 = vadd.f32 %v3780, %v3828
        %v3830 = vpop.f32.mrf.mxu0
        %v3831 = vadd.f32 %v3782, %v3830
        %3832 = vmatmul.bf16.gmra.mxu0 %v2372
        %v3833 = vpop.f32.mrf.mxu0
        %v3834 = vadd.f32 %v3785, %v3833
        %v3835 = vpop.f32.mrf.mxu0
        %v3836 = vadd.f32 %v3787, %v3835
        %3837 = vmatmul.bf16.gmra.mxu0 %v2501
        %v3838 = vpop.f32.mrf.mxu0
        %v3839 = vadd.f32 %v3790, %v3838
        %v3840 = vpop.f32.mrf.mxu0
        %v3841 = vadd.f32 %v3792, %v3840
        %3842 = vmatmul.bf16.gmra.mxu0 %v2630
        %v3843 = vpop.f32.mrf.mxu0
        %v3844 = vadd.f32 %v3795, %v3843
        %v3845 = vpop.f32.mrf.mxu0
        %v3846 = vadd.f32 %v3797, %v3845
        %3847 = vmatmul.bf16.gmra.mxu0 %v2759
        %v3848 = vpop.f32.mrf.mxu0
        %v3849 = vadd.f32 %v3800, %v3848
        %v3850 = vpop.f32.mrf.mxu0
        %v3851 = vadd.f32 %v3802, %v3850
        %3852 = vdwg.mxu0
        %v3853 = vmax.f32 %v3814, 0.0
        %v3854 = vmax.f32 %v3816, 0.0
        %v3855 = vmax.f32 %v3819, 0.0
        %v3856 = vmax.f32 %v3821, 0.0
        %v3857 = vmax.f32 %v3824, 0.0
        %v3858 = vmax.f32 %v3826, 0.0
        %v3859 = vmax.f32 %v3829, 0.0
        %v3860 = vmax.f32 %v3831, 0.0
        %v3861 = vmax.f32 %v3834, 0.0
        %v3862 = vmax.f32 %v3836, 0.0
        %v3863 = vmax.f32 %v3839, 0.0
        %v3864 = vmax.f32 %v3841, 0.0
        %v3865 = vmax.f32 %v3844, 0.0
        %v3866 = vmax.f32 %v3846, 0.0
        %v3867 = vmax.f32 %v3849, 0.0
        %v3868 = vmax.f32 %v3851, 0.0
        %v3869 = vpack.c.bf16 %v3854, %v3853
        %v3870 = vpack.c.bf16 %v3856, %v3855
        %v3871 = vpack.c.bf16 %v3858, %v3857
        %v3872 = vpack.c.bf16 %v3860, %v3859
        %v3873 = vpack.c.bf16 %v3862, %v3861
        %v3874 = vpack.c.bf16 %v3864, %v3863
        %v3875 = vpack.c.bf16 %v3866, %v3865
        %v3876 = vpack.c.bf16 %v3868, %v3867
        %v3877 = vld [vmem:[%s454] sm:$0xff]
        %v3878 = vld [vmem:[%s454 + $0x8] sm:$0xff]
        %v3879 = vld [vmem:[%s454 + $0x10] sm:$0xff]
        %v3880 = vld [vmem:[%s454 + $0x18] sm:$0xff]
        %v3881 = vld [vmem:[%s454 + $0x20] sm:$0xff]
        %v3882 = vld [vmem:[%s454 + $0x28] sm:$0xff]
        %v3883 = vld [vmem:[%s454 + $0x30] sm:$0xff]
        %v3884 = vld [vmem:[%s454 + $0x38] sm:$0xff]
        %v3885 = vld [vmem:[%s454 + $0x40] sm:$0xff]
        %v3886 = vld [vmem:[%s454 + $0x48] sm:$0xff]
        %v3887 = vld [vmem:[%s454 + $0x50] sm:$0xff]
        %v3888 = vld [vmem:[%s454 + $0x58] sm:$0xff]
        %v3889 = vld [vmem:[%s454 + $0x60] sm:$0xff]
        %v3890 = vld [vmem:[%s454 + $0x68] sm:$0xff]
        %v3891 = vld [vmem:[%s454 + $0x70] sm:$0xff]
        %v3892 = vld [vmem:[%s454 + $0x78] sm:$0xff]
        %v3893 = vld [vmem:[#allocation12] sm:$0xf]
        %v3894 = vld [vmem:[#allocation12 + $0x4] sm:$0xf]
        %v3895 = vld [vmem:[#allocation12 + $0x8] sm:$0xf]
        %v3896 = vld [vmem:[#allocation12 + $0xc] sm:$0xf]
        %v3897 = vld [vmem:[#allocation12 + $0x10] sm:$0xf]
        %v3898 = vld [vmem:[#allocation12 + $0x14] sm:$0xf]
        %v3899 = vld [vmem:[#allocation12 + $0x18] sm:$0xf]
        %v3900 = vld [vmem:[#allocation12 + $0x1c] sm:$0xf]
        %v3901 = vld [vmem:[#allocation12 + $0x20] sm:$0xf]
        %v3902 = vld [vmem:[#allocation12 + $0x24] sm:$0xf]
        %v3903 = vld [vmem:[#allocation12 + $0x28] sm:$0xf]
        %v3904 = vld [vmem:[#allocation12 + $0x2c] sm:$0xf]
        %v3905 = vld [vmem:[#allocation12 + $0x30] sm:$0xf]
        %v3906 = vld [vmem:[#allocation12 + $0x34] sm:$0xf]
        %v3907 = vld [vmem:[#allocation12 + $0x38] sm:$0xf]
        %v3908 = vld [vmem:[#allocation12 + $0x3c] sm:$0xf]
        %v3909 = vld [vmem:[%s8] sm:$0x1]
        %v3911 = vperm.slane %v3909, 0
        %v3929 = vunpack.c.l.b16 %v3893
        %v3930 = vunpack.c.l.b16 %v3894
        %v3931 = vunpack.c.l.b16 %v3895
        %v3932 = vunpack.c.l.b16 %v3896
        %v3933 = vunpack.c.l.b16 %v3897
        %v3934 = vunpack.c.l.b16 %v3898
        %v3935 = vunpack.c.l.b16 %v3899
        %v3936 = vunpack.c.l.b16 %v3900
        %v3937 = vunpack.c.l.b16 %v3901
        %v3938 = vunpack.c.l.b16 %v3902
        %v3939 = vunpack.c.l.b16 %v3903
        %v3940 = vunpack.c.l.b16 %v3904
        %v3941 = vunpack.c.l.b16 %v3905
        %v3942 = vunpack.c.l.b16 %v3906
        %v3943 = vunpack.c.l.b16 %v3907
        %v3944 = vunpack.c.l.b16 %v3908
        %v3945 = vpack.c.b16 %v3930, %v3929
        %v3946 = vpack.c.b16 %v3932, %v3931
        %v3947 = vpack.c.b16 %v3934, %v3933
        %v3948 = vpack.c.b16 %v3936, %v3935
        %v3949 = vpack.c.b16 %v3938, %v3937
        %v3950 = vpack.c.b16 %v3940, %v3939
        %v3951 = vpack.c.b16 %v3942, %v3941
        %v3952 = vpack.c.b16 %v3944, %v3943
        %3961 = vmatpush.bf16.msra.mxu0 %v3952
        %3962 = vmatpush.bf16.msra.mxu0 %v3951
        %3963 = vmatpush.bf16.msra.mxu0 %v3950
        %3964 = vmatpush.bf16.msra.mxu0 %v3949
        %3965 = vmatpush.bf16.msra.mxu0 %v3948
        %3966 = vmatpush.bf16.msra.mxu0 %v3947
        %3967 = vmatpush.bf16.msra.mxu0 %v3946
        %3968 = vmatpush.bf16.msra.mxu0 %v3945
        %3969 = vmatmul.bf16.gmra.mxu0 %v3869
        %v3970 = vpop.f32.mrf.mxu0
        %v3971 = vadd.f32 %v3911, %v3970
        %v3972 = vpop.f32.mrf.mxu0
        %v3973 = vadd.f32 %v3911, %v3972
        %3974 = vmatmul.bf16.gmra.mxu0 %v3870
        %v3975 = vpop.f32.mrf.mxu0
        %v3976 = vadd.f32 %v3911, %v3975
        %v3977 = vpop.f32.mrf.mxu0
        %v3978 = vadd.f32 %v3911, %v3977
        %3979 = vmatmul.bf16.gmra.mxu0 %v3871
        %v3980 = vpop.f32.mrf.mxu0
        %v3981 = vadd.f32 %v3911, %v3980
        %v3982 = vpop.f32.mrf.mxu0
        %v3983 = vadd.f32 %v3911, %v3982
        %3984 = vmatmul.bf16.gmra.mxu0 %v3872
        %v3985 = vpop.f32.mrf.mxu0
        %v3986 = vadd.f32 %v3911, %v3985
        %v3987 = vpop.f32.mrf.mxu0
        %v3988 = vadd.f32 %v3911, %v3987
        %3989 = vmatmul.bf16.gmra.mxu0 %v3873
        %v3990 = vpop.f32.mrf.mxu0
        %v3991 = vadd.f32 %v3911, %v3990
        %v3992 = vpop.f32.mrf.mxu0
        %v3993 = vadd.f32 %v3911, %v3992
        %3994 = vmatmul.bf16.gmra.mxu0 %v3874
        %v3995 = vpop.f32.mrf.mxu0
        %v3996 = vadd.f32 %v3911, %v3995
        %v3997 = vpop.f32.mrf.mxu0
        %v3998 = vadd.f32 %v3911, %v3997
        %3999 = vmatmul.bf16.gmra.mxu0 %v3875
        %v4000 = vpop.f32.mrf.mxu0
        %v4001 = vadd.f32 %v3911, %v4000
        %v4002 = vpop.f32.mrf.mxu0
        %v4003 = vadd.f32 %v3911, %v4002
        %4004 = vmatmul.bf16.gmra.mxu0 %v3876
        %v4005 = vpop.f32.mrf.mxu0
        %v4006 = vadd.f32 %v3911, %v4005
        %v4007 = vpop.f32.mrf.mxu0
        %v4008 = vadd.f32 %v3911, %v4007
        %4009 = vdwg.mxu0
        %v4010 = vadd.f32 %v3971, %v3877
        %v4011 = vadd.f32 %v3973, %v3878
        %v4012 = vadd.f32 %v3976, %v3879
        %v4013 = vadd.f32 %v3978, %v3880
        %v4014 = vadd.f32 %v3981, %v3881
        %v4015 = vadd.f32 %v3983, %v3882
        %v4016 = vadd.f32 %v3986, %v3883
        %v4017 = vadd.f32 %v3988, %v3884
        %v4018 = vadd.f32 %v3991, %v3885
        %v4019 = vadd.f32 %v3993, %v3886
        %v4020 = vadd.f32 %v3996, %v3887
        %v4021 = vadd.f32 %v3998, %v3888
        %v4022 = vadd.f32 %v4001, %v3889
        %v4023 = vadd.f32 %v4003, %v3890
        %v4024 = vadd.f32 %v4006, %v3891
        %v4025 = vadd.f32 %v4008, %v3892
        %v4026 = vmax.f32 %v4010, 0.0
        %v4027 = vmax.f32 %v4011, 0.0
        %v4028 = vmax.f32 %v4012, 0.0
        %v4029 = vmax.f32 %v4013, 0.0
        %v4030 = vmax.f32 %v4014, 0.0
        %v4031 = vmax.f32 %v4015, 0.0
        %v4032 = vmax.f32 %v4016, 0.0
        %v4033 = vmax.f32 %v4017, 0.0
        %v4034 = vmax.f32 %v4018, 0.0
        %v4035 = vmax.f32 %v4019, 0.0
        %v4036 = vmax.f32 %v4020, 0.0
        %v4037 = vmax.f32 %v4021, 0.0
        %v4038 = vmax.f32 %v4022, 0.0
        %v4039 = vmax.f32 %v4023, 0.0
        %v4040 = vmax.f32 %v4024, 0.0
        %v4041 = vmax.f32 %v4025, 0.0
        %4042 = vst [vmem:[%s534] sm:$0xff] %v4026
        %4043 = vst [vmem:[%s534 + $0x8] sm:$0xff] %v4027
        %4044 = vst [vmem:[%s534 + $0x10] sm:$0xff] %v4028
        %4045 = vst [vmem:[%s534 + $0x18] sm:$0xff] %v4029
        %4046 = vst [vmem:[%s534 + $0x20] sm:$0xff] %v4030
        %4047 = vst [vmem:[%s534 + $0x28] sm:$0xff] %v4031
        %4048 = vst [vmem:[%s534 + $0x30] sm:$0xff] %v4032
        %4049 = vst [vmem:[%s534 + $0x38] sm:$0xff] %v4033
        %4050 = vst [vmem:[%s534 + $0x40] sm:$0xff] %v4034
        %4051 = vst [vmem:[%s534 + $0x48] sm:$0xff] %v4035
        %4052 = vst [vmem:[%s534 + $0x50] sm:$0xff] %v4036
        %4053 = vst [vmem:[%s534 + $0x58] sm:$0xff] %v4037
        %4054 = vst [vmem:[%s534 + $0x60] sm:$0xff] %v4038
        %4055 = vst [vmem:[%s534 + $0x68] sm:$0xff] %v4039
        %4056 = vst [vmem:[%s534 + $0x70] sm:$0xff] %v4040
        %4057 = vst [vmem:[%s534 + $0x78] sm:$0xff] %v4041
        %s4058 = sand.u32 %s279, 1
        %s4059 = scalar_lea.sflag [#allocation5], %s4058
        %s4060 = sand.u32 %s279, 1
        %s4061 = smul.addr %s4060, 128
        %s4062 = scalar_lea.vmem [#allocation14], %s4061
        // Predicated region
        $region89: #{tpu_custom_call.1} parent=55 // pred_check
          %p4063 = pneg %p289
        $region90: #{tpu_custom_call.1} parent=55 // pred_check_branch
          %4065 = sbr.rel (%p4063) target = $region92
        $region91: #{tpu_custom_call.1} parent=55 // pred_region
          %s4066 = smul.u32 8, %s36
          %4068 = vsyncadd %s4059, 0
          %s4069 = smul.addr %s4066, 2
          %s4070 = smul.addr %s35, 32
          %s4071 = sadd.s32 %s4069, %s4070
          %s4072 = smul.addr %s4071, 8
          %s4073 = scalar_lea.hbm %s9, %s4072
          %s4074 = sshll.u32 %s4062, 4
          %s4075 = int_to_ptr.vmem [resolvable:$true] %s4074
          %s4076 = sshll.u32 %s4073, 4
          %s4077 = int_to_ptr.hbm [resolvable:$true] %s4076
          %4082 = dma.vmem_to_hbm [thread:$0]  %s4075, 2048, %s4077, %s4059, 128, 128, 8
        $region92: #{tpu_custom_call.1} parent=55 // pred_fallthru
          _
      $region56: #{tpu_custom_call.1} parent=5 // pred_fallthru
        _
      %p4083 = scmp.le.s32.totalorder 2, %s26
      // Predicated region
      $region93: #{tpu_custom_call.1} parent=5 // pred_check
        %p4084 = pneg %p4083
      $region94: #{tpu_custom_call.1} parent=5 // pred_check_branch
        %4086 = sbr.rel (%p4084) target = $region96
      $region95: #{tpu_custom_call.1} parent=5 // pred_region
        %s4087 = ssub.s32 %s26, 2
        // Predicated region
        $region97: #{tpu_custom_call.1} parent=95 // pred_check
          %p4088 = pneg %p295
        $region98: #{tpu_custom_call.1} parent=95 // pred_check_branch
          %4090 = sbr.rel (%p4088) target = $region100
        $region99: #{tpu_custom_call.1} parent=95 // pred_region
          %s4091 = sand.u32 %s280, 1
          %s4092 = scalar_lea.sflag [#allocation5], %s4091
          %s4093 = sand.u32 %s280, 1
          %s4094 = smul.addr %s4093, 128
          %s4095 = scalar_lea.vmem [#allocation14], %s4094
          %4097 = dma.done %s4092, 2048
        $region100: #{tpu_custom_call.1} parent=95 // pred_fallthru
          _
      $region96: #{tpu_custom_call.1} parent=5 // pred_fallthru
        _
    $region6: #{tpu_custom_call.1} parent=1 // loop_footer
      %s30 = sadd.s32 1, %s26
    $region7: #{tpu_custom_call.1} parent=1 // loop_footer_branch
      %25 = sbr.rel target = $region3
    $region8: #{tpu_custom_call.1} parent=1 // loop_exit
      _
    %4098 = vsyncpa [#allocation4], 1
    %s4099 = scalar_lea.sflag [#allocation4], 1
    %4100 = vsyncpa %s4099, 1
    %4101 = vsyncpa [#allocation7], 1
    %s4102 = scalar_lea.sflag [#allocation7], 1
    %4103 = vsyncpa %s4102, 1
    %4104 = vsyncpa [#allocation10], 1
    %4105 = vsyncpa [#allocation13], 1
    %4106 = vsyncpa [#allocation5], 1
    %s4107 = scalar_lea.sflag [#allocation5], 1
    %4108 = vsyncpa %s4107, 1

</llo_original>
